<compile_context>
chip_gen: v5e
topology: v5e:2x2
jax: 0.10.0
libtpu: 0.0.40
codegen_flags: <defaults>
</compile_context>

<pallas_src>
import functools
import math

import jax
import jax.numpy as jnp
from jax.experimental import pallas as pl
from jax.experimental.pallas import tpu as pltpu

# ---- model hyper-parameters (small, TPU-friendly stand-ins for the originals)
D_LM    = 256   # stands in for BERT hidden size 768
NINP    = 128   # stands in for ninp = 200
NHEAD   = 2
NHID    = 128   # stands in for nhid = 200
NLAYERS = 2
N_EDGES = 16    # stands in for len(dep_edges)
N_POS   = 16    # stands in for len(pos_tags)
LN_EPS  = 1e-5  # PyTorch TransformerEncoderLayer layer_norm_eps default

_N_LAYER_PARAMS = 12  # per-layer ref count in the flattened argument list


# --------------------------------------------------------------------------
# In-kernel helpers (traced inside the Pallas kernel)
# --------------------------------------------------------------------------
def _ln(x, g, b):
    """LayerNorm over the last axis, f32 statistics, affine (g, b)."""
    mu = jnp.mean(x, axis=-1, keepdims=True)
    xc = x - mu
    var = jnp.mean(xc * xc, axis=-1, keepdims=True)
    return xc * jax.lax.rsqrt(var + LN_EPS) * g + b


def _softmax_exact(logits):
    """Numerically-stable softmax over the last axis (exact division so the
    externally-observed distributions sum to 1 within 1e-4)."""
    m = jnp.max(logits, axis=-1, keepdims=True)
    e = jnp.exp(logits - m)
    return e / jnp.sum(e, axis=-1, keepdims=True)


def _dot_bf16(a_f32, w_bf16):
    """MXU matmul: bf16 operands, f32 accumulation."""
    return jnp.dot(a_f32.astype(jnp.bfloat16), w_bf16,
                   preferred_element_type=jnp.float32)


# --------------------------------------------------------------------------
# The single fused forward kernel
#   refs layout (positional):
#     [0]  lm_hidden (M, D_LM)
#     [1]  input_w   [2] input_b
#     [3 .. 3+12*NLAYERS)   per-layer params (12 each):
#           in_proj_w, in_proj_b, out_proj_w, out_proj_b,
#           norm1_g, norm1_b, lin1_w, lin1_b, lin2_w, lin2_b, norm2_g, norm2_b
#     next 8: V_w, V_b, PE_w, PE_b, KQ_w, KQ_b, B_w, B_b
#     outputs: edges (M, N_EDGES), adj (B, S, S), pos (M, N_POS)
#     scratch: attn_scr (M, NINP) f32  (per-layer attention output assembly)
# --------------------------------------------------------------------------
def _fused_forward_kernel(*refs, B, S):
    n_in = 3 + _N_LAYER_PARAMS * NLAYERS + 8
    in_refs = refs[:n_in]
    edges_ref = refs[n_in]
    adj_ref = refs[n_in + 1]
    pos_ref = refs[n_in + 2]
    attn_scr = refs[n_in + 3]

    x_ref, in_w_ref, in_b_ref = in_refs[0], in_refs[1], in_refs[2]

    L, N = B, S                 # attention mixes over axis 0 (B) — L positions, N rows
    E = NINP
    H = NHEAD
    HD = E // H
    scale = 1.0 / math.sqrt(HD)

    # ---- output = relu(input_linear(lm_hidden))
    x = jnp.maximum(_dot_bf16(x_ref[...], in_w_ref[...]) + in_b_ref[...], 0.0)  # (M, E)

    # ---- transformer_encoder_in (post-norm, relu FFN, eval dropout = identity)
    for layer in range(NLAYERS):
        base = 3 + layer * _N_LAYER_PARAMS
        (wqkv, bqkv, wout, bout, g1, be1,
         w1, b1, w2, b2, g2, be2) = in_refs[base:base + _N_LAYER_PARAMS]

        # packed q,k,v projection — one 3E-wide dot keeps the MXU lane-dense
        qkv = _dot_bf16(x, wqkv[...]) + bqkv[...]                    # (L*N, 3E) f32

        # per-timestep (over L) row blocks; heads live in 64-lane halves of E
        q = [qkv[l * N:(l + 1) * N, 0:E] for l in range(L)]
        k = [qkv[l * N:(l + 1) * N, E:2 * E] for l in range(L)]
        v = [qkv[l * N:(l + 1) * N, 2 * E:3 * E] for l in range(L)]

        # attention length L (== batch size B) is tiny, so the (L, L) score
        # matrices are computed with unrolled VPU ops instead of MXU pushes.
        for h in range(H):
            c0, c1 = h * HD, (h + 1) * HD
            for i in range(L):
                s = [jnp.sum(q[i][:, c0:c1] * k[j][:, c0:c1],
                             axis=-1, keepdims=True) * scale for j in range(L)]
                m = s[0]
                for j in range(1, L):
                    m = jnp.maximum(m, s[j])
                e = [jnp.exp(s[j] - m) for j in range(L)]
                den = e[0]
                for j in range(1, L):
                    den = den + e[j]
                inv = pl.reciprocal(den, approx=True)                # EUP slot — free
                acc = (e[0] * inv) * v[0][:, c0:c1]
                for j in range(1, L):
                    acc = acc + (e[j] * inv) * v[j][:, c0:c1]
                attn_scr[i * N:(i + 1) * N, c0:c1] = acc             # VMEM-resident

        attn = _dot_bf16(attn_scr[...], wout[...]) + bout[...]       # out_proj
        y = _ln(x + attn, g1[...], be1[...])                         # norm1(x + attn)

        ff = jnp.maximum(_dot_bf16(y, w1[...]) + b1[...], 0.0)
        ff = _dot_bf16(ff, w2[...]) + b2[...]
        x = _ln(y + ff, g2[...], be2[...])                           # norm2(y + ff)

    # ---- output heads + biaffine adjacency
    hb = 3 + NLAYERS * _N_LAYER_PARAMS
    (wv, bv, wpe, bpe, wkq, bkq, wbf, bbf) = in_refs[hb:hb + 8]

    vv = jnp.maximum(_dot_bf16(x, wv[...]) + bv[...], 0.0)           # relu(linearV(out))

    pe = _dot_bf16(vv, wpe[...]) + bpe[...]                          # (M, N_POS+N_EDGES)
    pos_ref[...] = _softmax_exact(pe[:, :N_POS])
    edges_ref[...] = _softmax_exact(pe[:, N_POS:])

    kq = _dot_bf16(x, wkq[...]) + bkq[...]                           # (M, 2*NHID)
    kk = kq[:, :NHID]
    qq = kq[:, NHID:]
    W = _dot_bf16(qq, wbf[...]) + bbf[...]                           # (M, NHID)

    k16 = kk.astype(jnp.bfloat16)
    W16 = W.astype(jnp.bfloat16)
    for b in range(B):                                               # B small & static
        kb = k16[b * S:(b + 1) * S, :]                               # (S, NHID)
        wb = W16[b * S:(b + 1) * S, :]                               # (S, NHID)
        sadj = jax.lax.dot_general(kb, wb, (((1,), (1,)), ((), ())),
                                   preferred_element_type=jnp.float32)   # (S, S)
        adj_ref[b] = _softmax_exact(sadj)


# --------------------------------------------------------------------------
# Wrapper
# --------------------------------------------------------------------------
def _full_spec(shape):
    nd = len(shape)
    if nd == 2:
        return pl.BlockSpec(shape, lambda i: (0, 0))
    if nd == 3:
        return pl.BlockSpec(shape, lambda i: (0, 0, 0))
    raise ValueError(f"unsupported rank {nd}")


def graph_transformer_forward(params, lm_hidden):
    # TODO(synk): self.language_model (a pretrained BERT-like model) has no clean
    # Pallas equivalent here; the kernel takes its output language_model(src)[0]
    # (the (B, S, D_LM) hidden states) directly as input.
    B, S, _ = lm_hidden.shape
    M = B * S

    flat_inputs = [lm_hidden.reshape(M, D_LM), params["input_w"], params["input_b"]]
    for lp in params["layers"]:
        flat_inputs += [lp["in_proj_w"], lp["in_proj_b"],
                        lp["out_proj_w"], lp["out_proj_b"],
                        lp["norm1_g"], lp["norm1_b"],
                        lp["lin1_w"], lp["lin1_b"],
                        lp["lin2_w"], lp["lin2_b"],
                        lp["norm2_g"], lp["norm2_b"]]
    flat_inputs += [params["V_w"], params["V_b"], params["PE_w"], params["PE_b"],
                    params["KQ_w"], params["KQ_b"], params["B_w"], params["B_b"]]

    edges, adj, pos = pl.pallas_call(
        functools.partial(_fused_forward_kernel, B=B, S=S),
        out_shape=(
            jax.ShapeDtypeStruct((M, N_EDGES), jnp.float32),
            jax.ShapeDtypeStruct((B, S, S), jnp.float32),
            jax.ShapeDtypeStruct((M, N_POS), jnp.float32),
        ),
        grid=(1,),
        in_specs=[_full_spec(a.shape) for a in flat_inputs],
        out_specs=(
            _full_spec((M, N_EDGES)),
            _full_spec((B, S, S)),
            _full_spec((M, N_POS)),
        ),
        scratch_shapes=[pltpu.VMEM((M, NINP), jnp.float32)],
        compiler_params=pltpu.CompilerParams(dimension_semantics=("arbitrary",)),
    )(*flat_inputs)

    return edges.reshape(B, S, N_EDGES), adj, pos.reshape(B, S, N_POS)


# --------------------------------------------------------------------------
# Deterministic parameter initialization
#   matmul weights are stored pre-transposed (in, out) in bfloat16 (MXU operands);
#   biases / LayerNorm affine parameters stay in float32.
# --------------------------------------------------------------------------
def init_params(key):
    keys = jax.random.split(key, 64)
    it = iter(keys)

    def u(shape, dtype=jnp.bfloat16, scale=0.1):
        w = jax.random.uniform(next(it), shape, jnp.float32, -scale, scale)
        return w.astype(dtype)

    params = {
        "input_w": u((D_LM, NINP)), "input_b": u((1, NINP), jnp.float32),
        "V_w": u((NINP, NHID)), "V_b": u((1, NHID), jnp.float32),
        # POS and EDGES heads fused into one (NHID, N_POS+N_EDGES) weight
        "PE_w": u((NHID, N_POS + N_EDGES)), "PE_b": u((1, N_POS + N_EDGES), jnp.float32),
        # K and Q projections fused into one (NINP, 2*NHID) weight
        "KQ_w": u((NINP, 2 * NHID)), "KQ_b": u((1, 2 * NHID), jnp.float32),
        "B_w": u((NINP, NHID)), "B_b": u((1, NHID), jnp.float32),
        "layers": [],
    }
    for _ in range(NLAYERS):
        params["layers"].append({
            "in_proj_w": u((NINP, 3 * NINP)), "in_proj_b": u((1, 3 * NINP), jnp.float32),
            "out_proj_w": u((NINP, NINP)), "out_proj_b": u((1, NINP), jnp.float32),
            "lin1_w": u((NINP, NHID)), "lin1_b": u((1, NHID), jnp.float32),
            "lin2_w": u((NHID, NINP)), "lin2_b": u((1, NINP), jnp.float32),
            "norm1_g": jnp.ones((1, NINP), jnp.float32),
            "norm1_b": jnp.zeros((1, NINP), jnp.float32),
            "norm2_g": jnp.ones((1, NINP), jnp.float32),
            "norm2_b": jnp.zeros((1, NINP), jnp.float32),
        })
    return params


if __name__ == "__main__":
    key = jax.random.PRNGKey(0)
    pkey, xkey = jax.random.split(key)
    params = init_params(pkey)

    B, S = 2, 8
    lm_hidden = jax.random.normal(xkey, (B, S, D_LM), dtype=jnp.float32)

    fwd = jax.jit(graph_transformer_forward)
    edges, adj, pos = fwd(params, lm_hidden)
    jax.block_until_ready((edges, adj, pos))

    assert edges.shape == (B, S, N_EDGES) and edges.dtype == jnp.float32
    assert adj.shape == (B, S, S) and adj.dtype == jnp.float32
    assert pos.shape == (B, S, N_POS) and pos.dtype == jnp.float32
    # each output is a softmax distribution over its last axis
    assert bool(jnp.allclose(edges.sum(-1), 1.0, atol=1e-4))
    assert bool(jnp.allclose(adj.sum(-1), 1.0, atol=1e-4))
    assert bool(jnp.allclose(pos.sum(-1), 1.0, atol=1e-4))

    print("KERNEL_OK")
</pallas_src>

<mosaic_0001>
module attributes {stable_mosaic.version = 11 : i64} {
  func.func @_fused_forward_kernel(%arg0: i32, %arg1: memref<16x256xf32, #tpu.memory_space<vmem>>, %arg2: memref<256x128xbf16, #tpu.memory_space<vmem>>, %arg3: memref<1x128xf32, #tpu.memory_space<vmem>>, %arg4: memref<128x384xbf16, #tpu.memory_space<vmem>>, %arg5: memref<1x384xf32, #tpu.memory_space<vmem>>, %arg6: memref<128x128xbf16, #tpu.memory_space<vmem>>, %arg7: memref<1x128xf32, #tpu.memory_space<vmem>>, %arg8: memref<1x128xf32, #tpu.memory_space<vmem>>, %arg9: memref<1x128xf32, #tpu.memory_space<vmem>>, %arg10: memref<128x128xbf16, #tpu.memory_space<vmem>>, %arg11: memref<1x128xf32, #tpu.memory_space<vmem>>, %arg12: memref<128x128xbf16, #tpu.memory_space<vmem>>, %arg13: memref<1x128xf32, #tpu.memory_space<vmem>>, %arg14: memref<1x128xf32, #tpu.memory_space<vmem>>, %arg15: memref<1x128xf32, #tpu.memory_space<vmem>>, %arg16: memref<128x384xbf16, #tpu.memory_space<vmem>>, %arg17: memref<1x384xf32, #tpu.memory_space<vmem>>, %arg18: memref<128x128xbf16, #tpu.memory_space<vmem>>, %arg19: memref<1x128xf32, #tpu.memory_space<vmem>>, %arg20: memref<1x128xf32, #tpu.memory_space<vmem>>, %arg21: memref<1x128xf32, #tpu.memory_space<vmem>>, %arg22: memref<128x128xbf16, #tpu.memory_space<vmem>>, %arg23: memref<1x128xf32, #tpu.memory_space<vmem>>, %arg24: memref<128x128xbf16, #tpu.memory_space<vmem>>, %arg25: memref<1x128xf32, #tpu.memory_space<vmem>>, %arg26: memref<1x128xf32, #tpu.memory_space<vmem>>, %arg27: memref<1x128xf32, #tpu.memory_space<vmem>>, %arg28: memref<128x128xbf16, #tpu.memory_space<vmem>>, %arg29: memref<1x128xf32, #tpu.memory_space<vmem>>, %arg30: memref<128x32xbf16, #tpu.memory_space<vmem>>, %arg31: memref<1x32xf32, #tpu.memory_space<vmem>>, %arg32: memref<128x256xbf16, #tpu.memory_space<vmem>>, %arg33: memref<1x256xf32, #tpu.memory_space<vmem>>, %arg34: memref<128x128xbf16, #tpu.memory_space<vmem>>, %arg35: memref<1x128xf32, #tpu.memory_space<vmem>>, %arg36: memref<16x16xf32, #tpu.memory_space<vmem>>, %arg37: memref<2x8x8xf32, #tpu.memory_space<vmem>>, %arg38: memref<16x16xf32, #tpu.memory_space<vmem>>, %arg39: memref<16x128xf32, #tpu.memory_space<vmem>>) attributes {dimension_semantics = [#tpu.dimension_semantics<arbitrary>], iteration_bounds = array<i64: 1>, scalar_prefetch = 0 : i64, scratch_operands = 1 : i64, tpu.core_type = #tpu.core_type<tc>, window_params = [{pipeline_mode = #tpu.pipeline_mode<synchronous>, transform_indices = @transform_0, window_bounds = array<i64: 16, 256>}, {pipeline_mode = #tpu.pipeline_mode<synchronous>, transform_indices = @transform_1, window_bounds = array<i64: 256, 128>}, {pipeline_mode = #tpu.pipeline_mode<synchronous>, transform_indices = @transform_2, window_bounds = array<i64: 1, 128>}, {pipeline_mode = #tpu.pipeline_mode<synchronous>, transform_indices = @transform_3, window_bounds = array<i64: 128, 384>}, {pipeline_mode = #tpu.pipeline_mode<synchronous>, transform_indices = @transform_4, window_bounds = array<i64: 1, 384>}, {pipeline_mode = #tpu.pipeline_mode<synchronous>, transform_indices = @transform_5, window_bounds = array<i64: 128, 128>}, {pipeline_mode = #tpu.pipeline_mode<synchronous>, transform_indices = @transform_6, window_bounds = array<i64: 1, 128>}, {pipeline_mode = #tpu.pipeline_mode<synchronous>, transform_indices = @transform_7, window_bounds = array<i64: 1, 128>}, {pipeline_mode = #tpu.pipeline_mode<synchronous>, transform_indices = @transform_8, window_bounds = array<i64: 1, 128>}, {pipeline_mode = #tpu.pipeline_mode<synchronous>, transform_indices = @transform_9, window_bounds = array<i64: 128, 128>}, {pipeline_mode = #tpu.pipeline_mode<synchronous>, transform_indices = @transform_10, window_bounds = array<i64: 1, 128>}, {pipeline_mode = #tpu.pipeline_mode<synchronous>, transform_indices = @transform_11, window_bounds = array<i64: 128, 128>}, {pipeline_mode = #tpu.pipeline_mode<synchronous>, transform_indices = @transform_12, window_bounds = array<i64: 1, 128>}, {pipeline_mode = #tpu.pipeline_mode<synchronous>, transform_indices = @transform_13, window_bounds = array<i64: 1, 128>}, {pipeline_mode = #tpu.pipeline_mode<synchronous>, transform_indices = @transform_14, window_bounds = array<i64: 1, 128>}, {pipeline_mode = #tpu.pipeline_mode<synchronous>, transform_indices = @transform_15, window_bounds = array<i64: 128, 384>}, {pipeline_mode = #tpu.pipeline_mode<synchronous>, transform_indices = @transform_16, window_bounds = array<i64: 1, 384>}, {pipeline_mode = #tpu.pipeline_mode<synchronous>, transform_indices = @transform_17, window_bounds = array<i64: 128, 128>}, {pipeline_mode = #tpu.pipeline_mode<synchronous>, transform_indices = @transform_18, window_bounds = array<i64: 1, 128>}, {pipeline_mode = #tpu.pipeline_mode<synchronous>, transform_indices = @transform_19, window_bounds = array<i64: 1, 128>}, {pipeline_mode = #tpu.pipeline_mode<synchronous>, transform_indices = @transform_20, window_bounds = array<i64: 1, 128>}, {pipeline_mode = #tpu.pipeline_mode<synchronous>, transform_indices = @transform_21, window_bounds = array<i64: 128, 128>}, {pipeline_mode = #tpu.pipeline_mode<synchronous>, transform_indices = @transform_22, window_bounds = array<i64: 1, 128>}, {pipeline_mode = #tpu.pipeline_mode<synchronous>, transform_indices = @transform_23, window_bounds = array<i64: 128, 128>}, {pipeline_mode = #tpu.pipeline_mode<synchronous>, transform_indices = @transform_24, window_bounds = array<i64: 1, 128>}, {pipeline_mode = #tpu.pipeline_mode<synchronous>, transform_indices = @transform_25, window_bounds = array<i64: 1, 128>}, {pipeline_mode = #tpu.pipeline_mode<synchronous>, transform_indices = @transform_26, window_bounds = array<i64: 1, 128>}, {pipeline_mode = #tpu.pipeline_mode<synchronous>, transform_indices = @transform_27, window_bounds = array<i64: 128, 128>}, {pipeline_mode = #tpu.pipeline_mode<synchronous>, transform_indices = @transform_28, window_bounds = array<i64: 1, 128>}, {pipeline_mode = #tpu.pipeline_mode<synchronous>, transform_indices = @transform_29, window_bounds = array<i64: 128, 32>}, {pipeline_mode = #tpu.pipeline_mode<synchronous>, transform_indices = @transform_30, window_bounds = array<i64: 1, 32>}, {pipeline_mode = #tpu.pipeline_mode<synchronous>, transform_indices = @transform_31, window_bounds = array<i64: 128, 256>}, {pipeline_mode = #tpu.pipeline_mode<synchronous>, transform_indices = @transform_32, window_bounds = array<i64: 1, 256>}, {pipeline_mode = #tpu.pipeline_mode<synchronous>, transform_indices = @transform_33, window_bounds = array<i64: 128, 128>}, {pipeline_mode = #tpu.pipeline_mode<synchronous>, transform_indices = @transform_34, window_bounds = array<i64: 1, 128>}, {pipeline_mode = #tpu.pipeline_mode<synchronous>, transform_indices = @transform_35, window_bounds = array<i64: 16, 16>}, {pipeline_mode = #tpu.pipeline_mode<synchronous>, transform_indices = @transform_36, window_bounds = array<i64: 2, 8, 8>}, {pipeline_mode = #tpu.pipeline_mode<synchronous>, transform_indices = @transform_37, window_bounds = array<i64: 16, 16>}]} {
    %c0 = arith.constant 0 : index
    %c0_0 = arith.constant 0 : index
    %0 = vector.load %arg1[%c0, %c0_0] : memref<16x256xf32, #tpu.memory_space<vmem>>, vector<16x256xf32>
    %c0_1 = arith.constant 0 : index
    %c0_2 = arith.constant 0 : index
    %1 = vector.load %arg2[%c0_1, %c0_2] : memref<256x128xbf16, #tpu.memory_space<vmem>>, vector<256x128xbf16>
    %2 = arith.truncf %0 : vector<16x256xf32> to vector<16x256xbf16>
    %cst = arith.constant dense<0.000000e+00> : vector<16x128xf32>
    %3 = tpu.matmul %2, %1, %cst {dimension_numbers = #tpu.dot_dimension_numbers<[1], [0], [0], [1], [0, 0, 1, 1], [], []>} : vector<16x256xbf16>, vector<256x128xbf16>, vector<16x128xf32> -> vector<16x128xf32>
    %c0_3 = arith.constant 0 : index
    %c0_4 = arith.constant 0 : index
    %4 = vector.load %arg3[%c0_3, %c0_4] : memref<1x128xf32, #tpu.memory_space<vmem>>, vector<1x128xf32>
    %5 = vector.broadcast %4 : vector<1x128xf32> to vector<16x128xf32>
    %6 = arith.addf %3, %5 : vector<16x128xf32>
    %cst_5 = arith.constant 0.000000e+00 : f32
    %7 = vector.broadcast %cst_5 : f32 to vector<16x128xf32>
    %8 = arith.maximumf %6, %7 : vector<16x128xf32>
    %c0_6 = arith.constant 0 : index
    %c0_7 = arith.constant 0 : index
    %9 = vector.load %arg4[%c0_6, %c0_7] : memref<128x384xbf16, #tpu.memory_space<vmem>>, vector<128x384xbf16>
    %10 = arith.truncf %8 : vector<16x128xf32> to vector<16x128xbf16>
    %cst_8 = arith.constant dense<0.000000e+00> : vector<16x384xf32>
    %11 = tpu.matmul %10, %9, %cst_8 {dimension_numbers = #tpu.dot_dimension_numbers<[1], [0], [0], [1], [0, 0, 1, 1], [], []>} : vector<16x128xbf16>, vector<128x384xbf16>, vector<16x384xf32> -> vector<16x384xf32>
    %c0_9 = arith.constant 0 : index
    %c0_10 = arith.constant 0 : index
    %12 = vector.load %arg5[%c0_9, %c0_10] : memref<1x384xf32, #tpu.memory_space<vmem>>, vector<1x384xf32>
    %13 = vector.broadcast %12 : vector<1x384xf32> to vector<16x384xf32>
    %14 = arith.addf %11, %13 : vector<16x384xf32>
    %15 = vector.extract_strided_slice %14 {offsets = [0, 0], sizes = [8, 128], strides = [1, 1]} : vector<16x384xf32> to vector<8x128xf32>
    %16 = vector.extract_strided_slice %14 {offsets = [8, 0], sizes = [8, 128], strides = [1, 1]} : vector<16x384xf32> to vector<8x128xf32>
    %17 = vector.extract_strided_slice %14 {offsets = [0, 128], sizes = [8, 128], strides = [1, 1]} : vector<16x384xf32> to vector<8x128xf32>
    %18 = vector.extract_strided_slice %14 {offsets = [8, 128], sizes = [8, 128], strides = [1, 1]} : vector<16x384xf32> to vector<8x128xf32>
    %19 = vector.extract_strided_slice %14 {offsets = [0, 256], sizes = [8, 128], strides = [1, 1]} : vector<16x384xf32> to vector<8x128xf32>
    %20 = vector.extract_strided_slice %14 {offsets = [8, 256], sizes = [8, 128], strides = [1, 1]} : vector<16x384xf32> to vector<8x128xf32>
    %21 = vector.extract_strided_slice %15 {offsets = [0, 0], sizes = [8, 64], strides = [1, 1]} : vector<8x128xf32> to vector<8x64xf32>
    %22 = vector.extract_strided_slice %17 {offsets = [0, 0], sizes = [8, 64], strides = [1, 1]} : vector<8x128xf32> to vector<8x64xf32>
    %23 = arith.mulf %21, %22 : vector<8x64xf32>
    %cst_11 = arith.constant dense<0.000000e+00> : vector<8xf32>
    %24 = vector.multi_reduction <add>, %23, %cst_11 [1] : vector<8x64xf32> to vector<8xf32>
    %25 = vector.shape_cast %24 : vector<8xf32> to vector<8x1xf32>
    %cst_12 = arith.constant 1.250000e-01 : f32
    %26 = vector.broadcast %cst_12 : f32 to vector<8x1xf32>
    %27 = arith.mulf %25, %26 : vector<8x1xf32>
    %28 = vector.extract_strided_slice %15 {offsets = [0, 0], sizes = [8, 64], strides = [1, 1]} : vector<8x128xf32> to vector<8x64xf32>
    %29 = vector.extract_strided_slice %18 {offsets = [0, 0], sizes = [8, 64], strides = [1, 1]} : vector<8x128xf32> to vector<8x64xf32>
    %30 = arith.mulf %28, %29 : vector<8x64xf32>
    %cst_13 = arith.constant dense<0.000000e+00> : vector<8xf32>
    %31 = vector.multi_reduction <add>, %30, %cst_13 [1] : vector<8x64xf32> to vector<8xf32>
    %32 = vector.shape_cast %31 : vector<8xf32> to vector<8x1xf32>
    %cst_14 = arith.constant 1.250000e-01 : f32
    %33 = vector.broadcast %cst_14 : f32 to vector<8x1xf32>
    %34 = arith.mulf %32, %33 : vector<8x1xf32>
    %35 = arith.maximumf %27, %34 : vector<8x1xf32>
    %36 = arith.subf %27, %35 : vector<8x1xf32>
    %37 = math.exp %36 : vector<8x1xf32>
    %38 = arith.subf %34, %35 : vector<8x1xf32>
    %39 = math.exp %38 : vector<8x1xf32>
    %40 = arith.addf %37, %39 : vector<8x1xf32>
    %41 = tpu.reciprocal %40 {approx = true} : vector<8x1xf32> -> vector<8x1xf32>
    %42 = arith.mulf %37, %41 : vector<8x1xf32>
    %43 = vector.extract_strided_slice %19 {offsets = [0, 0], sizes = [8, 64], strides = [1, 1]} : vector<8x128xf32> to vector<8x64xf32>
    %44 = vector.broadcast %42 : vector<8x1xf32> to vector<8x64xf32>
    %45 = arith.mulf %44, %43 : vector<8x64xf32>
    %46 = arith.mulf %39, %41 : vector<8x1xf32>
    %47 = vector.extract_strided_slice %20 {offsets = [0, 0], sizes = [8, 64], strides = [1, 1]} : vector<8x128xf32> to vector<8x64xf32>
    %48 = vector.broadcast %46 : vector<8x1xf32> to vector<8x64xf32>
    %49 = arith.mulf %48, %47 : vector<8x64xf32>
    %50 = arith.addf %45, %49 : vector<8x64xf32>
    %c0_15 = arith.constant 0 : index
    %c0_16 = arith.constant 0 : index
    %51 = vector.load %arg39[%c0_15, %c0_16] : memref<16x128xf32, #tpu.memory_space<vmem>>, vector<8x64xf32>
    tpu.vector_store %arg39[%c0_15, %c0_16], %50 {strides = array<i32>} : memref<16x128xf32, #tpu.memory_space<vmem>>, vector<8x64xf32>,
    %52 = vector.extract_strided_slice %16 {offsets = [0, 0], sizes = [8, 64], strides = [1, 1]} : vector<8x128xf32> to vector<8x64xf32>
    %53 = vector.extract_strided_slice %17 {offsets = [0, 0], sizes = [8, 64], strides = [1, 1]} : vector<8x128xf32> to vector<8x64xf32>
    %54 = arith.mulf %52, %53 : vector<8x64xf32>
    %cst_17 = arith.constant dense<0.000000e+00> : vector<8xf32>
    %55 = vector.multi_reduction <add>, %54, %cst_17 [1] : vector<8x64xf32> to vector<8xf32>
    %56 = vector.shape_cast %55 : vector<8xf32> to vector<8x1xf32>
    %cst_18 = arith.constant 1.250000e-01 : f32
    %57 = vector.broadcast %cst_18 : f32 to vector<8x1xf32>
    %58 = arith.mulf %56, %57 : vector<8x1xf32>
    %59 = vector.extract_strided_slice %16 {offsets = [0, 0], sizes = [8, 64], strides = [1, 1]} : vector<8x128xf32> to vector<8x64xf32>
    %60 = vector.extract_strided_slice %18 {offsets = [0, 0], sizes = [8, 64], strides = [1, 1]} : vector<8x128xf32> to vector<8x64xf32>
    %61 = arith.mulf %59, %60 : vector<8x64xf32>
    %cst_19 = arith.constant dense<0.000000e+00> : vector<8xf32>
    %62 = vector.multi_reduction <add>, %61, %cst_19 [1] : vector<8x64xf32> to vector<8xf32>
    %63 = vector.shape_cast %62 : vector<8xf32> to vector<8x1xf32>
    %cst_20 = arith.constant 1.250000e-01 : f32
    %64 = vector.broadcast %cst_20 : f32 to vector<8x1xf32>
    %65 = arith.mulf %63, %64 : vector<8x1xf32>
    %66 = arith.maximumf %58, %65 : vector<8x1xf32>
    %67 = arith.subf %58, %66 : vector<8x1xf32>
    %68 = math.exp %67 : vector<8x1xf32>
    %69 = arith.subf %65, %66 : vector<8x1xf32>
    %70 = math.exp %69 : vector<8x1xf32>
    %71 = arith.addf %68, %70 : vector<8x1xf32>
    %72 = tpu.reciprocal %71 {approx = true} : vector<8x1xf32> -> vector<8x1xf32>
    %73 = arith.mulf %68, %72 : vector<8x1xf32>
    %74 = vector.extract_strided_slice %19 {offsets = [0, 0], sizes = [8, 64], strides = [1, 1]} : vector<8x128xf32> to vector<8x64xf32>
    %75 = vector.broadcast %73 : vector<8x1xf32> to vector<8x64xf32>
    %76 = arith.mulf %75, %74 : vector<8x64xf32>
    %77 = arith.mulf %70, %72 : vector<8x1xf32>
    %78 = vector.extract_strided_slice %20 {offsets = [0, 0], sizes = [8, 64], strides = [1, 1]} : vector<8x128xf32> to vector<8x64xf32>
    %79 = vector.broadcast %77 : vector<8x1xf32> to vector<8x64xf32>
    %80 = arith.mulf %79, %78 : vector<8x64xf32>
    %81 = arith.addf %76, %80 : vector<8x64xf32>
    %c8 = arith.constant 8 : index
    %c0_21 = arith.constant 0 : index
    %82 = vector.load %arg39[%c8, %c0_21] : memref<16x128xf32, #tpu.memory_space<vmem>>, vector<8x64xf32>
    tpu.vector_store %arg39[%c8, %c0_21], %81 {strides = array<i32>} : memref<16x128xf32, #tpu.memory_space<vmem>>, vector<8x64xf32>,
    %83 = vector.extract_strided_slice %15 {offsets = [0, 64], sizes = [8, 64], strides = [1, 1]} : vector<8x128xf32> to vector<8x64xf32>
    %84 = vector.extract_strided_slice %17 {offsets = [0, 64], sizes = [8, 64], strides = [1, 1]} : vector<8x128xf32> to vector<8x64xf32>
    %85 = arith.mulf %83, %84 : vector<8x64xf32>
    %cst_22 = arith.constant dense<0.000000e+00> : vector<8xf32>
    %86 = vector.multi_reduction <add>, %85, %cst_22 [1] : vector<8x64xf32> to vector<8xf32>
    %87 = vector.shape_cast %86 : vector<8xf32> to vector<8x1xf32>
    %cst_23 = arith.constant 1.250000e-01 : f32
    %88 = vector.broadcast %cst_23 : f32 to vector<8x1xf32>
    %89 = arith.mulf %87, %88 : vector<8x1xf32>
    %90 = vector.extract_strided_slice %15 {offsets = [0, 64], sizes = [8, 64], strides = [1, 1]} : vector<8x128xf32> to vector<8x64xf32>
    %91 = vector.extract_strided_slice %18 {offsets = [0, 64], sizes = [8, 64], strides = [1, 1]} : vector<8x128xf32> to vector<8x64xf32>
    %92 = arith.mulf %90, %91 : vector<8x64xf32>
    %cst_24 = arith.constant dense<0.000000e+00> : vector<8xf32>
    %93 = vector.multi_reduction <add>, %92, %cst_24 [1] : vector<8x64xf32> to vector<8xf32>
    %94 = vector.shape_cast %93 : vector<8xf32> to vector<8x1xf32>
    %cst_25 = arith.constant 1.250000e-01 : f32
    %95 = vector.broadcast %cst_25 : f32 to vector<8x1xf32>
    %96 = arith.mulf %94, %95 : vector<8x1xf32>
    %97 = arith.maximumf %89, %96 : vector<8x1xf32>
    %98 = arith.subf %89, %97 : vector<8x1xf32>
    %99 = math.exp %98 : vector<8x1xf32>
    %100 = arith.subf %96, %97 : vector<8x1xf32>
    %101 = math.exp %100 : vector<8x1xf32>
    %102 = arith.addf %99, %101 : vector<8x1xf32>
    %103 = tpu.reciprocal %102 {approx = true} : vector<8x1xf32> -> vector<8x1xf32>
    %104 = arith.mulf %99, %103 : vector<8x1xf32>
    %105 = vector.extract_strided_slice %19 {offsets = [0, 64], sizes = [8, 64], strides = [1, 1]} : vector<8x128xf32> to vector<8x64xf32>
    %106 = vector.broadcast %104 : vector<8x1xf32> to vector<8x64xf32>
    %107 = arith.mulf %106, %105 : vector<8x64xf32>
    %108 = arith.mulf %101, %103 : vector<8x1xf32>
    %109 = vector.extract_strided_slice %20 {offsets = [0, 64], sizes = [8, 64], strides = [1, 1]} : vector<8x128xf32> to vector<8x64xf32>
    %110 = vector.broadcast %108 : vector<8x1xf32> to vector<8x64xf32>
    %111 = arith.mulf %110, %109 : vector<8x64xf32>
    %112 = arith.addf %107, %111 : vector<8x64xf32>
    %c0_26 = arith.constant 0 : index
    %c64 = arith.constant 64 : index
    %113 = vector.load %arg39[%c0_26, %c64] : memref<16x128xf32, #tpu.memory_space<vmem>>, vector<8x64xf32>
    tpu.vector_store %arg39[%c0_26, %c64], %112 {strides = array<i32>} : memref<16x128xf32, #tpu.memory_space<vmem>>, vector<8x64xf32>,
    %114 = vector.extract_strided_slice %16 {offsets = [0, 64], sizes = [8, 64], strides = [1, 1]} : vector<8x128xf32> to vector<8x64xf32>
    %115 = vector.extract_strided_slice %17 {offsets = [0, 64], sizes = [8, 64], strides = [1, 1]} : vector<8x128xf32> to vector<8x64xf32>
    %116 = arith.mulf %114, %115 : vector<8x64xf32>
    %cst_27 = arith.constant dense<0.000000e+00> : vector<8xf32>
    %117 = vector.multi_reduction <add>, %116, %cst_27 [1] : vector<8x64xf32> to vector<8xf32>
    %118 = vector.shape_cast %117 : vector<8xf32> to vector<8x1xf32>
    %cst_28 = arith.constant 1.250000e-01 : f32
    %119 = vector.broadcast %cst_28 : f32 to vector<8x1xf32>
    %120 = arith.mulf %118, %119 : vector<8x1xf32>
    %121 = vector.extract_strided_slice %16 {offsets = [0, 64], sizes = [8, 64], strides = [1, 1]} : vector<8x128xf32> to vector<8x64xf32>
    %122 = vector.extract_strided_slice %18 {offsets = [0, 64], sizes = [8, 64], strides = [1, 1]} : vector<8x128xf32> to vector<8x64xf32>
    %123 = arith.mulf %121, %122 : vector<8x64xf32>
    %cst_29 = arith.constant dense<0.000000e+00> : vector<8xf32>
    %124 = vector.multi_reduction <add>, %123, %cst_29 [1] : vector<8x64xf32> to vector<8xf32>
    %125 = vector.shape_cast %124 : vector<8xf32> to vector<8x1xf32>
    %cst_30 = arith.constant 1.250000e-01 : f32
    %126 = vector.broadcast %cst_30 : f32 to vector<8x1xf32>
    %127 = arith.mulf %125, %126 : vector<8x1xf32>
    %128 = arith.maximumf %120, %127 : vector<8x1xf32>
    %129 = arith.subf %120, %128 : vector<8x1xf32>
    %130 = math.exp %129 : vector<8x1xf32>
    %131 = arith.subf %127, %128 : vector<8x1xf32>
    %132 = math.exp %131 : vector<8x1xf32>
    %133 = arith.addf %130, %132 : vector<8x1xf32>
    %134 = tpu.reciprocal %133 {approx = true} : vector<8x1xf32> -> vector<8x1xf32>
    %135 = arith.mulf %130, %134 : vector<8x1xf32>
    %136 = vector.extract_strided_slice %19 {offsets = [0, 64], sizes = [8, 64], strides = [1, 1]} : vector<8x128xf32> to vector<8x64xf32>
    %137 = vector.broadcast %135 : vector<8x1xf32> to vector<8x64xf32>
    %138 = arith.mulf %137, %136 : vector<8x64xf32>
    %139 = arith.mulf %132, %134 : vector<8x1xf32>
    %140 = vector.extract_strided_slice %20 {offsets = [0, 64], sizes = [8, 64], strides = [1, 1]} : vector<8x128xf32> to vector<8x64xf32>
    %141 = vector.broadcast %139 : vector<8x1xf32> to vector<8x64xf32>
    %142 = arith.mulf %141, %140 : vector<8x64xf32>
    %143 = arith.addf %138, %142 : vector<8x64xf32>
    %c8_31 = arith.constant 8 : index
    %c64_32 = arith.constant 64 : index
    %144 = vector.load %arg39[%c8_31, %c64_32] : memref<16x128xf32, #tpu.memory_space<vmem>>, vector<8x64xf32>
    tpu.vector_store %arg39[%c8_31, %c64_32], %143 {strides = array<i32>} : memref<16x128xf32, #tpu.memory_space<vmem>>, vector<8x64xf32>,
    %c0_33 = arith.constant 0 : index
    %c0_34 = arith.constant 0 : index
    %145 = vector.load %arg39[%c0_33, %c0_34] : memref<16x128xf32, #tpu.memory_space<vmem>>, vector<16x128xf32>
    %c0_35 = arith.constant 0 : index
    %c0_36 = arith.constant 0 : index
    %146 = vector.load %arg6[%c0_35, %c0_36] : memref<128x128xbf16, #tpu.memory_space<vmem>>, vector<128x128xbf16>
    %147 = arith.truncf %145 : vector<16x128xf32> to vector<16x128xbf16>
    %cst_37 = arith.constant dense<0.000000e+00> : vector<16x128xf32>
    %148 = tpu.matmul %147, %146, %cst_37 {dimension_numbers = #tpu.dot_dimension_numbers<[1], [0], [0], [1], [0, 0, 1, 1], [], []>} : vector<16x128xbf16>, vector<128x128xbf16>, vector<16x128xf32> -> vector<16x128xf32>
    %c0_38 = arith.constant 0 : index
    %c0_39 = arith.constant 0 : index
    %149 = vector.load %arg7[%c0_38, %c0_39] : memref<1x128xf32, #tpu.memory_space<vmem>>, vector<1x128xf32>
    %150 = vector.broadcast %149 : vector<1x128xf32> to vector<16x128xf32>
    %151 = arith.addf %148, %150 : vector<16x128xf32>
    %152 = arith.addf %8, %151 : vector<16x128xf32>
    %c0_40 = arith.constant 0 : index
    %c0_41 = arith.constant 0 : index
    %153 = vector.load %arg8[%c0_40, %c0_41] : memref<1x128xf32, #tpu.memory_space<vmem>>, vector<1x128xf32>
    %c0_42 = arith.constant 0 : index
    %c0_43 = arith.constant 0 : index
    %154 = vector.load %arg9[%c0_42, %c0_43] : memref<1x128xf32, #tpu.memory_space<vmem>>, vector<1x128xf32>
    %cst_44 = arith.constant dense<0.000000e+00> : vector<16xf32>
    %155 = vector.multi_reduction <add>, %152, %cst_44 [1] : vector<16x128xf32> to vector<16xf32>
    %156 = vector.shape_cast %155 : vector<16xf32> to vector<16x1xf32>
    %cst_45 = arith.constant 1.280000e+02 : f32
    %157 = vector.broadcast %cst_45 : f32 to vector<16x1xf32>
    %158 = arith.divf %156, %157 : vector<16x1xf32>
    %159 = vector.broadcast %158 : vector<16x1xf32> to vector<16x128xf32>
    %160 = arith.subf %152, %159 : vector<16x128xf32>
    %161 = arith.mulf %160, %160 : vector<16x128xf32>
    %cst_46 = arith.constant dense<0.000000e+00> : vector<16xf32>
    %162 = vector.multi_reduction <add>, %161, %cst_46 [1] : vector<16x128xf32> to vector<16xf32>
    %163 = vector.shape_cast %162 : vector<16xf32> to vector<16x1xf32>
    %cst_47 = arith.constant 1.280000e+02 : f32
    %164 = vector.broadcast %cst_47 : f32 to vector<16x1xf32>
    %165 = arith.divf %163, %164 : vector<16x1xf32>
    %cst_48 = arith.constant 9.99999974E-6 : f32
    %166 = vector.broadcast %cst_48 : f32 to vector<16x1xf32>
    %167 = arith.addf %165, %166 : vector<16x1xf32>
    %168 = math.rsqrt %167 : vector<16x1xf32>
    %169 = vector.broadcast %168 : vector<16x1xf32> to vector<16x128xf32>
    %170 = arith.mulf %160, %169 : vector<16x128xf32>
    %171 = vector.broadcast %153 : vector<1x128xf32> to vector<16x128xf32>
    %172 = arith.mulf %170, %171 : vector<16x128xf32>
    %173 = vector.broadcast %154 : vector<1x128xf32> to vector<16x128xf32>
    %174 = arith.addf %172, %173 : vector<16x128xf32>
    %c0_49 = arith.constant 0 : index
    %c0_50 = arith.constant 0 : index
    %175 = vector.load %arg10[%c0_49, %c0_50] : memref<128x128xbf16, #tpu.memory_space<vmem>>, vector<128x128xbf16>
    %176 = arith.truncf %174 : vector<16x128xf32> to vector<16x128xbf16>
    %cst_51 = arith.constant dense<0.000000e+00> : vector<16x128xf32>
    %177 = tpu.matmul %176, %175, %cst_51 {dimension_numbers = #tpu.dot_dimension_numbers<[1], [0], [0], [1], [0, 0, 1, 1], [], []>} : vector<16x128xbf16>, vector<128x128xbf16>, vector<16x128xf32> -> vector<16x128xf32>
    %c0_52 = arith.constant 0 : index
    %c0_53 = arith.constant 0 : index
    %178 = vector.load %arg11[%c0_52, %c0_53] : memref<1x128xf32, #tpu.memory_space<vmem>>, vector<1x128xf32>
    %179 = vector.broadcast %178 : vector<1x128xf32> to vector<16x128xf32>
    %180 = arith.addf %177, %179 : vector<16x128xf32>
    %cst_54 = arith.constant 0.000000e+00 : f32
    %181 = vector.broadcast %cst_54 : f32 to vector<16x128xf32>
    %182 = arith.maximumf %180, %181 : vector<16x128xf32>
    %c0_55 = arith.constant 0 : index
    %c0_56 = arith.constant 0 : index
    %183 = vector.load %arg12[%c0_55, %c0_56] : memref<128x128xbf16, #tpu.memory_space<vmem>>, vector<128x128xbf16>
    %184 = arith.truncf %182 : vector<16x128xf32> to vector<16x128xbf16>
    %cst_57 = arith.constant dense<0.000000e+00> : vector<16x128xf32>
    %185 = tpu.matmul %184, %183, %cst_57 {dimension_numbers = #tpu.dot_dimension_numbers<[1], [0], [0], [1], [0, 0, 1, 1], [], []>} : vector<16x128xbf16>, vector<128x128xbf16>, vector<16x128xf32> -> vector<16x128xf32>
    %c0_58 = arith.constant 0 : index
    %c0_59 = arith.constant 0 : index
    %186 = vector.load %arg13[%c0_58, %c0_59] : memref<1x128xf32, #tpu.memory_space<vmem>>, vector<1x128xf32>
    %187 = vector.broadcast %186 : vector<1x128xf32> to vector<16x128xf32>
    %188 = arith.addf %185, %187 : vector<16x128xf32>
    %189 = arith.addf %174, %188 : vector<16x128xf32>
    %c0_60 = arith.constant 0 : index
    %c0_61 = arith.constant 0 : index
    %190 = vector.load %arg14[%c0_60, %c0_61] : memref<1x128xf32, #tpu.memory_space<vmem>>, vector<1x128xf32>
    %c0_62 = arith.constant 0 : index
    %c0_63 = arith.constant 0 : index
    %191 = vector.load %arg15[%c0_62, %c0_63] : memref<1x128xf32, #tpu.memory_space<vmem>>, vector<1x128xf32>
    %cst_64 = arith.constant dense<0.000000e+00> : vector<16xf32>
    %192 = vector.multi_reduction <add>, %189, %cst_64 [1] : vector<16x128xf32> to vector<16xf32>
    %193 = vector.shape_cast %192 : vector<16xf32> to vector<16x1xf32>
    %cst_65 = arith.constant 1.280000e+02 : f32
    %194 = vector.broadcast %cst_65 : f32 to vector<16x1xf32>
    %195 = arith.divf %193, %194 : vector<16x1xf32>
    %196 = vector.broadcast %195 : vector<16x1xf32> to vector<16x128xf32>
    %197 = arith.subf %189, %196 : vector<16x128xf32>
    %198 = arith.mulf %197, %197 : vector<16x128xf32>
    %cst_66 = arith.constant dense<0.000000e+00> : vector<16xf32>
    %199 = vector.multi_reduction <add>, %198, %cst_66 [1] : vector<16x128xf32> to vector<16xf32>
    %200 = vector.shape_cast %199 : vector<16xf32> to vector<16x1xf32>
    %cst_67 = arith.constant 1.280000e+02 : f32
    %201 = vector.broadcast %cst_67 : f32 to vector<16x1xf32>
    %202 = arith.divf %200, %201 : vector<16x1xf32>
    %cst_68 = arith.constant 9.99999974E-6 : f32
    %203 = vector.broadcast %cst_68 : f32 to vector<16x1xf32>
    %204 = arith.addf %202, %203 : vector<16x1xf32>
    %205 = math.rsqrt %204 : vector<16x1xf32>
    %206 = vector.broadcast %205 : vector<16x1xf32> to vector<16x128xf32>
    %207 = arith.mulf %197, %206 : vector<16x128xf32>
    %208 = vector.broadcast %190 : vector<1x128xf32> to vector<16x128xf32>
    %209 = arith.mulf %207, %208 : vector<16x128xf32>
    %210 = vector.broadcast %191 : vector<1x128xf32> to vector<16x128xf32>
    %211 = arith.addf %209, %210 : vector<16x128xf32>
    %c0_69 = arith.constant 0 : index
    %c0_70 = arith.constant 0 : index
    %212 = vector.load %arg16[%c0_69, %c0_70] : memref<128x384xbf16, #tpu.memory_space<vmem>>, vector<128x384xbf16>
    %213 = arith.truncf %211 : vector<16x128xf32> to vector<16x128xbf16>
    %cst_71 = arith.constant dense<0.000000e+00> : vector<16x384xf32>
    %214 = tpu.matmul %213, %212, %cst_71 {dimension_numbers = #tpu.dot_dimension_numbers<[1], [0], [0], [1], [0, 0, 1, 1], [], []>} : vector<16x128xbf16>, vector<128x384xbf16>, vector<16x384xf32> -> vector<16x384xf32>
    %c0_72 = arith.constant 0 : index
    %c0_73 = arith.constant 0 : index
    %215 = vector.load %arg17[%c0_72, %c0_73] : memref<1x384xf32, #tpu.memory_space<vmem>>, vector<1x384xf32>
    %216 = vector.broadcast %215 : vector<1x384xf32> to vector<16x384xf32>
    %217 = arith.addf %214, %216 : vector<16x384xf32>
    %218 = vector.extract_strided_slice %217 {offsets = [0, 0], sizes = [8, 128], strides = [1, 1]} : vector<16x384xf32> to vector<8x128xf32>
    %219 = vector.extract_strided_slice %217 {offsets = [8, 0], sizes = [8, 128], strides = [1, 1]} : vector<16x384xf32> to vector<8x128xf32>
    %220 = vector.extract_strided_slice %217 {offsets = [0, 128], sizes = [8, 128], strides = [1, 1]} : vector<16x384xf32> to vector<8x128xf32>
    %221 = vector.extract_strided_slice %217 {offsets = [8, 128], sizes = [8, 128], strides = [1, 1]} : vector<16x384xf32> to vector<8x128xf32>
    %222 = vector.extract_strided_slice %217 {offsets = [0, 256], sizes = [8, 128], strides = [1, 1]} : vector<16x384xf32> to vector<8x128xf32>
    %223 = vector.extract_strided_slice %217 {offsets = [8, 256], sizes = [8, 128], strides = [1, 1]} : vector<16x384xf32> to vector<8x128xf32>
    %224 = vector.extract_strided_slice %218 {offsets = [0, 0], sizes = [8, 64], strides = [1, 1]} : vector<8x128xf32> to vector<8x64xf32>
    %225 = vector.extract_strided_slice %220 {offsets = [0, 0], sizes = [8, 64], strides = [1, 1]} : vector<8x128xf32> to vector<8x64xf32>
    %226 = arith.mulf %224, %225 : vector<8x64xf32>
    %cst_74 = arith.constant dense<0.000000e+00> : vector<8xf32>
    %227 = vector.multi_reduction <add>, %226, %cst_74 [1] : vector<8x64xf32> to vector<8xf32>
    %228 = vector.shape_cast %227 : vector<8xf32> to vector<8x1xf32>
    %cst_75 = arith.constant 1.250000e-01 : f32
    %229 = vector.broadcast %cst_75 : f32 to vector<8x1xf32>
    %230 = arith.mulf %228, %229 : vector<8x1xf32>
    %231 = vector.extract_strided_slice %218 {offsets = [0, 0], sizes = [8, 64], strides = [1, 1]} : vector<8x128xf32> to vector<8x64xf32>
    %232 = vector.extract_strided_slice %221 {offsets = [0, 0], sizes = [8, 64], strides = [1, 1]} : vector<8x128xf32> to vector<8x64xf32>
    %233 = arith.mulf %231, %232 : vector<8x64xf32>
    %cst_76 = arith.constant dense<0.000000e+00> : vector<8xf32>
    %234 = vector.multi_reduction <add>, %233, %cst_76 [1] : vector<8x64xf32> to vector<8xf32>
    %235 = vector.shape_cast %234 : vector<8xf32> to vector<8x1xf32>
    %cst_77 = arith.constant 1.250000e-01 : f32
    %236 = vector.broadcast %cst_77 : f32 to vector<8x1xf32>
    %237 = arith.mulf %235, %236 : vector<8x1xf32>
    %238 = arith.maximumf %230, %237 : vector<8x1xf32>
    %239 = arith.subf %230, %238 : vector<8x1xf32>
    %240 = math.exp %239 : vector<8x1xf32>
    %241 = arith.subf %237, %238 : vector<8x1xf32>
    %242 = math.exp %241 : vector<8x1xf32>
    %243 = arith.addf %240, %242 : vector<8x1xf32>
    %244 = tpu.reciprocal %243 {approx = true} : vector<8x1xf32> -> vector<8x1xf32>
    %245 = arith.mulf %240, %244 : vector<8x1xf32>
    %246 = vector.extract_strided_slice %222 {offsets = [0, 0], sizes = [8, 64], strides = [1, 1]} : vector<8x128xf32> to vector<8x64xf32>
    %247 = vector.broadcast %245 : vector<8x1xf32> to vector<8x64xf32>
    %248 = arith.mulf %247, %246 : vector<8x64xf32>
    %249 = arith.mulf %242, %244 : vector<8x1xf32>
    %250 = vector.extract_strided_slice %223 {offsets = [0, 0], sizes = [8, 64], strides = [1, 1]} : vector<8x128xf32> to vector<8x64xf32>
    %251 = vector.broadcast %249 : vector<8x1xf32> to vector<8x64xf32>
    %252 = arith.mulf %251, %250 : vector<8x64xf32>
    %253 = arith.addf %248, %252 : vector<8x64xf32>
    %c0_78 = arith.constant 0 : index
    %c0_79 = arith.constant 0 : index
    %254 = vector.load %arg39[%c0_78, %c0_79] : memref<16x128xf32, #tpu.memory_space<vmem>>, vector<8x64xf32>
    tpu.vector_store %arg39[%c0_78, %c0_79], %253 {strides = array<i32>} : memref<16x128xf32, #tpu.memory_space<vmem>>, vector<8x64xf32>,
    %255 = vector.extract_strided_slice %219 {offsets = [0, 0], sizes = [8, 64], strides = [1, 1]} : vector<8x128xf32> to vector<8x64xf32>
    %256 = vector.extract_strided_slice %220 {offsets = [0, 0], sizes = [8, 64], strides = [1, 1]} : vector<8x128xf32> to vector<8x64xf32>
    %257 = arith.mulf %255, %256 : vector<8x64xf32>
    %cst_80 = arith.constant dense<0.000000e+00> : vector<8xf32>
    %258 = vector.multi_reduction <add>, %257, %cst_80 [1] : vector<8x64xf32> to vector<8xf32>
    %259 = vector.shape_cast %258 : vector<8xf32> to vector<8x1xf32>
    %cst_81 = arith.constant 1.250000e-01 : f32
    %260 = vector.broadcast %cst_81 : f32 to vector<8x1xf32>
    %261 = arith.mulf %259, %260 : vector<8x1xf32>
    %262 = vector.extract_strided_slice %219 {offsets = [0, 0], sizes = [8, 64], strides = [1, 1]} : vector<8x128xf32> to vector<8x64xf32>
    %263 = vector.extract_strided_slice %221 {offsets = [0, 0], sizes = [8, 64], strides = [1, 1]} : vector<8x128xf32> to vector<8x64xf32>
    %264 = arith.mulf %262, %263 : vector<8x64xf32>
    %cst_82 = arith.constant dense<0.000000e+00> : vector<8xf32>
    %265 = vector.multi_reduction <add>, %264, %cst_82 [1] : vector<8x64xf32> to vector<8xf32>
    %266 = vector.shape_cast %265 : vector<8xf32> to vector<8x1xf32>
    %cst_83 = arith.constant 1.250000e-01 : f32
    %267 = vector.broadcast %cst_83 : f32 to vector<8x1xf32>
    %268 = arith.mulf %266, %267 : vector<8x1xf32>
    %269 = arith.maximumf %261, %268 : vector<8x1xf32>
    %270 = arith.subf %261, %269 : vector<8x1xf32>
    %271 = math.exp %270 : vector<8x1xf32>
    %272 = arith.subf %268, %269 : vector<8x1xf32>
    %273 = math.exp %272 : vector<8x1xf32>
    %274 = arith.addf %271, %273 : vector<8x1xf32>
    %275 = tpu.reciprocal %274 {approx = true} : vector<8x1xf32> -> vector<8x1xf32>
    %276 = arith.mulf %271, %275 : vector<8x1xf32>
    %277 = vector.extract_strided_slice %222 {offsets = [0, 0], sizes = [8, 64], strides = [1, 1]} : vector<8x128xf32> to vector<8x64xf32>
    %278 = vector.broadcast %276 : vector<8x1xf32> to vector<8x64xf32>
    %279 = arith.mulf %278, %277 : vector<8x64xf32>
    %280 = arith.mulf %273, %275 : vector<8x1xf32>
    %281 = vector.extract_strided_slice %223 {offsets = [0, 0], sizes = [8, 64], strides = [1, 1]} : vector<8x128xf32> to vector<8x64xf32>
    %282 = vector.broadcast %280 : vector<8x1xf32> to vector<8x64xf32>
    %283 = arith.mulf %282, %281 : vector<8x64xf32>
    %284 = arith.addf %279, %283 : vector<8x64xf32>
    %c8_84 = arith.constant 8 : index
    %c0_85 = arith.constant 0 : index
    %285 = vector.load %arg39[%c8_84, %c0_85] : memref<16x128xf32, #tpu.memory_space<vmem>>, vector<8x64xf32>
    tpu.vector_store %arg39[%c8_84, %c0_85], %284 {strides = array<i32>} : memref<16x128xf32, #tpu.memory_space<vmem>>, vector<8x64xf32>,
    %286 = vector.extract_strided_slice %218 {offsets = [0, 64], sizes = [8, 64], strides = [1, 1]} : vector<8x128xf32> to vector<8x64xf32>
    %287 = vector.extract_strided_slice %220 {offsets = [0, 64], sizes = [8, 64], strides = [1, 1]} : vector<8x128xf32> to vector<8x64xf32>
    %288 = arith.mulf %286, %287 : vector<8x64xf32>
    %cst_86 = arith.constant dense<0.000000e+00> : vector<8xf32>
    %289 = vector.multi_reduction <add>, %288, %cst_86 [1] : vector<8x64xf32> to vector<8xf32>
    %290 = vector.shape_cast %289 : vector<8xf32> to vector<8x1xf32>
    %cst_87 = arith.constant 1.250000e-01 : f32
    %291 = vector.broadcast %cst_87 : f32 to vector<8x1xf32>
    %292 = arith.mulf %290, %291 : vector<8x1xf32>
    %293 = vector.extract_strided_slice %218 {offsets = [0, 64], sizes = [8, 64], strides = [1, 1]} : vector<8x128xf32> to vector<8x64xf32>
    %294 = vector.extract_strided_slice %221 {offsets = [0, 64], sizes = [8, 64], strides = [1, 1]} : vector<8x128xf32> to vector<8x64xf32>
    %295 = arith.mulf %293, %294 : vector<8x64xf32>
    %cst_88 = arith.constant dense<0.000000e+00> : vector<8xf32>
    %296 = vector.multi_reduction <add>, %295, %cst_88 [1] : vector<8x64xf32> to vector<8xf32>
    %297 = vector.shape_cast %296 : vector<8xf32> to vector<8x1xf32>
    %cst_89 = arith.constant 1.250000e-01 : f32
    %298 = vector.broadcast %cst_89 : f32 to vector<8x1xf32>
    %299 = arith.mulf %297, %298 : vector<8x1xf32>
    %300 = arith.maximumf %292, %299 : vector<8x1xf32>
    %301 = arith.subf %292, %300 : vector<8x1xf32>
    %302 = math.exp %301 : vector<8x1xf32>
    %303 = arith.subf %299, %300 : vector<8x1xf32>
    %304 = math.exp %303 : vector<8x1xf32>
    %305 = arith.addf %302, %304 : vector<8x1xf32>
    %306 = tpu.reciprocal %305 {approx = true} : vector<8x1xf32> -> vector<8x1xf32>
    %307 = arith.mulf %302, %306 : vector<8x1xf32>
    %308 = vector.extract_strided_slice %222 {offsets = [0, 64], sizes = [8, 64], strides = [1, 1]} : vector<8x128xf32> to vector<8x64xf32>
    %309 = vector.broadcast %307 : vector<8x1xf32> to vector<8x64xf32>
    %310 = arith.mulf %309, %308 : vector<8x64xf32>
    %311 = arith.mulf %304, %306 : vector<8x1xf32>
    %312 = vector.extract_strided_slice %223 {offsets = [0, 64], sizes = [8, 64], strides = [1, 1]} : vector<8x128xf32> to vector<8x64xf32>
    %313 = vector.broadcast %311 : vector<8x1xf32> to vector<8x64xf32>
    %314 = arith.mulf %313, %312 : vector<8x64xf32>
    %315 = arith.addf %310, %314 : vector<8x64xf32>
    %c0_90 = arith.constant 0 : index
    %c64_91 = arith.constant 64 : index
    %316 = vector.load %arg39[%c0_90, %c64_91] : memref<16x128xf32, #tpu.memory_space<vmem>>, vector<8x64xf32>
    tpu.vector_store %arg39[%c0_90, %c64_91], %315 {strides = array<i32>} : memref<16x128xf32, #tpu.memory_space<vmem>>, vector<8x64xf32>,
    %317 = vector.extract_strided_slice %219 {offsets = [0, 64], sizes = [8, 64], strides = [1, 1]} : vector<8x128xf32> to vector<8x64xf32>
    %318 = vector.extract_strided_slice %220 {offsets = [0, 64], sizes = [8, 64], strides = [1, 1]} : vector<8x128xf32> to vector<8x64xf32>
    %319 = arith.mulf %317, %318 : vector<8x64xf32>
    %cst_92 = arith.constant dense<0.000000e+00> : vector<8xf32>
    %320 = vector.multi_reduction <add>, %319, %cst_92 [1] : vector<8x64xf32> to vector<8xf32>
    %321 = vector.shape_cast %320 : vector<8xf32> to vector<8x1xf32>
    %cst_93 = arith.constant 1.250000e-01 : f32
    %322 = vector.broadcast %cst_93 : f32 to vector<8x1xf32>
    %323 = arith.mulf %321, %322 : vector<8x1xf32>
    %324 = vector.extract_strided_slice %219 {offsets = [0, 64], sizes = [8, 64], strides = [1, 1]} : vector<8x128xf32> to vector<8x64xf32>
    %325 = vector.extract_strided_slice %221 {offsets = [0, 64], sizes = [8, 64], strides = [1, 1]} : vector<8x128xf32> to vector<8x64xf32>
    %326 = arith.mulf %324, %325 : vector<8x64xf32>
    %cst_94 = arith.constant dense<0.000000e+00> : vector<8xf32>
    %327 = vector.multi_reduction <add>, %326, %cst_94 [1] : vector<8x64xf32> to vector<8xf32>
    %328 = vector.shape_cast %327 : vector<8xf32> to vector<8x1xf32>
    %cst_95 = arith.constant 1.250000e-01 : f32
    %329 = vector.broadcast %cst_95 : f32 to vector<8x1xf32>
    %330 = arith.mulf %328, %329 : vector<8x1xf32>
    %331 = arith.maximumf %323, %330 : vector<8x1xf32>
    %332 = arith.subf %323, %331 : vector<8x1xf32>
    %333 = math.exp %332 : vector<8x1xf32>
    %334 = arith.subf %330, %331 : vector<8x1xf32>
    %335 = math.exp %334 : vector<8x1xf32>
    %336 = arith.addf %333, %335 : vector<8x1xf32>
    %337 = tpu.reciprocal %336 {approx = true} : vector<8x1xf32> -> vector<8x1xf32>
    %338 = arith.mulf %333, %337 : vector<8x1xf32>
    %339 = vector.extract_strided_slice %222 {offsets = [0, 64], sizes = [8, 64], strides = [1, 1]} : vector<8x128xf32> to vector<8x64xf32>
    %340 = vector.broadcast %338 : vector<8x1xf32> to vector<8x64xf32>
    %341 = arith.mulf %340, %339 : vector<8x64xf32>
    %342 = arith.mulf %335, %337 : vector<8x1xf32>
    %343 = vector.extract_strided_slice %223 {offsets = [0, 64], sizes = [8, 64], strides = [1, 1]} : vector<8x128xf32> to vector<8x64xf32>
    %344 = vector.broadcast %342 : vector<8x1xf32> to vector<8x64xf32>
    %345 = arith.mulf %344, %343 : vector<8x64xf32>
    %346 = arith.addf %341, %345 : vector<8x64xf32>
    %c8_96 = arith.constant 8 : index
    %c64_97 = arith.constant 64 : index
    %347 = vector.load %arg39[%c8_96, %c64_97] : memref<16x128xf32, #tpu.memory_space<vmem>>, vector<8x64xf32>
    tpu.vector_store %arg39[%c8_96, %c64_97], %346 {strides = array<i32>} : memref<16x128xf32, #tpu.memory_space<vmem>>, vector<8x64xf32>,
    %c0_98 = arith.constant 0 : index
    %c0_99 = arith.constant 0 : index
    %348 = vector.load %arg39[%c0_98, %c0_99] : memref<16x128xf32, #tpu.memory_space<vmem>>, vector<16x128xf32>
    %c0_100 = arith.constant 0 : index
    %c0_101 = arith.constant 0 : index
    %349 = vector.load %arg18[%c0_100, %c0_101] : memref<128x128xbf16, #tpu.memory_space<vmem>>, vector<128x128xbf16>
    %350 = arith.truncf %348 : vector<16x128xf32> to vector<16x128xbf16>
    %cst_102 = arith.constant dense<0.000000e+00> : vector<16x128xf32>
    %351 = tpu.matmul %350, %349, %cst_102 {dimension_numbers = #tpu.dot_dimension_numbers<[1], [0], [0], [1], [0, 0, 1, 1], [], []>} : vector<16x128xbf16>, vector<128x128xbf16>, vector<16x128xf32> -> vector<16x128xf32>
    %c0_103 = arith.constant 0 : index
    %c0_104 = arith.constant 0 : index
    %352 = vector.load %arg19[%c0_103, %c0_104] : memref<1x128xf32, #tpu.memory_space<vmem>>, vector<1x128xf32>
    %353 = vector.broadcast %352 : vector<1x128xf32> to vector<16x128xf32>
    %354 = arith.addf %351, %353 : vector<16x128xf32>
    %355 = arith.addf %211, %354 : vector<16x128xf32>
    %c0_105 = arith.constant 0 : index
    %c0_106 = arith.constant 0 : index
    %356 = vector.load %arg20[%c0_105, %c0_106] : memref<1x128xf32, #tpu.memory_space<vmem>>, vector<1x128xf32>
    %c0_107 = arith.constant 0 : index
    %c0_108 = arith.constant 0 : index
    %357 = vector.load %arg21[%c0_107, %c0_108] : memref<1x128xf32, #tpu.memory_space<vmem>>, vector<1x128xf32>
    %cst_109 = arith.constant dense<0.000000e+00> : vector<16xf32>
    %358 = vector.multi_reduction <add>, %355, %cst_109 [1] : vector<16x128xf32> to vector<16xf32>
    %359 = vector.shape_cast %358 : vector<16xf32> to vector<16x1xf32>
    %cst_110 = arith.constant 1.280000e+02 : f32
    %360 = vector.broadcast %cst_110 : f32 to vector<16x1xf32>
    %361 = arith.divf %359, %360 : vector<16x1xf32>
    %362 = vector.broadcast %361 : vector<16x1xf32> to vector<16x128xf32>
    %363 = arith.subf %355, %362 : vector<16x128xf32>
    %364 = arith.mulf %363, %363 : vector<16x128xf32>
    %cst_111 = arith.constant dense<0.000000e+00> : vector<16xf32>
    %365 = vector.multi_reduction <add>, %364, %cst_111 [1] : vector<16x128xf32> to vector<16xf32>
    %366 = vector.shape_cast %365 : vector<16xf32> to vector<16x1xf32>
    %cst_112 = arith.constant 1.280000e+02 : f32
    %367 = vector.broadcast %cst_112 : f32 to vector<16x1xf32>
    %368 = arith.divf %366, %367 : vector<16x1xf32>
    %cst_113 = arith.constant 9.99999974E-6 : f32
    %369 = vector.broadcast %cst_113 : f32 to vector<16x1xf32>
    %370 = arith.addf %368, %369 : vector<16x1xf32>
    %371 = math.rsqrt %370 : vector<16x1xf32>
    %372 = vector.broadcast %371 : vector<16x1xf32> to vector<16x128xf32>
    %373 = arith.mulf %363, %372 : vector<16x128xf32>
    %374 = vector.broadcast %356 : vector<1x128xf32> to vector<16x128xf32>
    %375 = arith.mulf %373, %374 : vector<16x128xf32>
    %376 = vector.broadcast %357 : vector<1x128xf32> to vector<16x128xf32>
    %377 = arith.addf %375, %376 : vector<16x128xf32>
    %c0_114 = arith.constant 0 : index
    %c0_115 = arith.constant 0 : index
    %378 = vector.load %arg22[%c0_114, %c0_115] : memref<128x128xbf16, #tpu.memory_space<vmem>>, vector<128x128xbf16>
    %379 = arith.truncf %377 : vector<16x128xf32> to vector<16x128xbf16>
    %cst_116 = arith.constant dense<0.000000e+00> : vector<16x128xf32>
    %380 = tpu.matmul %379, %378, %cst_116 {dimension_numbers = #tpu.dot_dimension_numbers<[1], [0], [0], [1], [0, 0, 1, 1], [], []>} : vector<16x128xbf16>, vector<128x128xbf16>, vector<16x128xf32> -> vector<16x128xf32>
    %c0_117 = arith.constant 0 : index
    %c0_118 = arith.constant 0 : index
    %381 = vector.load %arg23[%c0_117, %c0_118] : memref<1x128xf32, #tpu.memory_space<vmem>>, vector<1x128xf32>
    %382 = vector.broadcast %381 : vector<1x128xf32> to vector<16x128xf32>
    %383 = arith.addf %380, %382 : vector<16x128xf32>
    %cst_119 = arith.constant 0.000000e+00 : f32
    %384 = vector.broadcast %cst_119 : f32 to vector<16x128xf32>
    %385 = arith.maximumf %383, %384 : vector<16x128xf32>
    %c0_120 = arith.constant 0 : index
    %c0_121 = arith.constant 0 : index
    %386 = vector.load %arg24[%c0_120, %c0_121] : memref<128x128xbf16, #tpu.memory_space<vmem>>, vector<128x128xbf16>
    %387 = arith.truncf %385 : vector<16x128xf32> to vector<16x128xbf16>
    %cst_122 = arith.constant dense<0.000000e+00> : vector<16x128xf32>
    %388 = tpu.matmul %387, %386, %cst_122 {dimension_numbers = #tpu.dot_dimension_numbers<[1], [0], [0], [1], [0, 0, 1, 1], [], []>} : vector<16x128xbf16>, vector<128x128xbf16>, vector<16x128xf32> -> vector<16x128xf32>
    %c0_123 = arith.constant 0 : index
    %c0_124 = arith.constant 0 : index
    %389 = vector.load %arg25[%c0_123, %c0_124] : memref<1x128xf32, #tpu.memory_space<vmem>>, vector<1x128xf32>
    %390 = vector.broadcast %389 : vector<1x128xf32> to vector<16x128xf32>
    %391 = arith.addf %388, %390 : vector<16x128xf32>
    %392 = arith.addf %377, %391 : vector<16x128xf32>
    %c0_125 = arith.constant 0 : index
    %c0_126 = arith.constant 0 : index
    %393 = vector.load %arg26[%c0_125, %c0_126] : memref<1x128xf32, #tpu.memory_space<vmem>>, vector<1x128xf32>
    %c0_127 = arith.constant 0 : index
    %c0_128 = arith.constant 0 : index
    %394 = vector.load %arg27[%c0_127, %c0_128] : memref<1x128xf32, #tpu.memory_space<vmem>>, vector<1x128xf32>
    %cst_129 = arith.constant dense<0.000000e+00> : vector<16xf32>
    %395 = vector.multi_reduction <add>, %392, %cst_129 [1] : vector<16x128xf32> to vector<16xf32>
    %396 = vector.shape_cast %395 : vector<16xf32> to vector<16x1xf32>
    %cst_130 = arith.constant 1.280000e+02 : f32
    %397 = vector.broadcast %cst_130 : f32 to vector<16x1xf32>
    %398 = arith.divf %396, %397 : vector<16x1xf32>
    %399 = vector.broadcast %398 : vector<16x1xf32> to vector<16x128xf32>
    %400 = arith.subf %392, %399 : vector<16x128xf32>
    %401 = arith.mulf %400, %400 : vector<16x128xf32>
    %cst_131 = arith.constant dense<0.000000e+00> : vector<16xf32>
    %402 = vector.multi_reduction <add>, %401, %cst_131 [1] : vector<16x128xf32> to vector<16xf32>
    %403 = vector.shape_cast %402 : vector<16xf32> to vector<16x1xf32>
    %cst_132 = arith.constant 1.280000e+02 : f32
    %404 = vector.broadcast %cst_132 : f32 to vector<16x1xf32>
    %405 = arith.divf %403, %404 : vector<16x1xf32>
    %cst_133 = arith.constant 9.99999974E-6 : f32
    %406 = vector.broadcast %cst_133 : f32 to vector<16x1xf32>
    %407 = arith.addf %405, %406 : vector<16x1xf32>
    %408 = math.rsqrt %407 : vector<16x1xf32>
    %409 = vector.broadcast %408 : vector<16x1xf32> to vector<16x128xf32>
    %410 = arith.mulf %400, %409 : vector<16x128xf32>
    %411 = vector.broadcast %393 : vector<1x128xf32> to vector<16x128xf32>
    %412 = arith.mulf %410, %411 : vector<16x128xf32>
    %413 = vector.broadcast %394 : vector<1x128xf32> to vector<16x128xf32>
    %414 = arith.addf %412, %413 : vector<16x128xf32>
    %c0_134 = arith.constant 0 : index
    %c0_135 = arith.constant 0 : index
    %415 = vector.load %arg28[%c0_134, %c0_135] : memref<128x128xbf16, #tpu.memory_space<vmem>>, vector<128x128xbf16>
    %416 = arith.truncf %414 : vector<16x128xf32> to vector<16x128xbf16>
    %cst_136 = arith.constant dense<0.000000e+00> : vector<16x128xf32>
    %417 = tpu.matmul %416, %415, %cst_136 {dimension_numbers = #tpu.dot_dimension_numbers<[1], [0], [0], [1], [0, 0, 1, 1], [], []>} : vector<16x128xbf16>, vector<128x128xbf16>, vector<16x128xf32> -> vector<16x128xf32>
    %c0_137 = arith.constant 0 : index
    %c0_138 = arith.constant 0 : index
    %418 = vector.load %arg29[%c0_137, %c0_138] : memref<1x128xf32, #tpu.memory_space<vmem>>, vector<1x128xf32>
    %419 = vector.broadcast %418 : vector<1x128xf32> to vector<16x128xf32>
    %420 = arith.addf %417, %419 : vector<16x128xf32>
    %cst_139 = arith.constant 0.000000e+00 : f32
    %421 = vector.broadcast %cst_139 : f32 to vector<16x128xf32>
    %422 = arith.maximumf %420, %421 : vector<16x128xf32>
    %c0_140 = arith.constant 0 : index
    %c0_141 = arith.constant 0 : index
    %423 = vector.load %arg30[%c0_140, %c0_141] : memref<128x32xbf16, #tpu.memory_space<vmem>>, vector<128x32xbf16>
    %424 = arith.truncf %422 : vector<16x128xf32> to vector<16x128xbf16>
    %cst_142 = arith.constant dense<0.000000e+00> : vector<16x32xf32>
    %425 = tpu.matmul %424, %423, %cst_142 {dimension_numbers = #tpu.dot_dimension_numbers<[1], [0], [0], [1], [0, 0, 1, 1], [], []>} : vector<16x128xbf16>, vector<128x32xbf16>, vector<16x32xf32> -> vector<16x32xf32>
    %c0_143 = arith.constant 0 : index
    %c0_144 = arith.constant 0 : index
    %426 = vector.load %arg31[%c0_143, %c0_144] : memref<1x32xf32, #tpu.memory_space<vmem>>, vector<1x32xf32>
    %427 = vector.broadcast %426 : vector<1x32xf32> to vector<16x32xf32>
    %428 = arith.addf %425, %427 : vector<16x32xf32>
    %429 = vector.extract_strided_slice %428 {offsets = [0, 0], sizes = [16, 16], strides = [1, 1]} : vector<16x32xf32> to vector<16x16xf32>
    %cst_145 = arith.constant dense<0xFF800000> : vector<16xf32>
    %430 = vector.multi_reduction <maximumf>, %429, %cst_145 [1] : vector<16x16xf32> to vector<16xf32>
    %431 = vector.shape_cast %430 : vector<16xf32> to vector<16x1xf32>
    %432 = vector.broadcast %431 : vector<16x1xf32> to vector<16x16xf32>
    %433 = arith.subf %429, %432 : vector<16x16xf32>
    %434 = math.exp %433 : vector<16x16xf32>
    %cst_146 = arith.constant dense<0.000000e+00> : vector<16xf32>
    %435 = vector.multi_reduction <add>, %434, %cst_146 [1] : vector<16x16xf32> to vector<16xf32>
    %436 = vector.shape_cast %435 : vector<16xf32> to vector<16x1xf32>
    %437 = vector.broadcast %436 : vector<16x1xf32> to vector<16x16xf32>
    %438 = arith.divf %434, %437 : vector<16x16xf32>
    %c0_147 = arith.constant 0 : index
    %c0_148 = arith.constant 0 : index
    %439 = vector.load %arg38[%c0_147, %c0_148] : memref<16x16xf32, #tpu.memory_space<vmem>>, vector<16x16xf32>
    tpu.vector_store %arg38[%c0_147, %c0_148], %438 {strides = array<i32>} : memref<16x16xf32, #tpu.memory_space<vmem>>, vector<16x16xf32>,
    %440 = vector.extract_strided_slice %428 {offsets = [0, 16], sizes = [16, 16], strides = [1, 1]} : vector<16x32xf32> to vector<16x16xf32>
    %cst_149 = arith.constant dense<0xFF800000> : vector<16xf32>
    %441 = vector.multi_reduction <maximumf>, %440, %cst_149 [1] : vector<16x16xf32> to vector<16xf32>
    %442 = vector.shape_cast %441 : vector<16xf32> to vector<16x1xf32>
    %443 = vector.broadcast %442 : vector<16x1xf32> to vector<16x16xf32>
    %444 = arith.subf %440, %443 : vector<16x16xf32>
    %445 = math.exp %444 : vector<16x16xf32>
    %cst_150 = arith.constant dense<0.000000e+00> : vector<16xf32>
    %446 = vector.multi_reduction <add>, %445, %cst_150 [1] : vector<16x16xf32> to vector<16xf32>
    %447 = vector.shape_cast %446 : vector<16xf32> to vector<16x1xf32>
    %448 = vector.broadcast %447 : vector<16x1xf32> to vector<16x16xf32>
    %449 = arith.divf %445, %448 : vector<16x16xf32>
    %c0_151 = arith.constant 0 : index
    %c0_152 = arith.constant 0 : index
    %450 = vector.load %arg36[%c0_151, %c0_152] : memref<16x16xf32, #tpu.memory_space<vmem>>, vector<16x16xf32>
    tpu.vector_store %arg36[%c0_151, %c0_152], %449 {strides = array<i32>} : memref<16x16xf32, #tpu.memory_space<vmem>>, vector<16x16xf32>,
    %c0_153 = arith.constant 0 : index
    %c0_154 = arith.constant 0 : index
    %451 = vector.load %arg32[%c0_153, %c0_154] : memref<128x256xbf16, #tpu.memory_space<vmem>>, vector<128x256xbf16>
    %452 = arith.truncf %414 : vector<16x128xf32> to vector<16x128xbf16>
    %cst_155 = arith.constant dense<0.000000e+00> : vector<16x256xf32>
    %453 = tpu.matmul %452, %451, %cst_155 {dimension_numbers = #tpu.dot_dimension_numbers<[1], [0], [0], [1], [0, 0, 1, 1], [], []>} : vector<16x128xbf16>, vector<128x256xbf16>, vector<16x256xf32> -> vector<16x256xf32>
    %c0_156 = arith.constant 0 : index
    %c0_157 = arith.constant 0 : index
    %454 = vector.load %arg33[%c0_156, %c0_157] : memref<1x256xf32, #tpu.memory_space<vmem>>, vector<1x256xf32>
    %455 = vector.broadcast %454 : vector<1x256xf32> to vector<16x256xf32>
    %456 = arith.addf %453, %455 : vector<16x256xf32>
    %457 = vector.extract_strided_slice %456 {offsets = [0, 0], sizes = [16, 128], strides = [1, 1]} : vector<16x256xf32> to vector<16x128xf32>
    %458 = vector.extract_strided_slice %456 {offsets = [0, 128], sizes = [16, 128], strides = [1, 1]} : vector<16x256xf32> to vector<16x128xf32>
    %c0_158 = arith.constant 0 : index
    %c0_159 = arith.constant 0 : index
    %459 = vector.load %arg34[%c0_158, %c0_159] : memref<128x128xbf16, #tpu.memory_space<vmem>>, vector<128x128xbf16>
    %460 = arith.truncf %458 : vector<16x128xf32> to vector<16x128xbf16>
    %cst_160 = arith.constant dense<0.000000e+00> : vector<16x128xf32>
    %461 = tpu.matmul %460, %459, %cst_160 {dimension_numbers = #tpu.dot_dimension_numbers<[1], [0], [0], [1], [0, 0, 1, 1], [], []>} : vector<16x128xbf16>, vector<128x128xbf16>, vector<16x128xf32> -> vector<16x128xf32>
    %c0_161 = arith.constant 0 : index
    %c0_162 = arith.constant 0 : index
    %462 = vector.load %arg35[%c0_161, %c0_162] : memref<1x128xf32, #tpu.memory_space<vmem>>, vector<1x128xf32>
    %463 = vector.broadcast %462 : vector<1x128xf32> to vector<16x128xf32>
    %464 = arith.addf %461, %463 : vector<16x128xf32>
    %465 = arith.truncf %457 : vector<16x128xf32> to vector<16x128xbf16>
    %466 = arith.truncf %464 : vector<16x128xf32> to vector<16x128xbf16>
    %467 = vector.extract_strided_slice %465 {offsets = [0, 0], sizes = [8, 128], strides = [1, 1]} : vector<16x128xbf16> to vector<8x128xbf16>
    %468 = vector.extract_strided_slice %466 {offsets = [0, 0], sizes = [8, 128], strides = [1, 1]} : vector<16x128xbf16> to vector<8x128xbf16>
    %cst_163 = arith.constant dense<0.000000e+00> : vector<8x8xf32>
    %469 = tpu.matmul %467, %468, %cst_163 {dimension_numbers = #tpu.dot_dimension_numbers<[1], [1], [0], [0], [0, 0, 1, 0], [], []>} : vector<8x128xbf16>, vector<8x128xbf16>, vector<8x8xf32> -> vector<8x8xf32>
    %cst_164 = arith.constant dense<0xFF800000> : vector<8xf32>
    %470 = vector.multi_reduction <maximumf>, %469, %cst_164 [1] : vector<8x8xf32> to vector<8xf32>
    %471 = vector.shape_cast %470 : vector<8xf32> to vector<8x1xf32>
    %472 = vector.broadcast %471 : vector<8x1xf32> to vector<8x8xf32>
    %473 = arith.subf %469, %472 : vector<8x8xf32>
    %474 = math.exp %473 : vector<8x8xf32>
    %cst_165 = arith.constant dense<0.000000e+00> : vector<8xf32>
    %475 = vector.multi_reduction <add>, %474, %cst_165 [1] : vector<8x8xf32> to vector<8xf32>
    %476 = vector.shape_cast %475 : vector<8xf32> to vector<8x1xf32>
    %477 = vector.broadcast %476 : vector<8x1xf32> to vector<8x8xf32>
    %478 = arith.divf %474, %477 : vector<8x8xf32>
    %c0_166 = arith.constant 0 : index
    %c0_167 = arith.constant 0 : index
    %c0_168 = arith.constant 0 : index
    %479 = vector.load %arg37[%c0_166, %c0_167, %c0_168] : memref<2x8x8xf32, #tpu.memory_space<vmem>>, vector<1x8x8xf32>
    %480 = vector.shape_cast %479 : vector<1x8x8xf32> to vector<8x8xf32>
    %481 = vector.shape_cast %478 : vector<8x8xf32> to vector<1x8x8xf32>
    tpu.vector_store %arg37[%c0_166, %c0_167, %c0_168], %481 {strides = array<i32>} : memref<2x8x8xf32, #tpu.memory_space<vmem>>, vector<1x8x8xf32>,
    %482 = vector.extract_strided_slice %465 {offsets = [8, 0], sizes = [8, 128], strides = [1, 1]} : vector<16x128xbf16> to vector<8x128xbf16>
    %483 = vector.extract_strided_slice %466 {offsets = [8, 0], sizes = [8, 128], strides = [1, 1]} : vector<16x128xbf16> to vector<8x128xbf16>
    %cst_169 = arith.constant dense<0.000000e+00> : vector<8x8xf32>
    %484 = tpu.matmul %482, %483, %cst_169 {dimension_numbers = #tpu.dot_dimension_numbers<[1], [1], [0], [0], [0, 0, 1, 0], [], []>} : vector<8x128xbf16>, vector<8x128xbf16>, vector<8x8xf32> -> vector<8x8xf32>
    %cst_170 = arith.constant dense<0xFF800000> : vector<8xf32>
    %485 = vector.multi_reduction <maximumf>, %484, %cst_170 [1] : vector<8x8xf32> to vector<8xf32>
    %486 = vector.shape_cast %485 : vector<8xf32> to vector<8x1xf32>
    %487 = vector.broadcast %486 : vector<8x1xf32> to vector<8x8xf32>
    %488 = arith.subf %484, %487 : vector<8x8xf32>
    %489 = math.exp %488 : vector<8x8xf32>
    %cst_171 = arith.constant dense<0.000000e+00> : vector<8xf32>
    %490 = vector.multi_reduction <add>, %489, %cst_171 [1] : vector<8x8xf32> to vector<8xf32>
    %491 = vector.shape_cast %490 : vector<8xf32> to vector<8x1xf32>
    %492 = vector.broadcast %491 : vector<8x1xf32> to vector<8x8xf32>
    %493 = arith.divf %489, %492 : vector<8x8xf32>
    %c1 = arith.constant 1 : index
    %c0_172 = arith.constant 0 : index
    %c0_173 = arith.constant 0 : index
    %494 = vector.load %arg37[%c1, %c0_172, %c0_173] : memref<2x8x8xf32, #tpu.memory_space<vmem>>, vector<1x8x8xf32>
    %495 = vector.shape_cast %494 : vector<1x8x8xf32> to vector<8x8xf32>
    %496 = vector.shape_cast %493 : vector<8x8xf32> to vector<1x8x8xf32>
    tpu.vector_store %arg37[%c1, %c0_172, %c0_173], %496 {strides = array<i32>} : memref<2x8x8xf32, #tpu.memory_space<vmem>>, vector<1x8x8xf32>,
    return
  }
  func.func @transform_0(%arg0: i32) -> (i32, i32) {
    %c0_i32 = arith.constant 0 : i32
    %c0_i32_0 = arith.constant 0 : i32
    %c0_i32_1 = arith.constant 0 : i32
    return %c0_i32, %c0_i32_0 : i32, i32
  }
  func.func @transform_1(%arg0: i32) -> (i32, i32) {
    %c0_i32 = arith.constant 0 : i32
    %c0_i32_0 = arith.constant 0 : i32
    %c0_i32_1 = arith.constant 0 : i32
    return %c0_i32, %c0_i32_0 : i32, i32
  }
  func.func @transform_2(%arg0: i32) -> (i32, i32) {
    %c0_i32 = arith.constant 0 : i32
    %c0_i32_0 = arith.constant 0 : i32
    %c0_i32_1 = arith.constant 0 : i32
    return %c0_i32, %c0_i32_0 : i32, i32
  }
  func.func @transform_3(%arg0: i32) -> (i32, i32) {
    %c0_i32 = arith.constant 0 : i32
    %c0_i32_0 = arith.constant 0 : i32
    %c0_i32_1 = arith.constant 0 : i32
    return %c0_i32, %c0_i32_0 : i32, i32
  }
  func.func @transform_4(%arg0: i32) -> (i32, i32) {
    %c0_i32 = arith.constant 0 : i32
    %c0_i32_0 = arith.constant 0 : i32
    %c0_i32_1 = arith.constant 0 : i32
    return %c0_i32, %c0_i32_0 : i32, i32
  }
  func.func @transform_5(%arg0: i32) -> (i32, i32) {
    %c0_i32 = arith.constant 0 : i32
    %c0_i32_0 = arith.constant 0 : i32
    %c0_i32_1 = arith.constant 0 : i32
    return %c0_i32, %c0_i32_0 : i32, i32
  }
  func.func @transform_6(%arg0: i32) -> (i32, i32) {
    %c0_i32 = arith.constant 0 : i32
    %c0_i32_0 = arith.constant 0 : i32
    %c0_i32_1 = arith.constant 0 : i32
    return %c0_i32, %c0_i32_0 : i32, i32
  }
  func.func @transform_7(%arg0: i32) -> (i32, i32) {
    %c0_i32 = arith.constant 0 : i32
    %c0_i32_0 = arith.constant 0 : i32
    %c0_i32_1 = arith.constant 0 : i32
    return %c0_i32, %c0_i32_0 : i32, i32
  }
  func.func @transform_8(%arg0: i32) -> (i32, i32) {
    %c0_i32 = arith.constant 0 : i32
    %c0_i32_0 = arith.constant 0 : i32
    %c0_i32_1 = arith.constant 0 : i32
    return %c0_i32, %c0_i32_0 : i32, i32
  }
  func.func @transform_9(%arg0: i32) -> (i32, i32) {
    %c0_i32 = arith.constant 0 : i32
    %c0_i32_0 = arith.constant 0 : i32
    %c0_i32_1 = arith.constant 0 : i32
    return %c0_i32, %c0_i32_0 : i32, i32
  }
  func.func @transform_10(%arg0: i32) -> (i32, i32) {
    %c0_i32 = arith.constant 0 : i32
    %c0_i32_0 = arith.constant 0 : i32
    %c0_i32_1 = arith.constant 0 : i32
    return %c0_i32, %c0_i32_0 : i32, i32
  }
  func.func @transform_11(%arg0: i32) -> (i32, i32) {
    %c0_i32 = arith.constant 0 : i32
    %c0_i32_0 = arith.constant 0 : i32
    %c0_i32_1 = arith.constant 0 : i32
    return %c0_i32, %c0_i32_0 : i32, i32
  }
  func.func @transform_12(%arg0: i32) -> (i32, i32) {
    %c0_i32 = arith.constant 0 : i32
    %c0_i32_0 = arith.constant 0 : i32
    %c0_i32_1 = arith.constant 0 : i32
    return %c0_i32, %c0_i32_0 : i32, i32
  }
  func.func @transform_13(%arg0: i32) -> (i32, i32) {
    %c0_i32 = arith.constant 0 : i32
    %c0_i32_0 = arith.constant 0 : i32
    %c0_i32_1 = arith.constant 0 : i32
    return %c0_i32, %c0_i32_0 : i32, i32
  }
  func.func @transform_14(%arg0: i32) -> (i32, i32) {
    %c0_i32 = arith.constant 0 : i32
    %c0_i32_0 = arith.constant 0 : i32
    %c0_i32_1 = arith.constant 0 : i32
    return %c0_i32, %c0_i32_0 : i32, i32
  }
  func.func @transform_15(%arg0: i32) -> (i32, i32) {
    %c0_i32 = arith.constant 0 : i32
    %c0_i32_0 = arith.constant 0 : i32
    %c0_i32_1 = arith.constant 0 : i32
    return %c0_i32, %c0_i32_0 : i32, i32
  }
  func.func @transform_16(%arg0: i32) -> (i32, i32) {
    %c0_i32 = arith.constant 0 : i32
    %c0_i32_0 = arith.constant 0 : i32
    %c0_i32_1 = arith.constant 0 : i32
    return %c0_i32, %c0_i32_0 : i32, i32
  }
  func.func @transform_17(%arg0: i32) -> (i32, i32) {
    %c0_i32 = arith.constant 0 : i32
    %c0_i32_0 = arith.constant 0 : i32
    %c0_i32_1 = arith.constant 0 : i32
    return %c0_i32, %c0_i32_0 : i32, i32
  }
  func.func @transform_18(%arg0: i32) -> (i32, i32) {
    %c0_i32 = arith.constant 0 : i32
    %c0_i32_0 = arith.constant 0 : i32
    %c0_i32_1 = arith.constant 0 : i32
    return %c0_i32, %c0_i32_0 : i32, i32
  }
  func.func @transform_19(%arg0: i32) -> (i32, i32) {
    %c0_i32 = arith.constant 0 : i32
    %c0_i32_0 = arith.constant 0 : i32
    %c0_i32_1 = arith.constant 0 : i32
    return %c0_i32, %c0_i32_0 : i32, i32
  }
  func.func @transform_20(%arg0: i32) -> (i32, i32) {
    %c0_i32 = arith.constant 0 : i32
    %c0_i32_0 = arith.constant 0 : i32
    %c0_i32_1 = arith.constant 0 : i32
    return %c0_i32, %c0_i32_0 : i32, i32
  }
  func.func @transform_21(%arg0: i32) -> (i32, i32) {
    %c0_i32 = arith.constant 0 : i32
    %c0_i32_0 = arith.constant 0 : i32
    %c0_i32_1 = arith.constant 0 : i32
    return %c0_i32, %c0_i32_0 : i32, i32
  }
  func.func @transform_22(%arg0: i32) -> (i32, i32) {
    %c0_i32 = arith.constant 0 : i32
    %c0_i32_0 = arith.constant 0 : i32
    %c0_i32_1 = arith.constant 0 : i32
    return %c0_i32, %c0_i32_0 : i32, i32
  }
  func.func @transform_23(%arg0: i32) -> (i32, i32) {
    %c0_i32 = arith.constant 0 : i32
    %c0_i32_0 = arith.constant 0 : i32
    %c0_i32_1 = arith.constant 0 : i32
    return %c0_i32, %c0_i32_0 : i32, i32
  }
  func.func @transform_24(%arg0: i32) -> (i32, i32) {
    %c0_i32 = arith.constant 0 : i32
    %c0_i32_0 = arith.constant 0 : i32
    %c0_i32_1 = arith.constant 0 : i32
    return %c0_i32, %c0_i32_0 : i32, i32
  }
  func.func @transform_25(%arg0: i32) -> (i32, i32) {
    %c0_i32 = arith.constant 0 : i32
    %c0_i32_0 = arith.constant 0 : i32
    %c0_i32_1 = arith.constant 0 : i32
    return %c0_i32, %c0_i32_0 : i32, i32
  }
  func.func @transform_26(%arg0: i32) -> (i32, i32) {
    %c0_i32 = arith.constant 0 : i32
    %c0_i32_0 = arith.constant 0 : i32
    %c0_i32_1 = arith.constant 0 : i32
    return %c0_i32, %c0_i32_0 : i32, i32
  }
  func.func @transform_27(%arg0: i32) -> (i32, i32) {
    %c0_i32 = arith.constant 0 : i32
    %c0_i32_0 = arith.constant 0 : i32
    %c0_i32_1 = arith.constant 0 : i32
    return %c0_i32, %c0_i32_0 : i32, i32
  }
  func.func @transform_28(%arg0: i32) -> (i32, i32) {
    %c0_i32 = arith.constant 0 : i32
    %c0_i32_0 = arith.constant 0 : i32
    %c0_i32_1 = arith.constant 0 : i32
    return %c0_i32, %c0_i32_0 : i32, i32
  }
  func.func @transform_29(%arg0: i32) -> (i32, i32) {
    %c0_i32 = arith.constant 0 : i32
    %c0_i32_0 = arith.constant 0 : i32
    %c0_i32_1 = arith.constant 0 : i32
    return %c0_i32, %c0_i32_0 : i32, i32
  }
  func.func @transform_30(%arg0: i32) -> (i32, i32) {
    %c0_i32 = arith.constant 0 : i32
    %c0_i32_0 = arith.constant 0 : i32
    %c0_i32_1 = arith.constant 0 : i32
    return %c0_i32, %c0_i32_0 : i32, i32
  }
  func.func @transform_31(%arg0: i32) -> (i32, i32) {
    %c0_i32 = arith.constant 0 : i32
    %c0_i32_0 = arith.constant 0 : i32
    %c0_i32_1 = arith.constant 0 : i32
    return %c0_i32, %c0_i32_0 : i32, i32
  }
  func.func @transform_32(%arg0: i32) -> (i32, i32) {
    %c0_i32 = arith.constant 0 : i32
    %c0_i32_0 = arith.constant 0 : i32
    %c0_i32_1 = arith.constant 0 : i32
    return %c0_i32, %c0_i32_0 : i32, i32
  }
  func.func @transform_33(%arg0: i32) -> (i32, i32) {
    %c0_i32 = arith.constant 0 : i32
    %c0_i32_0 = arith.constant 0 : i32
    %c0_i32_1 = arith.constant 0 : i32
    return %c0_i32, %c0_i32_0 : i32, i32
  }
  func.func @transform_34(%arg0: i32) -> (i32, i32) {
    %c0_i32 = arith.constant 0 : i32
    %c0_i32_0 = arith.constant 0 : i32
    %c0_i32_1 = arith.constant 0 : i32
    return %c0_i32, %c0_i32_0 : i32, i32
  }
  func.func @transform_35(%arg0: i32) -> (i32, i32) {
    %c0_i32 = arith.constant 0 : i32
    %c0_i32_0 = arith.constant 0 : i32
    %c0_i32_1 = arith.constant 0 : i32
    return %c0_i32, %c0_i32_0 : i32, i32
  }
  func.func @transform_36(%arg0: i32) -> (i32, i32, i32) {
    %c0_i32 = arith.constant 0 : i32
    %c0_i32_0 = arith.constant 0 : i32
    %c0_i32_1 = arith.constant 0 : i32
    %c0_i32_2 = arith.constant 0 : i32
    return %c0_i32, %c0_i32_0, %c0_i32_1 : i32, i32, i32
  }
  func.func @transform_37(%arg0: i32) -> (i32, i32) {
    %c0_i32 = arith.constant 0 : i32
    %c0_i32_0 = arith.constant 0 : i32
    %c0_i32_1 = arith.constant 0 : i32
    return %c0_i32, %c0_i32_0 : i32, i32
  }
}

</mosaic_0001>

<llo_original>
// kernel: graph_transformer_forward.1
$region0: #{graph_transformer_forward.1}
  #allocation0 [shape = 'u32[]', space=smem, size = 0x4, offset = 0x4, fixed_abs, tag = 'smem constant byte address 0x4 - core index']
  #allocation1 [shape = 'u32[72,128]{1,0:T(1,128)}', space=vmem, size = 0x9000, scoped, tag = 'internal scratch']
  #allocation2 [shape = 'f32[16,128]{1,0:T(8,128)}', space=vmem, size = 0x2000, scoped, tag = 'scratch operand']
  %s0 = inlined_call_operand.smem [shape: u32[38], index: -1, kind: input, shape index: {}]
  %s1 = sld [smem:[%s0]]
  %s2 = scalar_lea.smem %s0, 1
  %s3 = sld [smem:[%s2]]
  %s4 = scalar_lea.smem %s0, 2
  %s5 = sld [smem:[%s4]]
  %s6 = scalar_lea.smem %s0, 3
  %s7 = sld [smem:[%s6]]
  %s8 = scalar_lea.smem %s0, 4
  %s9 = sld [smem:[%s8]]
  %s10 = scalar_lea.smem %s0, 5
  %s11 = sld [smem:[%s10]]
  %s12 = scalar_lea.smem %s0, 6
  %s13 = sld [smem:[%s12]]
  %s14 = scalar_lea.smem %s0, 7
  %s15 = sld [smem:[%s14]]
  %s16 = scalar_lea.smem %s0, 8
  %s17 = sld [smem:[%s16]]
  %s18 = scalar_lea.smem %s0, 9
  %s19 = sld [smem:[%s18]]
  %s20 = scalar_lea.smem %s0, 10
  %s21 = sld [smem:[%s20]]
  %s22 = scalar_lea.smem %s0, 11
  %s23 = sld [smem:[%s22]]
  %s24 = scalar_lea.smem %s0, 12
  %s25 = sld [smem:[%s24]]
  %s26 = scalar_lea.smem %s0, 13
  %s27 = sld [smem:[%s26]]
  %s28 = scalar_lea.smem %s0, 14
  %s29 = sld [smem:[%s28]]
  %s30 = scalar_lea.smem %s0, 15
  %s31 = sld [smem:[%s30]]
  %s32 = scalar_lea.smem %s0, 16
  %s33 = sld [smem:[%s32]]
  %s34 = scalar_lea.smem %s0, 17
  %s35 = sld [smem:[%s34]]
  %s36 = scalar_lea.smem %s0, 18
  %s37 = sld [smem:[%s36]]
  %s38 = scalar_lea.smem %s0, 19
  %s39 = sld [smem:[%s38]]
  %s40 = scalar_lea.smem %s0, 20
  %s41 = sld [smem:[%s40]]
  %s42 = scalar_lea.smem %s0, 21
  %s43 = sld [smem:[%s42]]
  %s44 = scalar_lea.smem %s0, 22
  %s45 = sld [smem:[%s44]]
  %s46 = scalar_lea.smem %s0, 23
  %s47 = sld [smem:[%s46]]
  %s48 = scalar_lea.smem %s0, 24
  %s49 = sld [smem:[%s48]]
  %s50 = scalar_lea.smem %s0, 25
  %s51 = sld [smem:[%s50]]
  %s52 = scalar_lea.smem %s0, 26
  %s53 = sld [smem:[%s52]]
  %s54 = scalar_lea.smem %s0, 27
  %s55 = sld [smem:[%s54]]
  %s56 = scalar_lea.smem %s0, 28
  %s57 = sld [smem:[%s56]]
  %s58 = scalar_lea.smem %s0, 29
  %s59 = sld [smem:[%s58]]
  %s60 = scalar_lea.smem %s0, 30
  %s61 = sld [smem:[%s60]]
  %s62 = scalar_lea.smem %s0, 31
  %s63 = sld [smem:[%s62]]
  %s64 = scalar_lea.smem %s0, 32
  %s65 = sld [smem:[%s64]]
  %s66 = scalar_lea.smem %s0, 33
  %s67 = sld [smem:[%s66]]
  %s68 = scalar_lea.smem %s0, 34
  %s69 = sld [smem:[%s68]]
  %s70 = scalar_lea.smem %s0, 35
  %s71 = sld [smem:[%s70]]
  %s72 = scalar_lea.smem %s0, 36
  %s73 = sld [smem:[%s72]]
  %s74 = scalar_lea.smem %s0, 37
  %s75 = sld [smem:[%s74]]
  %76 = xla_tuple %s71, %s73, %s75
  %s77 = sld [smem:[#allocation0]]
  $region266: #{graph_transformer_forward.1} parent=0
    _
  %s79 = ssub.s32 1, %s77
  %s80 = scalar_select 0, %s79, %s77
  $region1: #{graph_transformer_forward.1} parent=0
    #allocation3 [shape = 'u8[65536]{0}', space=vmem, size = 0x10000, scoped, tag = 'input window, operand 1, single buffered']
    #allocation4 [shape = 's32[1]{0}', space=sflag, size = 0x4, scoped, tag = 'scoped memory for graph_transformer_forward.1']
    #allocation5 [shape = 's32[1]{0}', space=sflag, size = 0x4, scoped, tag = 'scoped memory for graph_transformer_forward.1']
    #allocation6 [shape = 'u8[512]{0}', space=vmem, size = 0x400, scoped, tag = 'input window, operand 2, single buffered']
    #allocation7 [shape = 's32[1]{0}', space=sflag, size = 0x4, scoped, tag = 'scoped memory for graph_transformer_forward.1']
    #allocation8 [shape = 'u8[98304]{0}', space=vmem, size = 0x18000, scoped, tag = 'input window, operand 3, single buffered']
    #allocation9 [shape = 'u8[512]{0}', space=vmem, size = 0x400, scoped, tag = 'input window, operand 6, single buffered']
    #allocation10 [shape = 's32[1]{0}', space=sflag, size = 0x4, scoped, tag = 'scoped memory for graph_transformer_forward.1']
    #allocation11 [shape = 'u8[512]{0}', space=vmem, size = 0x400, scoped, tag = 'input window, operand 7, single buffered']
    #allocation12 [shape = 'u8[512]{0}', space=vmem, size = 0x400, scoped, tag = 'input window, operand 8, single buffered']
    #allocation13 [shape = 's32[1]{0}', space=sflag, size = 0x4, scoped, tag = 'scoped memory for graph_transformer_forward.1']
    #allocation14 [shape = 'u8[32768]{0}', space=vmem, size = 0x8000, scoped, tag = 'input window, operand 9, single buffered']
    #allocation15 [shape = 'u8[512]{0}', space=vmem, size = 0x400, scoped, tag = 'input window, operand 10, single buffered']
    #allocation16 [shape = 's32[1]{0}', space=sflag, size = 0x4, scoped, tag = 'scoped memory for graph_transformer_forward.1']
    #allocation17 [shape = 'u8[32768]{0}', space=vmem, size = 0x8000, scoped, tag = 'input window, operand 11, single buffered']
    #allocation18 [shape = 'u8[512]{0}', space=vmem, size = 0x400, scoped, tag = 'input window, operand 12, single buffered']
    #allocation19 [shape = 's32[1]{0}', space=sflag, size = 0x4, scoped, tag = 'scoped memory for graph_transformer_forward.1']
    #allocation20 [shape = 'u8[512]{0}', space=vmem, size = 0x400, scoped, tag = 'input window, operand 13, single buffered']
    #allocation21 [shape = 'u8[512]{0}', space=vmem, size = 0x400, scoped, tag = 'input window, operand 14, single buffered']
    #allocation22 [shape = 's32[1]{0}', space=sflag, size = 0x4, scoped, tag = 'scoped memory for graph_transformer_forward.1']
    #allocation23 [shape = 'u8[98304]{0}', space=vmem, size = 0x18000, scoped, tag = 'input window, operand 15, single buffered']
    #allocation24 [shape = 'u8[1536]{0}', space=vmem, size = 0x800, scoped, tag = 'input window, operand 16, single buffered']
    #allocation25 [shape = 's32[1]{0}', space=sflag, size = 0x4, scoped, tag = 'scoped memory for graph_transformer_forward.1']
    #allocation26 [shape = 'u8[32768]{0}', space=vmem, size = 0x8000, scoped, tag = 'input window, operand 17, single buffered']
    #allocation27 [shape = 'u8[32768]{0}', space=vmem, size = 0x8000, scoped, tag = 'input window, operand 21, single buffered']
    #allocation28 [shape = 's32[1]{0}', space=sflag, size = 0x4, scoped, tag = 'scoped memory for graph_transformer_forward.1']
    #allocation29 [shape = 'u8[512]{0}', space=vmem, size = 0x400, scoped, tag = 'input window, operand 22, single buffered']
    #allocation30 [shape = 'u8[32768]{0}', space=vmem, size = 0x8000, scoped, tag = 'input window, operand 23, single buffered']
    #allocation31 [shape = 's32[1]{0}', space=sflag, size = 0x4, scoped, tag = 'scoped memory for graph_transformer_forward.1']
    #allocation32 [shape = 'u8[512]{0}', space=vmem, size = 0x400, scoped, tag = 'input window, operand 24, single buffered']
    #allocation33 [shape = 'u8[32768]{0}', space=vmem, size = 0x8000, scoped, tag = 'input window, operand 27, single buffered']
    #allocation34 [shape = 's32[1]{0}', space=sflag, size = 0x4, scoped, tag = 'scoped memory for graph_transformer_forward.1']
    #allocation35 [shape = 'u8[512]{0}', space=vmem, size = 0x400, scoped, tag = 'input window, operand 28, single buffered']
    #allocation36 [shape = 'u8[512]{0}', space=vmem, size = 0x400, scoped, tag = 'input window, operand 30, single buffered']
    #allocation37 [shape = 's32[1]{0}', space=sflag, size = 0x4, scoped, tag = 'scoped memory for graph_transformer_forward.1']
    #allocation38 [shape = 'u8[65536]{0}', space=vmem, size = 0x10000, scoped, tag = 'input window, operand 31, single buffered']
    #allocation39 [shape = 'u8[32768]{0}', space=vmem, size = 0x8000, scoped, tag = 'input window, operand 33, single buffered']
    #allocation40 [shape = 's32[1]{0}', space=sflag, size = 0x4, scoped, tag = 'scoped memory for graph_transformer_forward.1']
    #allocation41 [shape = 'u8[512]{0}', space=vmem, size = 0x400, scoped, tag = 'input window, operand 34, single buffered']
    #allocation42 [shape = 'u8[8192]{0}', space=vmem, size = 0x2000, scoped, tag = 'output window, operand 0, single buffered']
    #allocation43 [shape = 'u8[8192]{0}', space=vmem, size = 0x2000, scoped, tag = 'output window, operand 1, single buffered']
    #allocation44 [shape = 's32[1]{0}', space=sflag, size = 0x4, scoped, tag = 'scoped memory for graph_transformer_forward.1']
    #allocation45 [shape = 'u8[8192]{0}', space=vmem, size = 0x2000, scoped, tag = 'output window, operand 2, single buffered']
    %81 = vsyncpa [#allocation4], 0
    %82 = vsyncpa [#allocation7], 0
    %83 = vsyncpa [#allocation10], 0
    %84 = vsyncpa [#allocation13], 0
    %85 = vsyncpa [#allocation16], 0
    %86 = vsyncpa [#allocation19], 0
    %87 = vsyncpa [#allocation22], 0
    %88 = vsyncpa [#allocation25], 0
    %89 = vsyncpa [#allocation28], 0
    %90 = vsyncpa [#allocation31], 0
    %91 = vsyncpa [#allocation34], 0
    %92 = vsyncpa [#allocation37], 0
    %93 = vsyncpa [#allocation40], 0
    %94 = vsyncpa [#allocation5], 0
    %95 = vsyncpa [#allocation44], 0
    // Predicated region
    $region2: #{graph_transformer_forward.1} parent=1 // pred_check
      _
    $region3: #{graph_transformer_forward.1} parent=1 // pred_check_branch
      %97 = sbr.rel (0) target = $region5
    $region4: #{graph_transformer_forward.1} parent=1 // pred_region
      _
    $region5: #{graph_transformer_forward.1} parent=1 // pred_fallthru
      _
    // Predicated region
    $region6: #{graph_transformer_forward.1} parent=1 // pred_check
      _
    $region7: #{graph_transformer_forward.1} parent=1 // pred_check_branch
      %99 = sbr.rel (0) target = $region9
    $region8: #{graph_transformer_forward.1} parent=1 // pred_region
      %101 = vsyncadd [#allocation4], 0
      %s102 = sshll.u32 %s3, 4
      %s103 = int_to_ptr.hbm [resolvable:$true] %s102
      %s104 = sshll.u32 [#allocation3], 4
      %s105 = int_to_ptr.vmem [resolvable:$true] %s104
      %110 = dma.hbm_to_vmem [thread:$0]  %s103, 2048, %s105, [#allocation4], 64, 64, 4
    $region9: #{graph_transformer_forward.1} parent=1 // pred_fallthru
      _
    // Predicated region
    $region10: #{graph_transformer_forward.1} parent=1 // pred_check
      _
    $region11: #{graph_transformer_forward.1} parent=1 // pred_check_branch
      %112 = sbr.rel (0) target = $region13
    $region12: #{graph_transformer_forward.1} parent=1 // pred_region
      %114 = vsyncadd [#allocation7], 0
      %s116 = sshll.u32 %s5, 4
      %s117 = int_to_ptr.hbm [resolvable:$true] %s116
      %s118 = sshll.u32 [#allocation6], 4
      %s119 = int_to_ptr.vmem [resolvable:$true] %s118
      %121 = dma.hbm_to_vmem [thread:$0]  %s117, 16, %s119, [#allocation7]
    $region13: #{graph_transformer_forward.1} parent=1 // pred_fallthru
      _
    // Predicated region
    $region14: #{graph_transformer_forward.1} parent=1 // pred_check
      _
    $region15: #{graph_transformer_forward.1} parent=1 // pred_check_branch
      %123 = sbr.rel (0) target = $region17
    $region16: #{graph_transformer_forward.1} parent=1 // pred_region
      %125 = vsyncadd [#allocation7], 0
      %s126 = sshll.u32 %s7, 4
      %s127 = int_to_ptr.hbm [resolvable:$true] %s126
      %s128 = sshll.u32 [#allocation8], 4
      %s129 = int_to_ptr.vmem [resolvable:$true] %s128
      %134 = dma.hbm_to_vmem [thread:$0]  %s127, 3072, %s129, [#allocation7], 192, 192, 12
    $region17: #{graph_transformer_forward.1} parent=1 // pred_fallthru
      _
    // Predicated region
    $region18: #{graph_transformer_forward.1} parent=1 // pred_check
      _
    $region19: #{graph_transformer_forward.1} parent=1 // pred_check_branch
      %136 = sbr.rel (0) target = $region21
    $region20: #{graph_transformer_forward.1} parent=1 // pred_region
      _
    $region21: #{graph_transformer_forward.1} parent=1 // pred_fallthru
      _
    // Predicated region
    $region22: #{graph_transformer_forward.1} parent=1 // pred_check
      _
    $region23: #{graph_transformer_forward.1} parent=1 // pred_check_branch
      %138 = sbr.rel (0) target = $region25
    $region24: #{graph_transformer_forward.1} parent=1 // pred_region
      _
    $region25: #{graph_transformer_forward.1} parent=1 // pred_fallthru
      _
    // Predicated region
    $region26: #{graph_transformer_forward.1} parent=1 // pred_check
      _
    $region27: #{graph_transformer_forward.1} parent=1 // pred_check_branch
      %140 = sbr.rel (0) target = $region29
    $region28: #{graph_transformer_forward.1} parent=1 // pred_region
      %142 = vsyncadd [#allocation10], 0
      %s144 = sshll.u32 %s13, 4
      %s145 = int_to_ptr.hbm [resolvable:$true] %s144
      %s146 = sshll.u32 [#allocation9], 4
      %s147 = int_to_ptr.vmem [resolvable:$true] %s146
      %149 = dma.hbm_to_vmem [thread:$0]  %s145, 16, %s147, [#allocation10]
    $region29: #{graph_transformer_forward.1} parent=1 // pred_fallthru
      _
    // Predicated region
    $region30: #{graph_transformer_forward.1} parent=1 // pred_check
      _
    $region31: #{graph_transformer_forward.1} parent=1 // pred_check_branch
      %151 = sbr.rel (0) target = $region33
    $region32: #{graph_transformer_forward.1} parent=1 // pred_region
      %153 = vsyncadd [#allocation10], 0
      %s155 = sshll.u32 %s15, 4
      %s156 = int_to_ptr.hbm [resolvable:$true] %s155
      %s157 = sshll.u32 [#allocation11], 4
      %s158 = int_to_ptr.vmem [resolvable:$true] %s157
      %160 = dma.hbm_to_vmem [thread:$0]  %s156, 16, %s158, [#allocation10]
    $region33: #{graph_transformer_forward.1} parent=1 // pred_fallthru
      _
    // Predicated region
    $region34: #{graph_transformer_forward.1} parent=1 // pred_check
      _
    $region35: #{graph_transformer_forward.1} parent=1 // pred_check_branch
      %162 = sbr.rel (0) target = $region37
    $region36: #{graph_transformer_forward.1} parent=1 // pred_region
      %164 = vsyncadd [#allocation13], 0
      %s166 = sshll.u32 %s17, 4
      %s167 = int_to_ptr.hbm [resolvable:$true] %s166
      %s168 = sshll.u32 [#allocation12], 4
      %s169 = int_to_ptr.vmem [resolvable:$true] %s168
      %171 = dma.hbm_to_vmem [thread:$0]  %s167, 16, %s169, [#allocation13]
    $region37: #{graph_transformer_forward.1} parent=1 // pred_fallthru
      _
    // Predicated region
    $region38: #{graph_transformer_forward.1} parent=1 // pred_check
      _
    $region39: #{graph_transformer_forward.1} parent=1 // pred_check_branch
      %173 = sbr.rel (0) target = $region41
    $region40: #{graph_transformer_forward.1} parent=1 // pred_region
      %175 = vsyncadd [#allocation13], 0
      %s176 = sshll.u32 %s19, 4
      %s177 = int_to_ptr.hbm [resolvable:$true] %s176
      %s178 = sshll.u32 [#allocation14], 4
      %s179 = int_to_ptr.vmem [resolvable:$true] %s178
      %184 = dma.hbm_to_vmem [thread:$0]  %s177, 1024, %s179, [#allocation13], 64, 64, 4
    $region41: #{graph_transformer_forward.1} parent=1 // pred_fallthru
      _
    // Predicated region
    $region42: #{graph_transformer_forward.1} parent=1 // pred_check
      _
    $region43: #{graph_transformer_forward.1} parent=1 // pred_check_branch
      %186 = sbr.rel (0) target = $region45
    $region44: #{graph_transformer_forward.1} parent=1 // pred_region
      %188 = vsyncadd [#allocation16], 0
      %s190 = sshll.u32 %s21, 4
      %s191 = int_to_ptr.hbm [resolvable:$true] %s190
      %s192 = sshll.u32 [#allocation15], 4
      %s193 = int_to_ptr.vmem [resolvable:$true] %s192
      %195 = dma.hbm_to_vmem [thread:$0]  %s191, 16, %s193, [#allocation16]
    $region45: #{graph_transformer_forward.1} parent=1 // pred_fallthru
      _
    // Predicated region
    $region46: #{graph_transformer_forward.1} parent=1 // pred_check
      _
    $region47: #{graph_transformer_forward.1} parent=1 // pred_check_branch
      %197 = sbr.rel (0) target = $region49
    $region48: #{graph_transformer_forward.1} parent=1 // pred_region
      %199 = vsyncadd [#allocation16], 0
      %s200 = sshll.u32 %s23, 4
      %s201 = int_to_ptr.hbm [resolvable:$true] %s200
      %s202 = sshll.u32 [#allocation17], 4
      %s203 = int_to_ptr.vmem [resolvable:$true] %s202
      %208 = dma.hbm_to_vmem [thread:$0]  %s201, 1024, %s203, [#allocation16], 64, 64, 4
    $region49: #{graph_transformer_forward.1} parent=1 // pred_fallthru
      _
    // Predicated region
    $region50: #{graph_transformer_forward.1} parent=1 // pred_check
      _
    $region51: #{graph_transformer_forward.1} parent=1 // pred_check_branch
      %210 = sbr.rel (0) target = $region53
    $region52: #{graph_transformer_forward.1} parent=1 // pred_region
      %212 = vsyncadd [#allocation19], 0
      %s214 = sshll.u32 %s25, 4
      %s215 = int_to_ptr.hbm [resolvable:$true] %s214
      %s216 = sshll.u32 [#allocation18], 4
      %s217 = int_to_ptr.vmem [resolvable:$true] %s216
      %219 = dma.hbm_to_vmem [thread:$0]  %s215, 16, %s217, [#allocation19]
    $region53: #{graph_transformer_forward.1} parent=1 // pred_fallthru
      _
    // Predicated region
    $region54: #{graph_transformer_forward.1} parent=1 // pred_check
      _
    $region55: #{graph_transformer_forward.1} parent=1 // pred_check_branch
      %221 = sbr.rel (0) target = $region57
    $region56: #{graph_transformer_forward.1} parent=1 // pred_region
      %223 = vsyncadd [#allocation19], 0
      %s225 = sshll.u32 %s27, 4
      %s226 = int_to_ptr.hbm [resolvable:$true] %s225
      %s227 = sshll.u32 [#allocation20], 4
      %s228 = int_to_ptr.vmem [resolvable:$true] %s227
      %230 = dma.hbm_to_vmem [thread:$0]  %s226, 16, %s228, [#allocation19]
    $region57: #{graph_transformer_forward.1} parent=1 // pred_fallthru
      _
    // Predicated region
    $region58: #{graph_transformer_forward.1} parent=1 // pred_check
      _
    $region59: #{graph_transformer_forward.1} parent=1 // pred_check_branch
      %232 = sbr.rel (0) target = $region61
    $region60: #{graph_transformer_forward.1} parent=1 // pred_region
      %234 = vsyncadd [#allocation22], 0
      %s236 = sshll.u32 %s29, 4
      %s237 = int_to_ptr.hbm [resolvable:$true] %s236
      %s238 = sshll.u32 [#allocation21], 4
      %s239 = int_to_ptr.vmem [resolvable:$true] %s238
      %241 = dma.hbm_to_vmem [thread:$0]  %s237, 16, %s239, [#allocation22]
    $region61: #{graph_transformer_forward.1} parent=1 // pred_fallthru
      _
    // Predicated region
    $region62: #{graph_transformer_forward.1} parent=1 // pred_check
      _
    $region63: #{graph_transformer_forward.1} parent=1 // pred_check_branch
      %243 = sbr.rel (0) target = $region65
    $region64: #{graph_transformer_forward.1} parent=1 // pred_region
      %245 = vsyncadd [#allocation22], 0
      %s246 = sshll.u32 %s31, 4
      %s247 = int_to_ptr.hbm [resolvable:$true] %s246
      %s248 = sshll.u32 [#allocation23], 4
      %s249 = int_to_ptr.vmem [resolvable:$true] %s248
      %254 = dma.hbm_to_vmem [thread:$0]  %s247, 3072, %s249, [#allocation22], 192, 192, 12
    $region65: #{graph_transformer_forward.1} parent=1 // pred_fallthru
      _
    // Predicated region
    $region66: #{graph_transformer_forward.1} parent=1 // pred_check
      _
    $region67: #{graph_transformer_forward.1} parent=1 // pred_check_branch
      %256 = sbr.rel (0) target = $region69
    $region68: #{graph_transformer_forward.1} parent=1 // pred_region
      %258 = vsyncadd [#allocation25], 0
      %s260 = sshll.u32 %s33, 4
      %s261 = int_to_ptr.hbm [resolvable:$true] %s260
      %s262 = sshll.u32 [#allocation24], 4
      %s263 = int_to_ptr.vmem [resolvable:$true] %s262
      %265 = dma.hbm_to_vmem [thread:$0]  %s261, 48, %s263, [#allocation25]
    $region69: #{graph_transformer_forward.1} parent=1 // pred_fallthru
      _
    // Predicated region
    $region70: #{graph_transformer_forward.1} parent=1 // pred_check
      _
    $region71: #{graph_transformer_forward.1} parent=1 // pred_check_branch
      %267 = sbr.rel (0) target = $region73
    $region72: #{graph_transformer_forward.1} parent=1 // pred_region
      %269 = vsyncadd [#allocation25], 0
      %s270 = sshll.u32 %s35, 4
      %s271 = int_to_ptr.hbm [resolvable:$true] %s270
      %s272 = sshll.u32 [#allocation26], 4
      %s273 = int_to_ptr.vmem [resolvable:$true] %s272
      %278 = dma.hbm_to_vmem [thread:$0]  %s271, 1024, %s273, [#allocation25], 64, 64, 4
    $region73: #{graph_transformer_forward.1} parent=1 // pred_fallthru
      _
    // Predicated region
    $region74: #{graph_transformer_forward.1} parent=1 // pred_check
      _
    $region75: #{graph_transformer_forward.1} parent=1 // pred_check_branch
      %280 = sbr.rel (0) target = $region77
    $region76: #{graph_transformer_forward.1} parent=1 // pred_region
      _
    $region77: #{graph_transformer_forward.1} parent=1 // pred_fallthru
      _
    // Predicated region
    $region78: #{graph_transformer_forward.1} parent=1 // pred_check
      _
    $region79: #{graph_transformer_forward.1} parent=1 // pred_check_branch
      %282 = sbr.rel (0) target = $region81
    $region80: #{graph_transformer_forward.1} parent=1 // pred_region
      _
    $region81: #{graph_transformer_forward.1} parent=1 // pred_fallthru
      _
    // Predicated region
    $region82: #{graph_transformer_forward.1} parent=1 // pred_check
      _
    $region83: #{graph_transformer_forward.1} parent=1 // pred_check_branch
      %284 = sbr.rel (0) target = $region85
    $region84: #{graph_transformer_forward.1} parent=1 // pred_region
      _
    $region85: #{graph_transformer_forward.1} parent=1 // pred_fallthru
      _
    // Predicated region
    $region86: #{graph_transformer_forward.1} parent=1 // pred_check
      _
    $region87: #{graph_transformer_forward.1} parent=1 // pred_check_branch
      %286 = sbr.rel (0) target = $region89
    $region88: #{graph_transformer_forward.1} parent=1 // pred_region
      %288 = vsyncadd [#allocation28], 0
      %s289 = sshll.u32 %s43, 4
      %s290 = int_to_ptr.hbm [resolvable:$true] %s289
      %s291 = sshll.u32 [#allocation27], 4
      %s292 = int_to_ptr.vmem [resolvable:$true] %s291
      %297 = dma.hbm_to_vmem [thread:$0]  %s290, 1024, %s292, [#allocation28], 64, 64, 4
    $region89: #{graph_transformer_forward.1} parent=1 // pred_fallthru
      _
    // Predicated region
    $region90: #{graph_transformer_forward.1} parent=1 // pred_check
      _
    $region91: #{graph_transformer_forward.1} parent=1 // pred_check_branch
      %299 = sbr.rel (0) target = $region93
    $region92: #{graph_transformer_forward.1} parent=1 // pred_region
      %301 = vsyncadd [#allocation28], 0
      %s303 = sshll.u32 %s45, 4
      %s304 = int_to_ptr.hbm [resolvable:$true] %s303
      %s305 = sshll.u32 [#allocation29], 4
      %s306 = int_to_ptr.vmem [resolvable:$true] %s305
      %308 = dma.hbm_to_vmem [thread:$0]  %s304, 16, %s306, [#allocation28]
    $region93: #{graph_transformer_forward.1} parent=1 // pred_fallthru
      _
    // Predicated region
    $region94: #{graph_transformer_forward.1} parent=1 // pred_check
      _
    $region95: #{graph_transformer_forward.1} parent=1 // pred_check_branch
      %310 = sbr.rel (0) target = $region97
    $region96: #{graph_transformer_forward.1} parent=1 // pred_region
      %312 = vsyncadd [#allocation31], 0
      %s313 = sshll.u32 %s47, 4
      %s314 = int_to_ptr.hbm [resolvable:$true] %s313
      %s315 = sshll.u32 [#allocation30], 4
      %s316 = int_to_ptr.vmem [resolvable:$true] %s315
      %321 = dma.hbm_to_vmem [thread:$0]  %s314, 1024, %s316, [#allocation31], 64, 64, 4
    $region97: #{graph_transformer_forward.1} parent=1 // pred_fallthru
      _
    // Predicated region
    $region98: #{graph_transformer_forward.1} parent=1 // pred_check
      _
    $region99: #{graph_transformer_forward.1} parent=1 // pred_check_branch
      %323 = sbr.rel (0) target = $region101
    $region100: #{graph_transformer_forward.1} parent=1 // pred_region
      %325 = vsyncadd [#allocation31], 0
      %s327 = sshll.u32 %s49, 4
      %s328 = int_to_ptr.hbm [resolvable:$true] %s327
      %s329 = sshll.u32 [#allocation32], 4
      %s330 = int_to_ptr.vmem [resolvable:$true] %s329
      %332 = dma.hbm_to_vmem [thread:$0]  %s328, 16, %s330, [#allocation31]
    $region101: #{graph_transformer_forward.1} parent=1 // pred_fallthru
      _
    // Predicated region
    $region102: #{graph_transformer_forward.1} parent=1 // pred_check
      _
    $region103: #{graph_transformer_forward.1} parent=1 // pred_check_branch
      %334 = sbr.rel (0) target = $region105
    $region104: #{graph_transformer_forward.1} parent=1 // pred_region
      _
    $region105: #{graph_transformer_forward.1} parent=1 // pred_fallthru
      _
    // Predicated region
    $region106: #{graph_transformer_forward.1} parent=1 // pred_check
      _
    $region107: #{graph_transformer_forward.1} parent=1 // pred_check_branch
      %336 = sbr.rel (0) target = $region109
    $region108: #{graph_transformer_forward.1} parent=1 // pred_region
      _
    $region109: #{graph_transformer_forward.1} parent=1 // pred_fallthru
      _
    // Predicated region
    $region110: #{graph_transformer_forward.1} parent=1 // pred_check
      _
    $region111: #{graph_transformer_forward.1} parent=1 // pred_check_branch
      %338 = sbr.rel (0) target = $region113
    $region112: #{graph_transformer_forward.1} parent=1 // pred_region
      %340 = vsyncadd [#allocation34], 0
      %s341 = sshll.u32 %s55, 4
      %s342 = int_to_ptr.hbm [resolvable:$true] %s341
      %s343 = sshll.u32 [#allocation33], 4
      %s344 = int_to_ptr.vmem [resolvable:$true] %s343
      %349 = dma.hbm_to_vmem [thread:$0]  %s342, 1024, %s344, [#allocation34], 64, 64, 4
    $region113: #{graph_transformer_forward.1} parent=1 // pred_fallthru
      _
    // Predicated region
    $region114: #{graph_transformer_forward.1} parent=1 // pred_check
      _
    $region115: #{graph_transformer_forward.1} parent=1 // pred_check_branch
      %351 = sbr.rel (0) target = $region117
    $region116: #{graph_transformer_forward.1} parent=1 // pred_region
      %353 = vsyncadd [#allocation34], 0
      %s355 = sshll.u32 %s57, 4
      %s356 = int_to_ptr.hbm [resolvable:$true] %s355
      %s357 = sshll.u32 [#allocation35], 4
      %s358 = int_to_ptr.vmem [resolvable:$true] %s357
      %360 = dma.hbm_to_vmem [thread:$0]  %s356, 16, %s358, [#allocation34]
    $region117: #{graph_transformer_forward.1} parent=1 // pred_fallthru
      _
    // Predicated region
    $region118: #{graph_transformer_forward.1} parent=1 // pred_check
      _
    $region119: #{graph_transformer_forward.1} parent=1 // pred_check_branch
      %362 = sbr.rel (0) target = $region121
    $region120: #{graph_transformer_forward.1} parent=1 // pred_region
      _
    $region121: #{graph_transformer_forward.1} parent=1 // pred_fallthru
      _
    // Predicated region
    $region122: #{graph_transformer_forward.1} parent=1 // pred_check
      _
    $region123: #{graph_transformer_forward.1} parent=1 // pred_check_branch
      %364 = sbr.rel (0) target = $region125
    $region124: #{graph_transformer_forward.1} parent=1 // pred_region
      %366 = vsyncadd [#allocation37], 0
      %s368 = sshll.u32 %s61, 4
      %s369 = int_to_ptr.hbm [resolvable:$true] %s368
      %s370 = sshll.u32 [#allocation36], 4
      %s371 = int_to_ptr.vmem [resolvable:$true] %s370
      %373 = dma.hbm_to_vmem [thread:$0]  %s369, 16, %s371, [#allocation37]
    $region125: #{graph_transformer_forward.1} parent=1 // pred_fallthru
      _
    // Predicated region
    $region126: #{graph_transformer_forward.1} parent=1 // pred_check
      _
    $region127: #{graph_transformer_forward.1} parent=1 // pred_check_branch
      %375 = sbr.rel (0) target = $region129
    $region128: #{graph_transformer_forward.1} parent=1 // pred_region
      %377 = vsyncadd [#allocation37], 0
      %s378 = sshll.u32 %s63, 4
      %s379 = int_to_ptr.hbm [resolvable:$true] %s378
      %s380 = sshll.u32 [#allocation38], 4
      %s381 = int_to_ptr.vmem [resolvable:$true] %s380
      %386 = dma.hbm_to_vmem [thread:$0]  %s379, 2048, %s381, [#allocation37], 128, 128, 8
    $region129: #{graph_transformer_forward.1} parent=1 // pred_fallthru
      _
    // Predicated region
    $region130: #{graph_transformer_forward.1} parent=1 // pred_check
      _
    $region131: #{graph_transformer_forward.1} parent=1 // pred_check_branch
      %388 = sbr.rel (0) target = $region133
    $region132: #{graph_transformer_forward.1} parent=1 // pred_region
      _
    $region133: #{graph_transformer_forward.1} parent=1 // pred_fallthru
      _
    // Predicated region
    $region134: #{graph_transformer_forward.1} parent=1 // pred_check
      _
    $region135: #{graph_transformer_forward.1} parent=1 // pred_check_branch
      %390 = sbr.rel (0) target = $region137
    $region136: #{graph_transformer_forward.1} parent=1 // pred_region
      %392 = vsyncadd [#allocation40], 0
      %s393 = sshll.u32 %s67, 4
      %s394 = int_to_ptr.hbm [resolvable:$true] %s393
      %s395 = sshll.u32 [#allocation39], 4
      %s396 = int_to_ptr.vmem [resolvable:$true] %s395
      %401 = dma.hbm_to_vmem [thread:$0]  %s394, 1024, %s396, [#allocation40], 64, 64, 4
    $region137: #{graph_transformer_forward.1} parent=1 // pred_fallthru
      _
    // Predicated region
    $region138: #{graph_transformer_forward.1} parent=1 // pred_check
      _
    $region139: #{graph_transformer_forward.1} parent=1 // pred_check_branch
      %403 = sbr.rel (0) target = $region141
    $region140: #{graph_transformer_forward.1} parent=1 // pred_region
      %405 = vsyncadd [#allocation40], 0
      %s407 = sshll.u32 %s69, 4
      %s408 = int_to_ptr.hbm [resolvable:$true] %s407
      %s409 = sshll.u32 [#allocation41], 4
      %s410 = int_to_ptr.vmem [resolvable:$true] %s409
      %412 = dma.hbm_to_vmem [thread:$0]  %s408, 16, %s410, [#allocation40]
    $region141: #{graph_transformer_forward.1} parent=1 // pred_fallthru
      _
    // Predicated region
    $region142: #{graph_transformer_forward.1} parent=1 // pred_check
      _
    $region143: #{graph_transformer_forward.1} parent=1 // pred_check_branch
      %414 = sbr.rel (0) target = $region145
    $region144: #{graph_transformer_forward.1} parent=1 // pred_region
      %416 = dma.done [#allocation4], 2048
    $region145: #{graph_transformer_forward.1} parent=1 // pred_fallthru
      _
    // Predicated region
    $region146: #{graph_transformer_forward.1} parent=1 // pred_check
      _
    $region147: #{graph_transformer_forward.1} parent=1 // pred_check_branch
      %418 = sbr.rel (0) target = $region149
    $region148: #{graph_transformer_forward.1} parent=1 // pred_region
      %420 = dma.done [#allocation7], 16
    $region149: #{graph_transformer_forward.1} parent=1 // pred_fallthru
      _
    // Predicated region
    $region150: #{graph_transformer_forward.1} parent=1 // pred_check
      _
    $region151: #{graph_transformer_forward.1} parent=1 // pred_check_branch
      %422 = sbr.rel (0) target = $region153
    $region152: #{graph_transformer_forward.1} parent=1 // pred_region
      %424 = dma.done [#allocation7], 3072
    $region153: #{graph_transformer_forward.1} parent=1 // pred_fallthru
      _
    // Predicated region
    $region154: #{graph_transformer_forward.1} parent=1 // pred_check
      _
    $region155: #{graph_transformer_forward.1} parent=1 // pred_check_branch
      %426 = sbr.rel (0) target = $region157
    $region156: #{graph_transformer_forward.1} parent=1 // pred_region
      %428 = dma.done [#allocation10], 16
    $region157: #{graph_transformer_forward.1} parent=1 // pred_fallthru
      _
    // Predicated region
    $region158: #{graph_transformer_forward.1} parent=1 // pred_check
      _
    $region159: #{graph_transformer_forward.1} parent=1 // pred_check_branch
      %430 = sbr.rel (0) target = $region161
    $region160: #{graph_transformer_forward.1} parent=1 // pred_region
      %432 = dma.done [#allocation10], 16
    $region161: #{graph_transformer_forward.1} parent=1 // pred_fallthru
      _
    // Predicated region
    $region162: #{graph_transformer_forward.1} parent=1 // pred_check
      _
    $region163: #{graph_transformer_forward.1} parent=1 // pred_check_branch
      %434 = sbr.rel (0) target = $region165
    $region164: #{graph_transformer_forward.1} parent=1 // pred_region
      %436 = dma.done [#allocation13], 16
    $region165: #{graph_transformer_forward.1} parent=1 // pred_fallthru
      _
    // Predicated region
    $region166: #{graph_transformer_forward.1} parent=1 // pred_check
      _
    $region167: #{graph_transformer_forward.1} parent=1 // pred_check_branch
      %438 = sbr.rel (0) target = $region169
    $region168: #{graph_transformer_forward.1} parent=1 // pred_region
      %440 = dma.done [#allocation13], 1024
    $region169: #{graph_transformer_forward.1} parent=1 // pred_fallthru
      _
    // Predicated region
    $region170: #{graph_transformer_forward.1} parent=1 // pred_check
      _
    $region171: #{graph_transformer_forward.1} parent=1 // pred_check_branch
      %442 = sbr.rel (0) target = $region173
    $region172: #{graph_transformer_forward.1} parent=1 // pred_region
      %444 = dma.done [#allocation16], 16
    $region173: #{graph_transformer_forward.1} parent=1 // pred_fallthru
      _
    // Predicated region
    $region174: #{graph_transformer_forward.1} parent=1 // pred_check
      _
    $region175: #{graph_transformer_forward.1} parent=1 // pred_check_branch
      %446 = sbr.rel (0) target = $region177
    $region176: #{graph_transformer_forward.1} parent=1 // pred_region
      %448 = dma.done [#allocation16], 1024
    $region177: #{graph_transformer_forward.1} parent=1 // pred_fallthru
      _
    // Predicated region
    $region178: #{graph_transformer_forward.1} parent=1 // pred_check
      _
    $region179: #{graph_transformer_forward.1} parent=1 // pred_check_branch
      %450 = sbr.rel (0) target = $region181
    $region180: #{graph_transformer_forward.1} parent=1 // pred_region
      %452 = dma.done [#allocation19], 16
    $region181: #{graph_transformer_forward.1} parent=1 // pred_fallthru
      _
    // Predicated region
    $region182: #{graph_transformer_forward.1} parent=1 // pred_check
      _
    $region183: #{graph_transformer_forward.1} parent=1 // pred_check_branch
      %454 = sbr.rel (0) target = $region185
    $region184: #{graph_transformer_forward.1} parent=1 // pred_region
      %456 = dma.done [#allocation19], 16
    $region185: #{graph_transformer_forward.1} parent=1 // pred_fallthru
      _
    // Predicated region
    $region186: #{graph_transformer_forward.1} parent=1 // pred_check
      _
    $region187: #{graph_transformer_forward.1} parent=1 // pred_check_branch
      %458 = sbr.rel (0) target = $region189
    $region188: #{graph_transformer_forward.1} parent=1 // pred_region
      %460 = dma.done [#allocation22], 16
    $region189: #{graph_transformer_forward.1} parent=1 // pred_fallthru
      _
    // Predicated region
    $region190: #{graph_transformer_forward.1} parent=1 // pred_check
      _
    $region191: #{graph_transformer_forward.1} parent=1 // pred_check_branch
      %462 = sbr.rel (0) target = $region193
    $region192: #{graph_transformer_forward.1} parent=1 // pred_region
      %464 = dma.done [#allocation22], 3072
    $region193: #{graph_transformer_forward.1} parent=1 // pred_fallthru
      _
    // Predicated region
    $region194: #{graph_transformer_forward.1} parent=1 // pred_check
      _
    $region195: #{graph_transformer_forward.1} parent=1 // pred_check_branch
      %466 = sbr.rel (0) target = $region197
    $region196: #{graph_transformer_forward.1} parent=1 // pred_region
      %468 = dma.done [#allocation25], 48
    $region197: #{graph_transformer_forward.1} parent=1 // pred_fallthru
      _
    // Predicated region
    $region198: #{graph_transformer_forward.1} parent=1 // pred_check
      _
    $region199: #{graph_transformer_forward.1} parent=1 // pred_check_branch
      %470 = sbr.rel (0) target = $region201
    $region200: #{graph_transformer_forward.1} parent=1 // pred_region
      %472 = dma.done [#allocation25], 1024
    $region201: #{graph_transformer_forward.1} parent=1 // pred_fallthru
      _
    // Predicated region
    $region202: #{graph_transformer_forward.1} parent=1 // pred_check
      _
    $region203: #{graph_transformer_forward.1} parent=1 // pred_check_branch
      %474 = sbr.rel (0) target = $region205
    $region204: #{graph_transformer_forward.1} parent=1 // pred_region
      %476 = dma.done [#allocation28], 1024
    $region205: #{graph_transformer_forward.1} parent=1 // pred_fallthru
      _
    // Predicated region
    $region206: #{graph_transformer_forward.1} parent=1 // pred_check
      _
    $region207: #{graph_transformer_forward.1} parent=1 // pred_check_branch
      %478 = sbr.rel (0) target = $region209
    $region208: #{graph_transformer_forward.1} parent=1 // pred_region
      %480 = dma.done [#allocation28], 16
    $region209: #{graph_transformer_forward.1} parent=1 // pred_fallthru
      _
    // Predicated region
    $region210: #{graph_transformer_forward.1} parent=1 // pred_check
      _
    $region211: #{graph_transformer_forward.1} parent=1 // pred_check_branch
      %482 = sbr.rel (0) target = $region213
    $region212: #{graph_transformer_forward.1} parent=1 // pred_region
      %484 = dma.done [#allocation31], 1024
    $region213: #{graph_transformer_forward.1} parent=1 // pred_fallthru
      _
    // Predicated region
    $region214: #{graph_transformer_forward.1} parent=1 // pred_check
      _
    $region215: #{graph_transformer_forward.1} parent=1 // pred_check_branch
      %486 = sbr.rel (0) target = $region217
    $region216: #{graph_transformer_forward.1} parent=1 // pred_region
      %488 = dma.done [#allocation31], 16
    $region217: #{graph_transformer_forward.1} parent=1 // pred_fallthru
      _
    // Predicated region
    $region218: #{graph_transformer_forward.1} parent=1 // pred_check
      _
    $region219: #{graph_transformer_forward.1} parent=1 // pred_check_branch
      %490 = sbr.rel (0) target = $region221
    $region220: #{graph_transformer_forward.1} parent=1 // pred_region
      %492 = dma.done [#allocation34], 1024
    $region221: #{graph_transformer_forward.1} parent=1 // pred_fallthru
      _
    // Predicated region
    $region222: #{graph_transformer_forward.1} parent=1 // pred_check
      _
    $region223: #{graph_transformer_forward.1} parent=1 // pred_check_branch
      %494 = sbr.rel (0) target = $region225
    $region224: #{graph_transformer_forward.1} parent=1 // pred_region
      %496 = dma.done [#allocation34], 16
    $region225: #{graph_transformer_forward.1} parent=1 // pred_fallthru
      _
    // Predicated region
    $region226: #{graph_transformer_forward.1} parent=1 // pred_check
      _
    $region227: #{graph_transformer_forward.1} parent=1 // pred_check_branch
      %498 = sbr.rel (0) target = $region229
    $region228: #{graph_transformer_forward.1} parent=1 // pred_region
      %500 = dma.done [#allocation37], 16
    $region229: #{graph_transformer_forward.1} parent=1 // pred_fallthru
      _
    // Predicated region
    $region230: #{graph_transformer_forward.1} parent=1 // pred_check
      _
    $region231: #{graph_transformer_forward.1} parent=1 // pred_check_branch
      %502 = sbr.rel (0) target = $region233
    $region232: #{graph_transformer_forward.1} parent=1 // pred_region
      %504 = dma.done [#allocation37], 2048
    $region233: #{graph_transformer_forward.1} parent=1 // pred_fallthru
      _
    // Predicated region
    $region234: #{graph_transformer_forward.1} parent=1 // pred_check
      _
    $region235: #{graph_transformer_forward.1} parent=1 // pred_check_branch
      %506 = sbr.rel (0) target = $region237
    $region236: #{graph_transformer_forward.1} parent=1 // pred_region
      %508 = dma.done [#allocation40], 1024
    $region237: #{graph_transformer_forward.1} parent=1 // pred_fallthru
      _
    // Predicated region
    $region238: #{graph_transformer_forward.1} parent=1 // pred_check
      _
    $region239: #{graph_transformer_forward.1} parent=1 // pred_check_branch
      %510 = sbr.rel (0) target = $region241
    $region240: #{graph_transformer_forward.1} parent=1 // pred_region
      %512 = dma.done [#allocation40], 16
    $region241: #{graph_transformer_forward.1} parent=1 // pred_fallthru
      _
    %v514 = vld [vmem:[%s1] sm:$0xff]
    %v515 = vld [vmem:[%s1 + $0x8] sm:$0xff]
    %v516 = vld [vmem:[%s1 + $0x10] sm:$0xff]
    %v517 = vld [vmem:[%s1 + $0x18] sm:$0xff]
    %v518 = vld [vmem:[#allocation3] sm:$0xf]
    %v519 = vld [vmem:[#allocation3 + $0x4] sm:$0xf]
    %v520 = vld [vmem:[#allocation3 + $0x8] sm:$0xf]
    %v521 = vld [vmem:[#allocation3 + $0xc] sm:$0xf]
    %v522 = vld [vmem:[#allocation3 + $0x10] sm:$0xf]
    %v523 = vld [vmem:[#allocation3 + $0x14] sm:$0xf]
    %v524 = vld [vmem:[#allocation3 + $0x18] sm:$0xf]
    %v525 = vld [vmem:[#allocation3 + $0x1c] sm:$0xf]
    %v526 = vld [vmem:[#allocation3 + $0x20] sm:$0xf]
    %v527 = vld [vmem:[#allocation3 + $0x24] sm:$0xf]
    %v528 = vld [vmem:[#allocation3 + $0x28] sm:$0xf]
    %v529 = vld [vmem:[#allocation3 + $0x2c] sm:$0xf]
    %v530 = vld [vmem:[#allocation3 + $0x30] sm:$0xf]
    %v531 = vld [vmem:[#allocation3 + $0x34] sm:$0xf]
    %v532 = vld [vmem:[#allocation3 + $0x38] sm:$0xf]
    %v533 = vld [vmem:[#allocation3 + $0x3c] sm:$0xf]
    %v534 = vld [vmem:[#allocation3 + $0x40] sm:$0xf]
    %v535 = vld [vmem:[#allocation3 + $0x44] sm:$0xf]
    %v536 = vld [vmem:[#allocation3 + $0x48] sm:$0xf]
    %v537 = vld [vmem:[#allocation3 + $0x4c] sm:$0xf]
    %v538 = vld [vmem:[#allocation3 + $0x50] sm:$0xf]
    %v539 = vld [vmem:[#allocation3 + $0x54] sm:$0xf]
    %v540 = vld [vmem:[#allocation3 + $0x58] sm:$0xf]
    %v541 = vld [vmem:[#allocation3 + $0x5c] sm:$0xf]
    %v542 = vld [vmem:[#allocation3 + $0x60] sm:$0xf]
    %v543 = vld [vmem:[#allocation3 + $0x64] sm:$0xf]
    %v544 = vld [vmem:[#allocation3 + $0x68] sm:$0xf]
    %v545 = vld [vmem:[#allocation3 + $0x6c] sm:$0xf]
    %v546 = vld [vmem:[#allocation3 + $0x70] sm:$0xf]
    %v547 = vld [vmem:[#allocation3 + $0x74] sm:$0xf]
    %v548 = vld [vmem:[#allocation3 + $0x78] sm:$0xf]
    %v549 = vld [vmem:[#allocation3 + $0x7c] sm:$0xf]
    %v550 = vpack.c.bf16 %v516, %v514
    %v551 = vpack.c.bf16 %v517, %v515
    %v552 = vld [vmem:[#allocation6] sm:$0x1]
    %v554 = vperm.slane %v552, 0
    %v588 = vunpack.c.l.b16 %v518
    %v589 = vunpack.c.l.b16 %v519
    %v590 = vunpack.c.l.b16 %v520
    %v591 = vunpack.c.l.b16 %v521
    %v592 = vunpack.c.l.b16 %v522
    %v593 = vunpack.c.l.b16 %v523
    %v594 = vunpack.c.l.b16 %v524
    %v595 = vunpack.c.l.b16 %v525
    %v596 = vunpack.c.l.b16 %v526
    %v597 = vunpack.c.l.b16 %v527
    %v598 = vunpack.c.l.b16 %v528
    %v599 = vunpack.c.l.b16 %v529
    %v600 = vunpack.c.l.b16 %v530
    %v601 = vunpack.c.l.b16 %v531
    %v602 = vunpack.c.l.b16 %v532
    %v603 = vunpack.c.l.b16 %v533
    %v604 = vunpack.c.l.b16 %v534
    %v605 = vunpack.c.l.b16 %v535
    %v606 = vunpack.c.l.b16 %v536
    %v607 = vunpack.c.l.b16 %v537
    %v608 = vunpack.c.l.b16 %v538
    %v609 = vunpack.c.l.b16 %v539
    %v610 = vunpack.c.l.b16 %v540
    %v611 = vunpack.c.l.b16 %v541
    %v612 = vunpack.c.l.b16 %v542
    %v613 = vunpack.c.l.b16 %v543
    %v614 = vunpack.c.l.b16 %v544
    %v615 = vunpack.c.l.b16 %v545
    %v616 = vunpack.c.l.b16 %v546
    %v617 = vunpack.c.l.b16 %v547
    %v618 = vunpack.c.l.b16 %v548
    %v619 = vunpack.c.l.b16 %v549
    %v620 = vpack.c.b16 %v589, %v588
    %v621 = vpack.c.b16 %v591, %v590
    %v622 = vpack.c.b16 %v593, %v592
    %v623 = vpack.c.b16 %v595, %v594
    %v624 = vpack.c.b16 %v597, %v596
    %v625 = vpack.c.b16 %v599, %v598
    %v626 = vpack.c.b16 %v601, %v600
    %v627 = vpack.c.b16 %v603, %v602
    %v628 = vpack.c.b16 %v605, %v604
    %v629 = vpack.c.b16 %v607, %v606
    %v630 = vpack.c.b16 %v609, %v608
    %v631 = vpack.c.b16 %v611, %v610
    %v632 = vpack.c.b16 %v613, %v612
    %v633 = vpack.c.b16 %v615, %v614
    %v634 = vpack.c.b16 %v617, %v616
    %v635 = vpack.c.b16 %v619, %v618
    %652 = vmatpush.bf16.msra.mxu0 %v627
    %653 = vmatpush.bf16.msra.mxu0 %v626
    %654 = vmatpush.bf16.msra.mxu0 %v625
    %655 = vmatpush.bf16.msra.mxu0 %v624
    %656 = vmatpush.bf16.msra.mxu0 %v623
    %657 = vmatpush.bf16.msra.mxu0 %v622
    %658 = vmatpush.bf16.msra.mxu0 %v621
    %659 = vmatpush.bf16.msra.mxu0 %v620
    %660 = vmatmul.bf16.gmra.mxu0 %v550
    %v661 = vpop.f32.mrf.mxu0
    %v662 = vadd.f32 %v554, %v661
    %v663 = vpop.f32.mrf.mxu0
    %v664 = vadd.f32 %v554, %v663
    %665 = vdwg.mxu0
    %666 = vmatpush.bf16.msra.mxu0 %v635
    %667 = vmatpush.bf16.msra.mxu0 %v634
    %668 = vmatpush.bf16.msra.mxu0 %v633
    %669 = vmatpush.bf16.msra.mxu0 %v632
    %670 = vmatpush.bf16.msra.mxu0 %v631
    %671 = vmatpush.bf16.msra.mxu0 %v630
    %672 = vmatpush.bf16.msra.mxu0 %v629
    %673 = vmatpush.bf16.msra.mxu0 %v628
    %674 = vmatmul.bf16.gmra.mxu0 %v551
    %v675 = vpop.f32.mrf.mxu0
    %v676 = vadd.f32 %v662, %v675
    %v677 = vpop.f32.mrf.mxu0
    %v678 = vadd.f32 %v664, %v677
    %679 = vdwg.mxu0
    %v680 = vmax.f32 %v676, 0.0
    %v681 = vmax.f32 %v678, 0.0
    %v682 = vld [vmem:[#allocation8] sm:$0xff]
    %v683 = vld [vmem:[#allocation8 + $0x8] sm:$0xf]
    %v684 = vld [vmem:[#allocation8 + $0xc] sm:$0xff]
    %v685 = vld [vmem:[#allocation8 + $0x14] sm:$0xf]
    %v686 = vld [vmem:[#allocation8 + $0x18] sm:$0xff]
    %v687 = vld [vmem:[#allocation8 + $0x20] sm:$0xf]
    %v688 = vld [vmem:[#allocation8 + $0x24] sm:$0xff]
    %v689 = vld [vmem:[#allocation8 + $0x2c] sm:$0xf]
    %v690 = vld [vmem:[#allocation8 + $0x30] sm:$0xff]
    %v691 = vld [vmem:[#allocation8 + $0x38] sm:$0xf]
    %v692 = vld [vmem:[#allocation8 + $0x3c] sm:$0xff]
    %v693 = vld [vmem:[#allocation8 + $0x44] sm:$0xf]
    %v694 = vld [vmem:[#allocation8 + $0x48] sm:$0xff]
    %v695 = vld [vmem:[#allocation8 + $0x50] sm:$0xf]
    %v696 = vld [vmem:[#allocation8 + $0x54] sm:$0xff]
    %v697 = vld [vmem:[#allocation8 + $0x5c] sm:$0xf]
    %v698 = vld [vmem:[#allocation8 + $0x60] sm:$0xff]
    %v699 = vld [vmem:[#allocation8 + $0x68] sm:$0xf]
    %v700 = vld [vmem:[#allocation8 + $0x6c] sm:$0xff]
    %v701 = vld [vmem:[#allocation8 + $0x74] sm:$0xf]
    %v702 = vld [vmem:[#allocation8 + $0x78] sm:$0xff]
    %v703 = vld [vmem:[#allocation8 + $0x80] sm:$0xf]
    %v704 = vld [vmem:[#allocation8 + $0x84] sm:$0xff]
    %v705 = vld [vmem:[#allocation8 + $0x8c] sm:$0xf]
    %v706 = vld [vmem:[#allocation8 + $0x90] sm:$0xff]
    %v707 = vld [vmem:[#allocation8 + $0x98] sm:$0xf]
    %v708 = vld [vmem:[#allocation8 + $0x9c] sm:$0xff]
    %v709 = vld [vmem:[#allocation8 + $0xa4] sm:$0xf]
    %v710 = vld [vmem:[#allocation8 + $0xa8] sm:$0xff]
    %v711 = vld [vmem:[#allocation8 + $0xb0] sm:$0xf]
    %v712 = vld [vmem:[#allocation8 + $0xb4] sm:$0xff]
    %v713 = vld [vmem:[#allocation8 + $0xbc] sm:$0xf]
    %v714 = vpack.c.bf16 %v681, %v680
    %v715 = vld [vmem:[%s9] sm:$0x7]
    %v717 = vperm.slane %v715, 0
    %v718 = vperm.slane %v715, 1
    %v719 = vperm.slane %v715, 2
    %v755 = vunpack.c.l.b16 %v682
    %v756 = vunpack.c.h.b16 %v682
    %v757 = vunpack.c.l.b16 %v683
    %v758 = vunpack.c.l.b16 %v684
    %v759 = vunpack.c.h.b16 %v684
    %v760 = vunpack.c.l.b16 %v685
    %v761 = vunpack.c.l.b16 %v686
    %v762 = vunpack.c.h.b16 %v686
    %v763 = vunpack.c.l.b16 %v687
    %v764 = vunpack.c.l.b16 %v688
    %v765 = vunpack.c.h.b16 %v688
    %v766 = vunpack.c.l.b16 %v689
    %v767 = vunpack.c.l.b16 %v690
    %v768 = vunpack.c.h.b16 %v690
    %v769 = vunpack.c.l.b16 %v691
    %v770 = vunpack.c.l.b16 %v692
    %v771 = vunpack.c.h.b16 %v692
    %v772 = vunpack.c.l.b16 %v693
    %v773 = vunpack.c.l.b16 %v694
    %v774 = vunpack.c.h.b16 %v694
    %v775 = vunpack.c.l.b16 %v695
    %v776 = vunpack.c.l.b16 %v696
    %v777 = vunpack.c.h.b16 %v696
    %v778 = vunpack.c.l.b16 %v697
    %v779 = vunpack.c.l.b16 %v698
    %v780 = vunpack.c.h.b16 %v698
    %v781 = vunpack.c.l.b16 %v699
    %v782 = vunpack.c.l.b16 %v700
    %v783 = vunpack.c.h.b16 %v700
    %v784 = vunpack.c.l.b16 %v701
    %v785 = vunpack.c.l.b16 %v702
    %v786 = vunpack.c.h.b16 %v702
    %v787 = vunpack.c.l.b16 %v703
    %v788 = vunpack.c.l.b16 %v704
    %v789 = vunpack.c.h.b16 %v704
    %v790 = vunpack.c.l.b16 %v705
    %v791 = vunpack.c.l.b16 %v706
    %v792 = vunpack.c.h.b16 %v706
    %v793 = vunpack.c.l.b16 %v707
    %v794 = vunpack.c.l.b16 %v708
    %v795 = vunpack.c.h.b16 %v708
    %v796 = vunpack.c.l.b16 %v709
    %v797 = vunpack.c.l.b16 %v710
    %v798 = vunpack.c.h.b16 %v710
    %v799 = vunpack.c.l.b16 %v711
    %v800 = vunpack.c.l.b16 %v712
    %v801 = vunpack.c.h.b16 %v712
    %v802 = vunpack.c.l.b16 %v713
    %v803 = vpack.c.b16 %v758, %v755
    %v804 = vpack.c.b16 %v759, %v756
    %v805 = vpack.c.b16 %v760, %v757
    %v806 = vpack.c.b16 %v764, %v761
    %v807 = vpack.c.b16 %v765, %v762
    %v808 = vpack.c.b16 %v766, %v763
    %v809 = vpack.c.b16 %v770, %v767
    %v810 = vpack.c.b16 %v771, %v768
    %v811 = vpack.c.b16 %v772, %v769
    %v812 = vpack.c.b16 %v776, %v773
    %v813 = vpack.c.b16 %v777, %v774
    %v814 = vpack.c.b16 %v778, %v775
    %v815 = vpack.c.b16 %v782, %v779
    %v816 = vpack.c.b16 %v783, %v780
    %v817 = vpack.c.b16 %v784, %v781
    %v818 = vpack.c.b16 %v788, %v785
    %v819 = vpack.c.b16 %v789, %v786
    %v820 = vpack.c.b16 %v790, %v787
    %v821 = vpack.c.b16 %v794, %v791
    %v822 = vpack.c.b16 %v795, %v792
    %v823 = vpack.c.b16 %v796, %v793
    %v824 = vpack.c.b16 %v800, %v797
    %v825 = vpack.c.b16 %v801, %v798
    %v826 = vpack.c.b16 %v802, %v799
    %851 = vmatpush.bf16.msra.mxu0 %v824
    %852 = vmatpush.bf16.msra.mxu0 %v821
    %853 = vmatpush.bf16.msra.mxu0 %v818
    %854 = vmatpush.bf16.msra.mxu0 %v815
    %855 = vmatpush.bf16.msra.mxu0 %v812
    %856 = vmatpush.bf16.msra.mxu0 %v809
    %857 = vmatpush.bf16.msra.mxu0 %v806
    %858 = vmatpush.bf16.msra.mxu0 %v803
    %859 = vmatmul.bf16.gmra.mxu0 %v714
    %v860 = vpop.f32.mrf.mxu0
    %v861 = vadd.f32 %v717, %v860
    %v862 = vpop.f32.mrf.mxu0
    %v863 = vadd.f32 %v717, %v862
    %864 = vdwg.mxu0
    %865 = vmatpush.bf16.msra.mxu0 %v825
    %866 = vmatpush.bf16.msra.mxu0 %v822
    %867 = vmatpush.bf16.msra.mxu0 %v819
    %868 = vmatpush.bf16.msra.mxu0 %v816
    %869 = vmatpush.bf16.msra.mxu0 %v813
    %870 = vmatpush.bf16.msra.mxu0 %v810
    %871 = vmatpush.bf16.msra.mxu0 %v807
    %872 = vmatpush.bf16.msra.mxu0 %v804
    %873 = vmatmul.bf16.gmra.mxu0 %v714
    %v874 = vpop.f32.mrf.mxu0
    %v875 = vadd.f32 %v718, %v874
    %v876 = vpop.f32.mrf.mxu0
    %v877 = vadd.f32 %v718, %v876
    %878 = vdwg.mxu0
    %879 = vmatpush.bf16.msra.mxu0 %v826
    %880 = vmatpush.bf16.msra.mxu0 %v823
    %881 = vmatpush.bf16.msra.mxu0 %v820
    %882 = vmatpush.bf16.msra.mxu0 %v817
    %883 = vmatpush.bf16.msra.mxu0 %v814
    %884 = vmatpush.bf16.msra.mxu0 %v811
    %885 = vmatpush.bf16.msra.mxu0 %v808
    %886 = vmatpush.bf16.msra.mxu0 %v805
    %887 = vmatmul.bf16.gmra.mxu0 %v714
    %v888 = vpop.f32.mrf.mxu0
    %v889 = vadd.f32 %v719, %v888
    %v890 = vpop.f32.mrf.mxu0
    %v891 = vadd.f32 %v719, %v890
    %892 = vdwg.mxu0
    %v893 = vmul.f32 %v861, %v875
    %vm894 = vcmask 523264
    %v895 = vsel %vm894, %v893, 0.0
    %896 = vadd.xlane.f32.xlu0 %v895
    %v897 = vpop.xlane.xlu0 %896
    %v898 = vmul.f32 %v897, 0.125
    %v899 = vmul.f32 %v861, %v877
    %v900 = vsel %vm894, %v899, 0.0
    %901 = vadd.xlane.f32.xlu0 %v900
    %v902 = vpop.xlane.xlu0 %901
    %v903 = vmul.f32 %v902, 0.125
    %v904 = vmax.f32 %v898, %v903
    %v905 = vsub.f32 %v898, %v904
    %v906 = vmul.f32 %v905, 1.442695
    %v907 = vpow.pop %v906
    %v908 = vsub.f32 %v903, %v904
    %v909 = vmul.f32 %v908, 1.442695
    %v910 = vpow.pop %v909
    %v911 = vadd.f32 %v907, %v910
    %v912 = vrcp.pop %v911
    %v913 = vmul.f32 %v907, %v912
    %v914 = vmul.f32 %v913, %v889
    %v915 = vmul.f32 %v910, %v912
    %v916 = vmul.f32 %v915, %v891
    %v917 = vadd.f32 %v914, %v916
    %918 = vst.msk [vmem:[#allocation2] sm:$0xff] %vm894, %v917
    %v919 = vmul.f32 %v863, %v875
    %v920 = vsel %vm894, %v919, 0.0
    %921 = vadd.xlane.f32.xlu0 %v920
    %v922 = vpop.xlane.xlu0 %921
    %v923 = vmul.f32 %v922, 0.125
    %v924 = vmul.f32 %v863, %v877
    %v925 = vsel %vm894, %v924, 0.0
    %926 = vadd.xlane.f32.xlu0 %v925
    %v927 = vpop.xlane.xlu0 %926
    %v928 = vmul.f32 %v927, 0.125
    %v929 = vmax.f32 %v923, %v928
    %v930 = vsub.f32 %v923, %v929
    %v931 = vmul.f32 %v930, 1.442695
    %v932 = vpow.pop %v931
    %v933 = vsub.f32 %v928, %v929
    %v934 = vmul.f32 %v933, 1.442695
    %v935 = vpow.pop %v934
    %v936 = vadd.f32 %v932, %v935
    %v937 = vrcp.pop %v936
    %v938 = vmul.f32 %v932, %v937
    %v939 = vmul.f32 %v938, %v889
    %v940 = vmul.f32 %v935, %v937
    %v941 = vmul.f32 %v940, %v891
    %v942 = vadd.f32 %v939, %v941
    %943 = vst.msk [vmem:[#allocation2 + $0x8] sm:$0xff] %vm894, %v942
    %945 = vrot.lane.b32.xlu0 %v893, 64
    %v946 = vpop.permute.xlu0 %945
    %v948 = vsel %vm894, %v946, 0.0
    %949 = vadd.xlane.f32.xlu0 %v948
    %v950 = vpop.xlane.xlu0 %949
    %v951 = vmul.f32 %v950, 0.125
    %953 = vrot.lane.b32.xlu0 %v899, 64
    %v954 = vpop.permute.xlu0 %953
    %v956 = vsel %vm894, %v954, 0.0
    %957 = vadd.xlane.f32.xlu0 %v956
    %v958 = vpop.xlane.xlu0 %957
    %v959 = vmul.f32 %v958, 0.125
    %v960 = vmax.f32 %v951, %v959
    %v961 = vsub.f32 %v951, %v960
    %v962 = vmul.f32 %v961, 1.442695
    %v963 = vpow.pop %v962
    %v964 = vsub.f32 %v959, %v960
    %v965 = vmul.f32 %v964, 1.442695
    %v966 = vpow.pop %v965
    %v967 = vadd.f32 %v963, %v966
    %v968 = vrcp.pop %v967
    %v969 = vmul.f32 %v963, %v968
    %v970 = vmul.f32 %v969, %v889
    %v971 = vmul.f32 %v966, %v968
    %v972 = vmul.f32 %v971, %v891
    %v973 = vadd.f32 %v970, %v972
    %vm974 = vcmask 1048064
    %975 = vst.msk [vmem:[#allocation2] sm:$0xff] %vm974, %v973
    %977 = vrot.lane.b32.xlu0 %v919, 64
    %v978 = vpop.permute.xlu0 %977
    %v980 = vsel %vm894, %v978, 0.0
    %981 = vadd.xlane.f32.xlu0 %v980
    %v982 = vpop.xlane.xlu0 %981
    %v983 = vmul.f32 %v982, 0.125
    %985 = vrot.lane.b32.xlu0 %v924, 64
    %v986 = vpop.permute.xlu0 %985
    %v988 = vsel %vm894, %v986, 0.0
    %989 = vadd.xlane.f32.xlu0 %v988
    %v990 = vpop.xlane.xlu0 %989
    %v991 = vmul.f32 %v990, 0.125
    %v992 = vmax.f32 %v983, %v991
    %v993 = vsub.f32 %v983, %v992
    %v994 = vmul.f32 %v993, 1.442695
    %v995 = vpow.pop %v994
    %v996 = vsub.f32 %v991, %v992
    %v997 = vmul.f32 %v996, 1.442695
    %v998 = vpow.pop %v997
    %v999 = vadd.f32 %v995, %v998
    %v1000 = vrcp.pop %v999
    %v1001 = vmul.f32 %v995, %v1000
    %v1002 = vmul.f32 %v1001, %v889
    %v1003 = vmul.f32 %v998, %v1000
    %v1004 = vmul.f32 %v1003, %v891
    %v1005 = vadd.f32 %v1002, %v1004
    %1006 = vst.msk [vmem:[#allocation2 + $0x8] sm:$0xff] %vm974, %v1005
    %v1007 = vld [vmem:[#allocation2] sm:$0xff]
    %v1008 = vld [vmem:[#allocation2 + $0x8] sm:$0xff]
    %v1009 = vld [vmem:[%s11] sm:$0xf]
    %v1010 = vld [vmem:[%s11 + $0x4] sm:$0xf]
    %v1011 = vld [vmem:[%s11 + $0x8] sm:$0xf]
    %v1012 = vld [vmem:[%s11 + $0xc] sm:$0xf]
    %v1013 = vld [vmem:[%s11 + $0x10] sm:$0xf]
    %v1014 = vld [vmem:[%s11 + $0x14] sm:$0xf]
    %v1015 = vld [vmem:[%s11 + $0x18] sm:$0xf]
    %v1016 = vld [vmem:[%s11 + $0x1c] sm:$0xf]
    %v1017 = vld [vmem:[%s11 + $0x20] sm:$0xf]
    %v1018 = vld [vmem:[%s11 + $0x24] sm:$0xf]
    %v1019 = vld [vmem:[%s11 + $0x28] sm:$0xf]
    %v1020 = vld [vmem:[%s11 + $0x2c] sm:$0xf]
    %v1021 = vld [vmem:[%s11 + $0x30] sm:$0xf]
    %v1022 = vld [vmem:[%s11 + $0x34] sm:$0xf]
    %v1023 = vld [vmem:[%s11 + $0x38] sm:$0xf]
    %v1024 = vld [vmem:[%s11 + $0x3c] sm:$0xf]
    %v1025 = vpack.c.bf16 %v1008, %v1007
    %v1026 = vld [vmem:[#allocation9] sm:$0x1]
    %v1028 = vperm.slane %v1026, 0
    %v1046 = vunpack.c.l.b16 %v1009
    %v1047 = vunpack.c.l.b16 %v1010
    %v1048 = vunpack.c.l.b16 %v1011
    %v1049 = vunpack.c.l.b16 %v1012
    %v1050 = vunpack.c.l.b16 %v1013
    %v1051 = vunpack.c.l.b16 %v1014
    %v1052 = vunpack.c.l.b16 %v1015
    %v1053 = vunpack.c.l.b16 %v1016
    %v1054 = vunpack.c.l.b16 %v1017
    %v1055 = vunpack.c.l.b16 %v1018
    %v1056 = vunpack.c.l.b16 %v1019
    %v1057 = vunpack.c.l.b16 %v1020
    %v1058 = vunpack.c.l.b16 %v1021
    %v1059 = vunpack.c.l.b16 %v1022
    %v1060 = vunpack.c.l.b16 %v1023
    %v1061 = vunpack.c.l.b16 %v1024
    %v1062 = vpack.c.b16 %v1047, %v1046
    %v1063 = vpack.c.b16 %v1049, %v1048
    %v1064 = vpack.c.b16 %v1051, %v1050
    %v1065 = vpack.c.b16 %v1053, %v1052
    %v1066 = vpack.c.b16 %v1055, %v1054
    %v1067 = vpack.c.b16 %v1057, %v1056
    %v1068 = vpack.c.b16 %v1059, %v1058
    %v1069 = vpack.c.b16 %v1061, %v1060
    %1078 = vmatpush.bf16.msra.mxu0 %v1069
    %1079 = vmatpush.bf16.msra.mxu0 %v1068
    %1080 = vmatpush.bf16.msra.mxu0 %v1067
    %1081 = vmatpush.bf16.msra.mxu0 %v1066
    %1082 = vmatpush.bf16.msra.mxu0 %v1065
    %1083 = vmatpush.bf16.msra.mxu0 %v1064
    %1084 = vmatpush.bf16.msra.mxu0 %v1063
    %1085 = vmatpush.bf16.msra.mxu0 %v1062
    %1086 = vmatmul.bf16.gmra.mxu0 %v1025
    %v1087 = vpop.f32.mrf.mxu0
    %v1088 = vadd.f32 %v1028, %v1087
    %v1089 = vpop.f32.mrf.mxu0
    %v1090 = vadd.f32 %v1028, %v1089
    %1091 = vdwg.mxu0
    %v1092 = vadd.f32 %v680, %v1088
    %v1093 = vadd.f32 %v681, %v1090
    %v1094 = vld [vmem:[#allocation11] sm:$0x1]
    %v1095 = vld [vmem:[#allocation12] sm:$0x1]
    %1096 = vadd.xlane.f32.xlu0 %v1092
    %v1097 = vpop.xlane.xlu0 %1096
    %1098 = vadd.xlane.f32.xlu0 %v1093
    %v1099 = vpop.xlane.xlu0 %1098
    %v1100 = vrcp.pop 128.0
    %v1101 = vmul.f32 128.0, %v1100
    %v1102 = vsub.f32 1.0, %v1101
    %v1103 = vmul.f32 %v1100, %v1102
    %v1104 = vadd.f32 %v1100, %v1103
    %vm1105 = vweird.f32 %v1100
    %v1106 = vsel %vm1105, %v1100, %v1104
    %v1107 = vmul.f32 %v1097, %v1106
    %v1108 = vmul.f32 %v1099, %v1106
    %v1109 = vsub.f32 %v1092, %v1107
    %v1110 = vsub.f32 %v1093, %v1108
    %v1111 = vmul.f32 %v1109, %v1109
    %v1112 = vmul.f32 %v1110, %v1110
    %1113 = vadd.xlane.f32.xlu0 %v1111
    %v1114 = vpop.xlane.xlu0 %1113
    %1115 = vadd.xlane.f32.xlu0 %v1112
    %v1116 = vpop.xlane.xlu0 %1115
    %v1117 = vmul.f32 %v1114, %v1106
    %v1118 = vmul.f32 %v1116, %v1106
    %v1119 = vadd.f32 %v1117, 1e-05
    %v1120 = vadd.f32 %v1118, 1e-05
    %v1121 = vrsqrt.pop %v1119
    %v1122 = vmul.f32 %v1121, %v1119
    %v1123 = vmul.f32 %v1122, %v1121
    %v1124 = vmul.f32 0.5, %v1123
    %v1125 = vsub.f32 1.5, %v1124
    %v1126 = vmul.f32 %v1121, %v1125
    %vm1127 = vweird.f32 %v1119
    %vm1128 = vweird.f32 %v1121
    %vm1129 = vmor %vm1127, %vm1128
    %v1130 = vsel %vm1129, %v1121, %v1126
    %v1131 = vrsqrt.pop %v1120
    %v1132 = vmul.f32 %v1131, %v1120
    %v1133 = vmul.f32 %v1132, %v1131
    %v1134 = vmul.f32 0.5, %v1133
    %v1135 = vsub.f32 1.5, %v1134
    %v1136 = vmul.f32 %v1131, %v1135
    %vm1137 = vweird.f32 %v1120
    %vm1138 = vweird.f32 %v1131
    %vm1139 = vmor %vm1137, %vm1138
    %v1140 = vsel %vm1139, %v1131, %v1136
    %v1141 = vmul.f32 %v1109, %v1130
    %v1142 = vmul.f32 %v1110, %v1140
    %v1144 = vperm.slane %v1094, 0
    %v1146 = vmul.f32 %v1141, %v1144
    %v1147 = vmul.f32 %v1142, %v1144
    %v1149 = vperm.slane %v1095, 0
    %v1151 = vadd.f32 %v1146, %v1149
    %v1152 = vadd.f32 %v1147, %v1149
    %v1153 = vld [vmem:[#allocation14] sm:$0xf]
    %v1154 = vld [vmem:[#allocation14 + $0x4] sm:$0xf]
    %v1155 = vld [vmem:[#allocation14 + $0x8] sm:$0xf]
    %v1156 = vld [vmem:[#allocation14 + $0xc] sm:$0xf]
    %v1157 = vld [vmem:[#allocation14 + $0x10] sm:$0xf]
    %v1158 = vld [vmem:[#allocation14 + $0x14] sm:$0xf]
    %v1159 = vld [vmem:[#allocation14 + $0x18] sm:$0xf]
    %v1160 = vld [vmem:[#allocation14 + $0x1c] sm:$0xf]
    %v1161 = vld [vmem:[#allocation14 + $0x20] sm:$0xf]
    %v1162 = vld [vmem:[#allocation14 + $0x24] sm:$0xf]
    %v1163 = vld [vmem:[#allocation14 + $0x28] sm:$0xf]
    %v1164 = vld [vmem:[#allocation14 + $0x2c] sm:$0xf]
    %v1165 = vld [vmem:[#allocation14 + $0x30] sm:$0xf]
    %v1166 = vld [vmem:[#allocation14 + $0x34] sm:$0xf]
    %v1167 = vld [vmem:[#allocation14 + $0x38] sm:$0xf]
    %v1168 = vld [vmem:[#allocation14 + $0x3c] sm:$0xf]
    %v1169 = vpack.c.bf16 %v1152, %v1151
    %v1170 = vld [vmem:[#allocation15] sm:$0x1]
    %v1172 = vperm.slane %v1170, 0
    %v1190 = vunpack.c.l.b16 %v1153
    %v1191 = vunpack.c.l.b16 %v1154
    %v1192 = vunpack.c.l.b16 %v1155
    %v1193 = vunpack.c.l.b16 %v1156
    %v1194 = vunpack.c.l.b16 %v1157
    %v1195 = vunpack.c.l.b16 %v1158
    %v1196 = vunpack.c.l.b16 %v1159
    %v1197 = vunpack.c.l.b16 %v1160
    %v1198 = vunpack.c.l.b16 %v1161
    %v1199 = vunpack.c.l.b16 %v1162
    %v1200 = vunpack.c.l.b16 %v1163
    %v1201 = vunpack.c.l.b16 %v1164
    %v1202 = vunpack.c.l.b16 %v1165
    %v1203 = vunpack.c.l.b16 %v1166
    %v1204 = vunpack.c.l.b16 %v1167
    %v1205 = vunpack.c.l.b16 %v1168
    %v1206 = vpack.c.b16 %v1191, %v1190
    %v1207 = vpack.c.b16 %v1193, %v1192
    %v1208 = vpack.c.b16 %v1195, %v1194
    %v1209 = vpack.c.b16 %v1197, %v1196
    %v1210 = vpack.c.b16 %v1199, %v1198
    %v1211 = vpack.c.b16 %v1201, %v1200
    %v1212 = vpack.c.b16 %v1203, %v1202
    %v1213 = vpack.c.b16 %v1205, %v1204
    %1222 = vmatpush.bf16.msra.mxu0 %v1213
    %1223 = vmatpush.bf16.msra.mxu0 %v1212
    %1224 = vmatpush.bf16.msra.mxu0 %v1211
    %1225 = vmatpush.bf16.msra.mxu0 %v1210
    %1226 = vmatpush.bf16.msra.mxu0 %v1209
    %1227 = vmatpush.bf16.msra.mxu0 %v1208
    %1228 = vmatpush.bf16.msra.mxu0 %v1207
    %1229 = vmatpush.bf16.msra.mxu0 %v1206
    %1230 = vmatmul.bf16.gmra.mxu0 %v1169
    %v1231 = vpop.f32.mrf.mxu0
    %v1232 = vadd.f32 %v1172, %v1231
    %v1233 = vpop.f32.mrf.mxu0
    %v1234 = vadd.f32 %v1172, %v1233
    %1235 = vdwg.mxu0
    %v1236 = vmax.f32 %v1232, 0.0
    %v1237 = vmax.f32 %v1234, 0.0
    %v1238 = vld [vmem:[#allocation17] sm:$0xf]
    %v1239 = vld [vmem:[#allocation17 + $0x4] sm:$0xf]
    %v1240 = vld [vmem:[#allocation17 + $0x8] sm:$0xf]
    %v1241 = vld [vmem:[#allocation17 + $0xc] sm:$0xf]
    %v1242 = vld [vmem:[#allocation17 + $0x10] sm:$0xf]
    %v1243 = vld [vmem:[#allocation17 + $0x14] sm:$0xf]
    %v1244 = vld [vmem:[#allocation17 + $0x18] sm:$0xf]
    %v1245 = vld [vmem:[#allocation17 + $0x1c] sm:$0xf]
    %v1246 = vld [vmem:[#allocation17 + $0x20] sm:$0xf]
    %v1247 = vld [vmem:[#allocation17 + $0x24] sm:$0xf]
    %v1248 = vld [vmem:[#allocation17 + $0x28] sm:$0xf]
    %v1249 = vld [vmem:[#allocation17 + $0x2c] sm:$0xf]
    %v1250 = vld [vmem:[#allocation17 + $0x30] sm:$0xf]
    %v1251 = vld [vmem:[#allocation17 + $0x34] sm:$0xf]
    %v1252 = vld [vmem:[#allocation17 + $0x38] sm:$0xf]
    %v1253 = vld [vmem:[#allocation17 + $0x3c] sm:$0xf]
    %v1254 = vpack.c.bf16 %v1237, %v1236
    %v1255 = vld [vmem:[#allocation18] sm:$0x1]
    %v1257 = vperm.slane %v1255, 0
    %v1275 = vunpack.c.l.b16 %v1238
    %v1276 = vunpack.c.l.b16 %v1239
    %v1277 = vunpack.c.l.b16 %v1240
    %v1278 = vunpack.c.l.b16 %v1241
    %v1279 = vunpack.c.l.b16 %v1242
    %v1280 = vunpack.c.l.b16 %v1243
    %v1281 = vunpack.c.l.b16 %v1244
    %v1282 = vunpack.c.l.b16 %v1245
    %v1283 = vunpack.c.l.b16 %v1246
    %v1284 = vunpack.c.l.b16 %v1247
    %v1285 = vunpack.c.l.b16 %v1248
    %v1286 = vunpack.c.l.b16 %v1249
    %v1287 = vunpack.c.l.b16 %v1250
    %v1288 = vunpack.c.l.b16 %v1251
    %v1289 = vunpack.c.l.b16 %v1252
    %v1290 = vunpack.c.l.b16 %v1253
    %v1291 = vpack.c.b16 %v1276, %v1275
    %v1292 = vpack.c.b16 %v1278, %v1277
    %v1293 = vpack.c.b16 %v1280, %v1279
    %v1294 = vpack.c.b16 %v1282, %v1281
    %v1295 = vpack.c.b16 %v1284, %v1283
    %v1296 = vpack.c.b16 %v1286, %v1285
    %v1297 = vpack.c.b16 %v1288, %v1287
    %v1298 = vpack.c.b16 %v1290, %v1289
    %1307 = vmatpush.bf16.msra.mxu0 %v1298
    %1308 = vmatpush.bf16.msra.mxu0 %v1297
    %1309 = vmatpush.bf16.msra.mxu0 %v1296
    %1310 = vmatpush.bf16.msra.mxu0 %v1295
    %1311 = vmatpush.bf16.msra.mxu0 %v1294
    %1312 = vmatpush.bf16.msra.mxu0 %v1293
    %1313 = vmatpush.bf16.msra.mxu0 %v1292
    %1314 = vmatpush.bf16.msra.mxu0 %v1291
    %1315 = vmatmul.bf16.gmra.mxu0 %v1254
    %v1316 = vpop.f32.mrf.mxu0
    %v1317 = vadd.f32 %v1257, %v1316
    %v1318 = vpop.f32.mrf.mxu0
    %v1319 = vadd.f32 %v1257, %v1318
    %1320 = vdwg.mxu0
    %v1321 = vadd.f32 %v1151, %v1317
    %v1322 = vadd.f32 %v1152, %v1319
    %v1323 = vld [vmem:[#allocation20] sm:$0x1]
    %v1324 = vld [vmem:[#allocation21] sm:$0x1]
    %1325 = vadd.xlane.f32.xlu0 %v1321
    %v1326 = vpop.xlane.xlu0 %1325
    %1327 = vadd.xlane.f32.xlu0 %v1322
    %v1328 = vpop.xlane.xlu0 %1327
    %v1329 = vmul.f32 %v1326, %v1106
    %v1330 = vmul.f32 %v1328, %v1106
    %v1331 = vsub.f32 %v1321, %v1329
    %v1332 = vsub.f32 %v1322, %v1330
    %v1333 = vmul.f32 %v1331, %v1331
    %v1334 = vmul.f32 %v1332, %v1332
    %1335 = vadd.xlane.f32.xlu0 %v1333
    %v1336 = vpop.xlane.xlu0 %1335
    %1337 = vadd.xlane.f32.xlu0 %v1334
    %v1338 = vpop.xlane.xlu0 %1337
    %v1339 = vmul.f32 %v1336, %v1106
    %v1340 = vmul.f32 %v1338, %v1106
    %v1341 = vadd.f32 %v1339, 1e-05
    %v1342 = vadd.f32 %v1340, 1e-05
    %v1343 = vrsqrt.pop %v1341
    %v1344 = vmul.f32 %v1343, %v1341
    %v1345 = vmul.f32 %v1344, %v1343
    %v1346 = vmul.f32 0.5, %v1345
    %v1347 = vsub.f32 1.5, %v1346
    %v1348 = vmul.f32 %v1343, %v1347
    %vm1349 = vweird.f32 %v1341
    %vm1350 = vweird.f32 %v1343
    %vm1351 = vmor %vm1349, %vm1350
    %v1352 = vsel %vm1351, %v1343, %v1348
    %v1353 = vrsqrt.pop %v1342
    %v1354 = vmul.f32 %v1353, %v1342
    %v1355 = vmul.f32 %v1354, %v1353
    %v1356 = vmul.f32 0.5, %v1355
    %v1357 = vsub.f32 1.5, %v1356
    %v1358 = vmul.f32 %v1353, %v1357
    %vm1359 = vweird.f32 %v1342
    %vm1360 = vweird.f32 %v1353
    %vm1361 = vmor %vm1359, %vm1360
    %v1362 = vsel %vm1361, %v1353, %v1358
    %v1363 = vmul.f32 %v1331, %v1352
    %v1364 = vmul.f32 %v1332, %v1362
    %v1366 = vperm.slane %v1323, 0
    %v1368 = vmul.f32 %v1363, %v1366
    %v1369 = vmul.f32 %v1364, %v1366
    %v1371 = vperm.slane %v1324, 0
    %v1373 = vadd.f32 %v1368, %v1371
    %v1374 = vadd.f32 %v1369, %v1371
    %v1375 = vld [vmem:[#allocation23] sm:$0xff]
    %v1376 = vld [vmem:[#allocation23 + $0x8] sm:$0xf]
    %v1377 = vld [vmem:[#allocation23 + $0xc] sm:$0xff]
    %v1378 = vld [vmem:[#allocation23 + $0x14] sm:$0xf]
    %v1379 = vld [vmem:[#allocation23 + $0x18] sm:$0xff]
    %v1380 = vld [vmem:[#allocation23 + $0x20] sm:$0xf]
    %v1381 = vld [vmem:[#allocation23 + $0x24] sm:$0xff]
    %v1382 = vld [vmem:[#allocation23 + $0x2c] sm:$0xf]
    %v1383 = vld [vmem:[#allocation23 + $0x30] sm:$0xff]
    %v1384 = vld [vmem:[#allocation23 + $0x38] sm:$0xf]
    %v1385 = vld [vmem:[#allocation23 + $0x3c] sm:$0xff]
    %v1386 = vld [vmem:[#allocation23 + $0x44] sm:$0xf]
    %v1387 = vld [vmem:[#allocation23 + $0x48] sm:$0xff]
    %v1388 = vld [vmem:[#allocation23 + $0x50] sm:$0xf]
    %v1389 = vld [vmem:[#allocation23 + $0x54] sm:$0xff]
    %v1390 = vld [vmem:[#allocation23 + $0x5c] sm:$0xf]
    %v1391 = vld [vmem:[#allocation23 + $0x60] sm:$0xff]
    %v1392 = vld [vmem:[#allocation23 + $0x68] sm:$0xf]
    %v1393 = vld [vmem:[#allocation23 + $0x6c] sm:$0xff]
    %v1394 = vld [vmem:[#allocation23 + $0x74] sm:$0xf]
    %v1395 = vld [vmem:[#allocation23 + $0x78] sm:$0xff]
    %v1396 = vld [vmem:[#allocation23 + $0x80] sm:$0xf]
    %v1397 = vld [vmem:[#allocation23 + $0x84] sm:$0xff]
    %v1398 = vld [vmem:[#allocation23 + $0x8c] sm:$0xf]
    %v1399 = vld [vmem:[#allocation23 + $0x90] sm:$0xff]
    %v1400 = vld [vmem:[#allocation23 + $0x98] sm:$0xf]
    %v1401 = vld [vmem:[#allocation23 + $0x9c] sm:$0xff]
    %v1402 = vld [vmem:[#allocation23 + $0xa4] sm:$0xf]
    %v1403 = vld [vmem:[#allocation23 + $0xa8] sm:$0xff]
    %v1404 = vld [vmem:[#allocation23 + $0xb0] sm:$0xf]
    %v1405 = vld [vmem:[#allocation23 + $0xb4] sm:$0xff]
    %v1406 = vld [vmem:[#allocation23 + $0xbc] sm:$0xf]
    %v1407 = vpack.c.bf16 %v1374, %v1373
    %v1408 = vld [vmem:[#allocation24] sm:$0x7]
    %v1410 = vperm.slane %v1408, 0
    %v1411 = vperm.slane %v1408, 1
    %v1412 = vperm.slane %v1408, 2
    %v1448 = vunpack.c.l.b16 %v1375
    %v1449 = vunpack.c.h.b16 %v1375
    %v1450 = vunpack.c.l.b16 %v1376
    %v1451 = vunpack.c.l.b16 %v1377
    %v1452 = vunpack.c.h.b16 %v1377
    %v1453 = vunpack.c.l.b16 %v1378
    %v1454 = vunpack.c.l.b16 %v1379
    %v1455 = vunpack.c.h.b16 %v1379
    %v1456 = vunpack.c.l.b16 %v1380
    %v1457 = vunpack.c.l.b16 %v1381
    %v1458 = vunpack.c.h.b16 %v1381
    %v1459 = vunpack.c.l.b16 %v1382
    %v1460 = vunpack.c.l.b16 %v1383
    %v1461 = vunpack.c.h.b16 %v1383
    %v1462 = vunpack.c.l.b16 %v1384
    %v1463 = vunpack.c.l.b16 %v1385
    %v1464 = vunpack.c.h.b16 %v1385
    %v1465 = vunpack.c.l.b16 %v1386
    %v1466 = vunpack.c.l.b16 %v1387
    %v1467 = vunpack.c.h.b16 %v1387
    %v1468 = vunpack.c.l.b16 %v1388
    %v1469 = vunpack.c.l.b16 %v1389
    %v1470 = vunpack.c.h.b16 %v1389
    %v1471 = vunpack.c.l.b16 %v1390
    %v1472 = vunpack.c.l.b16 %v1391
    %v1473 = vunpack.c.h.b16 %v1391
    %v1474 = vunpack.c.l.b16 %v1392
    %v1475 = vunpack.c.l.b16 %v1393
    %v1476 = vunpack.c.h.b16 %v1393
    %v1477 = vunpack.c.l.b16 %v1394
    %v1478 = vunpack.c.l.b16 %v1395
    %v1479 = vunpack.c.h.b16 %v1395
    %v1480 = vunpack.c.l.b16 %v1396
    %v1481 = vunpack.c.l.b16 %v1397
    %v1482 = vunpack.c.h.b16 %v1397
    %v1483 = vunpack.c.l.b16 %v1398
    %v1484 = vunpack.c.l.b16 %v1399
    %v1485 = vunpack.c.h.b16 %v1399
    %v1486 = vunpack.c.l.b16 %v1400
    %v1487 = vunpack.c.l.b16 %v1401
    %v1488 = vunpack.c.h.b16 %v1401
    %v1489 = vunpack.c.l.b16 %v1402
    %v1490 = vunpack.c.l.b16 %v1403
    %v1491 = vunpack.c.h.b16 %v1403
    %v1492 = vunpack.c.l.b16 %v1404
    %v1493 = vunpack.c.l.b16 %v1405
    %v1494 = vunpack.c.h.b16 %v1405
    %v1495 = vunpack.c.l.b16 %v1406
    %v1496 = vpack.c.b16 %v1451, %v1448
    %v1497 = vpack.c.b16 %v1452, %v1449
    %v1498 = vpack.c.b16 %v1453, %v1450
    %v1499 = vpack.c.b16 %v1457, %v1454
    %v1500 = vpack.c.b16 %v1458, %v1455
    %v1501 = vpack.c.b16 %v1459, %v1456
    %v1502 = vpack.c.b16 %v1463, %v1460
    %v1503 = vpack.c.b16 %v1464, %v1461
    %v1504 = vpack.c.b16 %v1465, %v1462
    %v1505 = vpack.c.b16 %v1469, %v1466
    %v1506 = vpack.c.b16 %v1470, %v1467
    %v1507 = vpack.c.b16 %v1471, %v1468
    %v1508 = vpack.c.b16 %v1475, %v1472
    %v1509 = vpack.c.b16 %v1476, %v1473
    %v1510 = vpack.c.b16 %v1477, %v1474
    %v1511 = vpack.c.b16 %v1481, %v1478
    %v1512 = vpack.c.b16 %v1482, %v1479
    %v1513 = vpack.c.b16 %v1483, %v1480
    %v1514 = vpack.c.b16 %v1487, %v1484
    %v1515 = vpack.c.b16 %v1488, %v1485
    %v1516 = vpack.c.b16 %v1489, %v1486
    %v1517 = vpack.c.b16 %v1493, %v1490
    %v1518 = vpack.c.b16 %v1494, %v1491
    %v1519 = vpack.c.b16 %v1495, %v1492
    %1544 = vmatpush.bf16.msra.mxu0 %v1517
    %1545 = vmatpush.bf16.msra.mxu0 %v1514
    %1546 = vmatpush.bf16.msra.mxu0 %v1511
    %1547 = vmatpush.bf16.msra.mxu0 %v1508
    %1548 = vmatpush.bf16.msra.mxu0 %v1505
    %1549 = vmatpush.bf16.msra.mxu0 %v1502
    %1550 = vmatpush.bf16.msra.mxu0 %v1499
    %1551 = vmatpush.bf16.msra.mxu0 %v1496
    %1552 = vmatmul.bf16.gmra.mxu0 %v1407
    %v1553 = vpop.f32.mrf.mxu0
    %v1554 = vadd.f32 %v1410, %v1553
    %v1555 = vpop.f32.mrf.mxu0
    %v1556 = vadd.f32 %v1410, %v1555
    %1557 = vdwg.mxu0
    %1558 = vmatpush.bf16.msra.mxu0 %v1518
    %1559 = vmatpush.bf16.msra.mxu0 %v1515
    %1560 = vmatpush.bf16.msra.mxu0 %v1512
    %1561 = vmatpush.bf16.msra.mxu0 %v1509
    %1562 = vmatpush.bf16.msra.mxu0 %v1506
    %1563 = vmatpush.bf16.msra.mxu0 %v1503
    %1564 = vmatpush.bf16.msra.mxu0 %v1500
    %1565 = vmatpush.bf16.msra.mxu0 %v1497
    %1566 = vmatmul.bf16.gmra.mxu0 %v1407
    %v1567 = vpop.f32.mrf.mxu0
    %v1568 = vadd.f32 %v1411, %v1567
    %v1569 = vpop.f32.mrf.mxu0
    %v1570 = vadd.f32 %v1411, %v1569
    %1571 = vdwg.mxu0
    %1572 = vmatpush.bf16.msra.mxu0 %v1519
    %1573 = vmatpush.bf16.msra.mxu0 %v1516
    %1574 = vmatpush.bf16.msra.mxu0 %v1513
    %1575 = vmatpush.bf16.msra.mxu0 %v1510
    %1576 = vmatpush.bf16.msra.mxu0 %v1507
    %1577 = vmatpush.bf16.msra.mxu0 %v1504
    %1578 = vmatpush.bf16.msra.mxu0 %v1501
    %1579 = vmatpush.bf16.msra.mxu0 %v1498
    %1580 = vmatmul.bf16.gmra.mxu0 %v1407
    %v1581 = vpop.f32.mrf.mxu0
    %v1582 = vadd.f32 %v1412, %v1581
    %v1583 = vpop.f32.mrf.mxu0
    %v1584 = vadd.f32 %v1412, %v1583
    %1585 = vdwg.mxu0
    %v1586 = vmul.f32 %v1554, %v1568
    %v1587 = vsel %vm894, %v1586, 0.0
    %1588 = vadd.xlane.f32.xlu0 %v1587
    %v1589 = vpop.xlane.xlu0 %1588
    %v1590 = vmul.f32 %v1589, 0.125
    %v1591 = vmul.f32 %v1554, %v1570
    %v1592 = vsel %vm894, %v1591, 0.0
    %1593 = vadd.xlane.f32.xlu0 %v1592
    %v1594 = vpop.xlane.xlu0 %1593
    %v1595 = vmul.f32 %v1594, 0.125
    %v1596 = vmax.f32 %v1590, %v1595
    %v1597 = vsub.f32 %v1590, %v1596
    %v1598 = vmul.f32 %v1597, 1.442695
    %v1599 = vpow.pop %v1598
    %v1600 = vsub.f32 %v1595, %v1596
    %v1601 = vmul.f32 %v1600, 1.442695
    %v1602 = vpow.pop %v1601
    %v1603 = vadd.f32 %v1599, %v1602
    %v1604 = vrcp.pop %v1603
    %v1605 = vmul.f32 %v1599, %v1604
    %v1606 = vmul.f32 %v1605, %v1582
    %v1607 = vmul.f32 %v1602, %v1604
    %v1608 = vmul.f32 %v1607, %v1584
    %v1609 = vadd.f32 %v1606, %v1608
    %1610 = vst.msk [vmem:[#allocation2] sm:$0xff] %vm894, %v1609
    %v1611 = vmul.f32 %v1556, %v1568
    %v1612 = vsel %vm894, %v1611, 0.0
    %1613 = vadd.xlane.f32.xlu0 %v1612
    %v1614 = vpop.xlane.xlu0 %1613
    %v1615 = vmul.f32 %v1614, 0.125
    %v1616 = vmul.f32 %v1556, %v1570
    %v1617 = vsel %vm894, %v1616, 0.0
    %1618 = vadd.xlane.f32.xlu0 %v1617
    %v1619 = vpop.xlane.xlu0 %1618
    %v1620 = vmul.f32 %v1619, 0.125
    %v1621 = vmax.f32 %v1615, %v1620
    %v1622 = vsub.f32 %v1615, %v1621
    %v1623 = vmul.f32 %v1622, 1.442695
    %v1624 = vpow.pop %v1623
    %v1625 = vsub.f32 %v1620, %v1621
    %v1626 = vmul.f32 %v1625, 1.442695
    %v1627 = vpow.pop %v1626
    %v1628 = vadd.f32 %v1624, %v1627
    %v1629 = vrcp.pop %v1628
    %v1630 = vmul.f32 %v1624, %v1629
    %v1631 = vmul.f32 %v1630, %v1582
    %v1632 = vmul.f32 %v1627, %v1629
    %v1633 = vmul.f32 %v1632, %v1584
    %v1634 = vadd.f32 %v1631, %v1633
    %1635 = vst.msk [vmem:[#allocation2 + $0x8] sm:$0xff] %vm894, %v1634
    %1637 = vrot.lane.b32.xlu0 %v1586, 64
    %v1638 = vpop.permute.xlu0 %1637
    %v1640 = vsel %vm894, %v1638, 0.0
    %1641 = vadd.xlane.f32.xlu0 %v1640
    %v1642 = vpop.xlane.xlu0 %1641
    %v1643 = vmul.f32 %v1642, 0.125
    %1645 = vrot.lane.b32.xlu0 %v1591, 64
    %v1646 = vpop.permute.xlu0 %1645
    %v1648 = vsel %vm894, %v1646, 0.0
    %1649 = vadd.xlane.f32.xlu0 %v1648
    %v1650 = vpop.xlane.xlu0 %1649
    %v1651 = vmul.f32 %v1650, 0.125
    %v1652 = vmax.f32 %v1643, %v1651
    %v1653 = vsub.f32 %v1643, %v1652
    %v1654 = vmul.f32 %v1653, 1.442695
    %v1655 = vpow.pop %v1654
    %v1656 = vsub.f32 %v1651, %v1652
    %v1657 = vmul.f32 %v1656, 1.442695
    %v1658 = vpow.pop %v1657
    %v1659 = vadd.f32 %v1655, %v1658
    %v1660 = vrcp.pop %v1659
    %v1661 = vmul.f32 %v1655, %v1660
    %v1662 = vmul.f32 %v1661, %v1582
    %v1663 = vmul.f32 %v1658, %v1660
    %v1664 = vmul.f32 %v1663, %v1584
    %v1665 = vadd.f32 %v1662, %v1664
    %1666 = vst.msk [vmem:[#allocation2] sm:$0xff] %vm974, %v1665
    %1668 = vrot.lane.b32.xlu0 %v1611, 64
    %v1669 = vpop.permute.xlu0 %1668
    %v1671 = vsel %vm894, %v1669, 0.0
    %1672 = vadd.xlane.f32.xlu0 %v1671
    %v1673 = vpop.xlane.xlu0 %1672
    %v1674 = vmul.f32 %v1673, 0.125
    %1676 = vrot.lane.b32.xlu0 %v1616, 64
    %v1677 = vpop.permute.xlu0 %1676
    %v1679 = vsel %vm894, %v1677, 0.0
    %1680 = vadd.xlane.f32.xlu0 %v1679
    %v1681 = vpop.xlane.xlu0 %1680
    %v1682 = vmul.f32 %v1681, 0.125
    %v1683 = vmax.f32 %v1674, %v1682
    %v1684 = vsub.f32 %v1674, %v1683
    %v1685 = vmul.f32 %v1684, 1.442695
    %v1686 = vpow.pop %v1685
    %v1687 = vsub.f32 %v1682, %v1683
    %v1688 = vmul.f32 %v1687, 1.442695
    %v1689 = vpow.pop %v1688
    %v1690 = vadd.f32 %v1686, %v1689
    %v1691 = vrcp.pop %v1690
    %v1692 = vmul.f32 %v1686, %v1691
    %v1693 = vmul.f32 %v1692, %v1582
    %v1694 = vmul.f32 %v1689, %v1691
    %v1695 = vmul.f32 %v1694, %v1584
    %v1696 = vadd.f32 %v1693, %v1695
    %1697 = vst.msk [vmem:[#allocation2 + $0x8] sm:$0xff] %vm974, %v1696
    %v1698 = vld [vmem:[#allocation2] sm:$0xff]
    %v1699 = vld [vmem:[#allocation2 + $0x8] sm:$0xff]
    %v1700 = vld [vmem:[#allocation26] sm:$0xf]
    %v1701 = vld [vmem:[#allocation26 + $0x4] sm:$0xf]
    %v1702 = vld [vmem:[#allocation26 + $0x8] sm:$0xf]
    %v1703 = vld [vmem:[#allocation26 + $0xc] sm:$0xf]
    %v1704 = vld [vmem:[#allocation26 + $0x10] sm:$0xf]
    %v1705 = vld [vmem:[#allocation26 + $0x14] sm:$0xf]
    %v1706 = vld [vmem:[#allocation26 + $0x18] sm:$0xf]
    %v1707 = vld [vmem:[#allocation26 + $0x1c] sm:$0xf]
    %v1708 = vld [vmem:[#allocation26 + $0x20] sm:$0xf]
    %v1709 = vld [vmem:[#allocation26 + $0x24] sm:$0xf]
    %v1710 = vld [vmem:[#allocation26 + $0x28] sm:$0xf]
    %v1711 = vld [vmem:[#allocation26 + $0x2c] sm:$0xf]
    %v1712 = vld [vmem:[#allocation26 + $0x30] sm:$0xf]
    %v1713 = vld [vmem:[#allocation26 + $0x34] sm:$0xf]
    %v1714 = vld [vmem:[#allocation26 + $0x38] sm:$0xf]
    %v1715 = vld [vmem:[#allocation26 + $0x3c] sm:$0xf]
    %v1716 = vpack.c.bf16 %v1699, %v1698
    %v1717 = vld [vmem:[%s37] sm:$0x1]
    %v1719 = vperm.slane %v1717, 0
    %v1737 = vunpack.c.l.b16 %v1700
    %v1738 = vunpack.c.l.b16 %v1701
    %v1739 = vunpack.c.l.b16 %v1702
    %v1740 = vunpack.c.l.b16 %v1703
    %v1741 = vunpack.c.l.b16 %v1704
    %v1742 = vunpack.c.l.b16 %v1705
    %v1743 = vunpack.c.l.b16 %v1706
    %v1744 = vunpack.c.l.b16 %v1707
    %v1745 = vunpack.c.l.b16 %v1708
    %v1746 = vunpack.c.l.b16 %v1709
    %v1747 = vunpack.c.l.b16 %v1710
    %v1748 = vunpack.c.l.b16 %v1711
    %v1749 = vunpack.c.l.b16 %v1712
    %v1750 = vunpack.c.l.b16 %v1713
    %v1751 = vunpack.c.l.b16 %v1714
    %v1752 = vunpack.c.l.b16 %v1715
    %v1753 = vpack.c.b16 %v1738, %v1737
    %v1754 = vpack.c.b16 %v1740, %v1739
    %v1755 = vpack.c.b16 %v1742, %v1741
    %v1756 = vpack.c.b16 %v1744, %v1743
    %v1757 = vpack.c.b16 %v1746, %v1745
    %v1758 = vpack.c.b16 %v1748, %v1747
    %v1759 = vpack.c.b16 %v1750, %v1749
    %v1760 = vpack.c.b16 %v1752, %v1751
    %1769 = vmatpush.bf16.msra.mxu0 %v1760
    %1770 = vmatpush.bf16.msra.mxu0 %v1759
    %1771 = vmatpush.bf16.msra.mxu0 %v1758
    %1772 = vmatpush.bf16.msra.mxu0 %v1757
    %1773 = vmatpush.bf16.msra.mxu0 %v1756
    %1774 = vmatpush.bf16.msra.mxu0 %v1755
    %1775 = vmatpush.bf16.msra.mxu0 %v1754
    %1776 = vmatpush.bf16.msra.mxu0 %v1753
    %1777 = vmatmul.bf16.gmra.mxu0 %v1716
    %v1778 = vpop.f32.mrf.mxu0
    %v1779 = vadd.f32 %v1719, %v1778
    %v1780 = vpop.f32.mrf.mxu0
    %v1781 = vadd.f32 %v1719, %v1780
    %1782 = vdwg.mxu0
    %v1783 = vadd.f32 %v1373, %v1779
    %v1784 = vadd.f32 %v1374, %v1781
    %v1785 = vld [vmem:[%s39] sm:$0x1]
    %v1786 = vld [vmem:[%s41] sm:$0x1]
    %1787 = vadd.xlane.f32.xlu0 %v1783
    %v1788 = vpop.xlane.xlu0 %1787
    %1789 = vadd.xlane.f32.xlu0 %v1784
    %v1790 = vpop.xlane.xlu0 %1789
    %v1791 = vmul.f32 %v1788, %v1106
    %v1792 = vmul.f32 %v1790, %v1106
    %v1793 = vsub.f32 %v1783, %v1791
    %v1794 = vsub.f32 %v1784, %v1792
    %v1795 = vmul.f32 %v1793, %v1793
    %v1796 = vmul.f32 %v1794, %v1794
    %1797 = vadd.xlane.f32.xlu0 %v1795
    %v1798 = vpop.xlane.xlu0 %1797
    %1799 = vadd.xlane.f32.xlu0 %v1796
    %v1800 = vpop.xlane.xlu0 %1799
    %v1801 = vmul.f32 %v1798, %v1106
    %v1802 = vmul.f32 %v1800, %v1106
    %v1803 = vadd.f32 %v1801, 1e-05
    %v1804 = vadd.f32 %v1802, 1e-05
    %v1805 = vrsqrt.pop %v1803
    %v1806 = vmul.f32 %v1805, %v1803
    %v1807 = vmul.f32 %v1806, %v1805
    %v1808 = vmul.f32 0.5, %v1807
    %v1809 = vsub.f32 1.5, %v1808
    %v1810 = vmul.f32 %v1805, %v1809
    %vm1811 = vweird.f32 %v1803
    %vm1812 = vweird.f32 %v1805
    %vm1813 = vmor %vm1811, %vm1812
    %v1814 = vsel %vm1813, %v1805, %v1810
    %v1815 = vrsqrt.pop %v1804
    %v1816 = vmul.f32 %v1815, %v1804
    %v1817 = vmul.f32 %v1816, %v1815
    %v1818 = vmul.f32 0.5, %v1817
    %v1819 = vsub.f32 1.5, %v1818
    %v1820 = vmul.f32 %v1815, %v1819
    %vm1821 = vweird.f32 %v1804
    %vm1822 = vweird.f32 %v1815
    %vm1823 = vmor %vm1821, %vm1822
    %v1824 = vsel %vm1823, %v1815, %v1820
    %v1825 = vmul.f32 %v1793, %v1814
    %v1826 = vmul.f32 %v1794, %v1824
    %v1828 = vperm.slane %v1785, 0
    %v1830 = vmul.f32 %v1825, %v1828
    %v1831 = vmul.f32 %v1826, %v1828
    %v1833 = vperm.slane %v1786, 0
    %v1835 = vadd.f32 %v1830, %v1833
    %v1836 = vadd.f32 %v1831, %v1833
    %v1837 = vld [vmem:[#allocation27] sm:$0xf]
    %v1838 = vld [vmem:[#allocation27 + $0x4] sm:$0xf]
    %v1839 = vld [vmem:[#allocation27 + $0x8] sm:$0xf]
    %v1840 = vld [vmem:[#allocation27 + $0xc] sm:$0xf]
    %v1841 = vld [vmem:[#allocation27 + $0x10] sm:$0xf]
    %v1842 = vld [vmem:[#allocation27 + $0x14] sm:$0xf]
    %v1843 = vld [vmem:[#allocation27 + $0x18] sm:$0xf]
    %v1844 = vld [vmem:[#allocation27 + $0x1c] sm:$0xf]
    %v1845 = vld [vmem:[#allocation27 + $0x20] sm:$0xf]
    %v1846 = vld [vmem:[#allocation27 + $0x24] sm:$0xf]
    %v1847 = vld [vmem:[#allocation27 + $0x28] sm:$0xf]
    %v1848 = vld [vmem:[#allocation27 + $0x2c] sm:$0xf]
    %v1849 = vld [vmem:[#allocation27 + $0x30] sm:$0xf]
    %v1850 = vld [vmem:[#allocation27 + $0x34] sm:$0xf]
    %v1851 = vld [vmem:[#allocation27 + $0x38] sm:$0xf]
    %v1852 = vld [vmem:[#allocation27 + $0x3c] sm:$0xf]
    %v1853 = vpack.c.bf16 %v1836, %v1835
    %v1854 = vld [vmem:[#allocation29] sm:$0x1]
    %v1856 = vperm.slane %v1854, 0
    %v1874 = vunpack.c.l.b16 %v1837
    %v1875 = vunpack.c.l.b16 %v1838
    %v1876 = vunpack.c.l.b16 %v1839
    %v1877 = vunpack.c.l.b16 %v1840
    %v1878 = vunpack.c.l.b16 %v1841
    %v1879 = vunpack.c.l.b16 %v1842
    %v1880 = vunpack.c.l.b16 %v1843
    %v1881 = vunpack.c.l.b16 %v1844
    %v1882 = vunpack.c.l.b16 %v1845
    %v1883 = vunpack.c.l.b16 %v1846
    %v1884 = vunpack.c.l.b16 %v1847
    %v1885 = vunpack.c.l.b16 %v1848
    %v1886 = vunpack.c.l.b16 %v1849
    %v1887 = vunpack.c.l.b16 %v1850
    %v1888 = vunpack.c.l.b16 %v1851
    %v1889 = vunpack.c.l.b16 %v1852
    %v1890 = vpack.c.b16 %v1875, %v1874
    %v1891 = vpack.c.b16 %v1877, %v1876
    %v1892 = vpack.c.b16 %v1879, %v1878
    %v1893 = vpack.c.b16 %v1881, %v1880
    %v1894 = vpack.c.b16 %v1883, %v1882
    %v1895 = vpack.c.b16 %v1885, %v1884
    %v1896 = vpack.c.b16 %v1887, %v1886
    %v1897 = vpack.c.b16 %v1889, %v1888
    %1906 = vmatpush.bf16.msra.mxu0 %v1897
    %1907 = vmatpush.bf16.msra.mxu0 %v1896
    %1908 = vmatpush.bf16.msra.mxu0 %v1895
    %1909 = vmatpush.bf16.msra.mxu0 %v1894
    %1910 = vmatpush.bf16.msra.mxu0 %v1893
    %1911 = vmatpush.bf16.msra.mxu0 %v1892
    %1912 = vmatpush.bf16.msra.mxu0 %v1891
    %1913 = vmatpush.bf16.msra.mxu0 %v1890
    %1914 = vmatmul.bf16.gmra.mxu0 %v1853
    %v1915 = vpop.f32.mrf.mxu0
    %v1916 = vadd.f32 %v1856, %v1915
    %v1917 = vpop.f32.mrf.mxu0
    %v1918 = vadd.f32 %v1856, %v1917
    %1919 = vdwg.mxu0
    %v1920 = vmax.f32 %v1916, 0.0
    %v1921 = vmax.f32 %v1918, 0.0
    %v1922 = vld [vmem:[#allocation30] sm:$0xf]
    %v1923 = vld [vmem:[#allocation30 + $0x4] sm:$0xf]
    %v1924 = vld [vmem:[#allocation30 + $0x8] sm:$0xf]
    %v1925 = vld [vmem:[#allocation30 + $0xc] sm:$0xf]
    %v1926 = vld [vmem:[#allocation30 + $0x10] sm:$0xf]
    %v1927 = vld [vmem:[#allocation30 + $0x14] sm:$0xf]
    %v1928 = vld [vmem:[#allocation30 + $0x18] sm:$0xf]
    %v1929 = vld [vmem:[#allocation30 + $0x1c] sm:$0xf]
    %v1930 = vld [vmem:[#allocation30 + $0x20] sm:$0xf]
    %v1931 = vld [vmem:[#allocation30 + $0x24] sm:$0xf]
    %v1932 = vld [vmem:[#allocation30 + $0x28] sm:$0xf]
    %v1933 = vld [vmem:[#allocation30 + $0x2c] sm:$0xf]
    %v1934 = vld [vmem:[#allocation30 + $0x30] sm:$0xf]
    %v1935 = vld [vmem:[#allocation30 + $0x34] sm:$0xf]
    %v1936 = vld [vmem:[#allocation30 + $0x38] sm:$0xf]
    %v1937 = vld [vmem:[#allocation30 + $0x3c] sm:$0xf]
    %v1938 = vpack.c.bf16 %v1921, %v1920
    %v1939 = vld [vmem:[#allocation32] sm:$0x1]
    %v1941 = vperm.slane %v1939, 0
    %v1959 = vunpack.c.l.b16 %v1922
    %v1960 = vunpack.c.l.b16 %v1923
    %v1961 = vunpack.c.l.b16 %v1924
    %v1962 = vunpack.c.l.b16 %v1925
    %v1963 = vunpack.c.l.b16 %v1926
    %v1964 = vunpack.c.l.b16 %v1927
    %v1965 = vunpack.c.l.b16 %v1928
    %v1966 = vunpack.c.l.b16 %v1929
    %v1967 = vunpack.c.l.b16 %v1930
    %v1968 = vunpack.c.l.b16 %v1931
    %v1969 = vunpack.c.l.b16 %v1932
    %v1970 = vunpack.c.l.b16 %v1933
    %v1971 = vunpack.c.l.b16 %v1934
    %v1972 = vunpack.c.l.b16 %v1935
    %v1973 = vunpack.c.l.b16 %v1936
    %v1974 = vunpack.c.l.b16 %v1937
    %v1975 = vpack.c.b16 %v1960, %v1959
    %v1976 = vpack.c.b16 %v1962, %v1961
    %v1977 = vpack.c.b16 %v1964, %v1963
    %v1978 = vpack.c.b16 %v1966, %v1965
    %v1979 = vpack.c.b16 %v1968, %v1967
    %v1980 = vpack.c.b16 %v1970, %v1969
    %v1981 = vpack.c.b16 %v1972, %v1971
    %v1982 = vpack.c.b16 %v1974, %v1973
    %1991 = vmatpush.bf16.msra.mxu0 %v1982
    %1992 = vmatpush.bf16.msra.mxu0 %v1981
    %1993 = vmatpush.bf16.msra.mxu0 %v1980
    %1994 = vmatpush.bf16.msra.mxu0 %v1979
    %1995 = vmatpush.bf16.msra.mxu0 %v1978
    %1996 = vmatpush.bf16.msra.mxu0 %v1977
    %1997 = vmatpush.bf16.msra.mxu0 %v1976
    %1998 = vmatpush.bf16.msra.mxu0 %v1975
    %1999 = vmatmul.bf16.gmra.mxu0 %v1938
    %v2000 = vpop.f32.mrf.mxu0
    %v2001 = vadd.f32 %v1941, %v2000
    %v2002 = vpop.f32.mrf.mxu0
    %v2003 = vadd.f32 %v1941, %v2002
    %2004 = vdwg.mxu0
    %v2005 = vadd.f32 %v1835, %v2001
    %v2006 = vadd.f32 %v1836, %v2003
    %v2007 = vld [vmem:[%s51] sm:$0x1]
    %v2008 = vld [vmem:[%s53] sm:$0x1]
    %2009 = vadd.xlane.f32.xlu0 %v2005
    %v2010 = vpop.xlane.xlu0 %2009
    %2011 = vadd.xlane.f32.xlu0 %v2006
    %v2012 = vpop.xlane.xlu0 %2011
    %v2013 = vmul.f32 %v2010, %v1106
    %v2014 = vmul.f32 %v2012, %v1106
    %v2015 = vsub.f32 %v2005, %v2013
    %v2016 = vsub.f32 %v2006, %v2014
    %v2017 = vmul.f32 %v2015, %v2015
    %v2018 = vmul.f32 %v2016, %v2016
    %2019 = vadd.xlane.f32.xlu0 %v2017
    %v2020 = vpop.xlane.xlu0 %2019
    %2021 = vadd.xlane.f32.xlu0 %v2018
    %v2022 = vpop.xlane.xlu0 %2021
    %v2023 = vmul.f32 %v2020, %v1106
    %v2024 = vmul.f32 %v2022, %v1106
    %v2025 = vadd.f32 %v2023, 1e-05
    %v2026 = vadd.f32 %v2024, 1e-05
    %v2027 = vrsqrt.pop %v2025
    %v2028 = vmul.f32 %v2027, %v2025
    %v2029 = vmul.f32 %v2028, %v2027
    %v2030 = vmul.f32 0.5, %v2029
    %v2031 = vsub.f32 1.5, %v2030
    %v2032 = vmul.f32 %v2027, %v2031
    %vm2033 = vweird.f32 %v2025
    %vm2034 = vweird.f32 %v2027
    %vm2035 = vmor %vm2033, %vm2034
    %v2036 = vsel %vm2035, %v2027, %v2032
    %v2037 = vrsqrt.pop %v2026
    %v2038 = vmul.f32 %v2037, %v2026
    %v2039 = vmul.f32 %v2038, %v2037
    %v2040 = vmul.f32 0.5, %v2039
    %v2041 = vsub.f32 1.5, %v2040
    %v2042 = vmul.f32 %v2037, %v2041
    %vm2043 = vweird.f32 %v2026
    %vm2044 = vweird.f32 %v2037
    %vm2045 = vmor %vm2043, %vm2044
    %v2046 = vsel %vm2045, %v2037, %v2042
    %v2047 = vmul.f32 %v2015, %v2036
    %v2048 = vmul.f32 %v2016, %v2046
    %v2050 = vperm.slane %v2007, 0
    %v2052 = vmul.f32 %v2047, %v2050
    %v2053 = vmul.f32 %v2048, %v2050
    %v2055 = vperm.slane %v2008, 0
    %v2057 = vadd.f32 %v2052, %v2055
    %v2058 = vadd.f32 %v2053, %v2055
    %v2059 = vld [vmem:[#allocation33] sm:$0xf]
    %v2060 = vld [vmem:[#allocation33 + $0x4] sm:$0xf]
    %v2061 = vld [vmem:[#allocation33 + $0x8] sm:$0xf]
    %v2062 = vld [vmem:[#allocation33 + $0xc] sm:$0xf]
    %v2063 = vld [vmem:[#allocation33 + $0x10] sm:$0xf]
    %v2064 = vld [vmem:[#allocation33 + $0x14] sm:$0xf]
    %v2065 = vld [vmem:[#allocation33 + $0x18] sm:$0xf]
    %v2066 = vld [vmem:[#allocation33 + $0x1c] sm:$0xf]
    %v2067 = vld [vmem:[#allocation33 + $0x20] sm:$0xf]
    %v2068 = vld [vmem:[#allocation33 + $0x24] sm:$0xf]
    %v2069 = vld [vmem:[#allocation33 + $0x28] sm:$0xf]
    %v2070 = vld [vmem:[#allocation33 + $0x2c] sm:$0xf]
    %v2071 = vld [vmem:[#allocation33 + $0x30] sm:$0xf]
    %v2072 = vld [vmem:[#allocation33 + $0x34] sm:$0xf]
    %v2073 = vld [vmem:[#allocation33 + $0x38] sm:$0xf]
    %v2074 = vld [vmem:[#allocation33 + $0x3c] sm:$0xf]
    %v2075 = vpack.c.bf16 %v2058, %v2057
    %v2076 = vld [vmem:[#allocation35] sm:$0x1]
    %v2078 = vperm.slane %v2076, 0
    %v2096 = vunpack.c.l.b16 %v2059
    %v2097 = vunpack.c.l.b16 %v2060
    %v2098 = vunpack.c.l.b16 %v2061
    %v2099 = vunpack.c.l.b16 %v2062
    %v2100 = vunpack.c.l.b16 %v2063
    %v2101 = vunpack.c.l.b16 %v2064
    %v2102 = vunpack.c.l.b16 %v2065
    %v2103 = vunpack.c.l.b16 %v2066
    %v2104 = vunpack.c.l.b16 %v2067
    %v2105 = vunpack.c.l.b16 %v2068
    %v2106 = vunpack.c.l.b16 %v2069
    %v2107 = vunpack.c.l.b16 %v2070
    %v2108 = vunpack.c.l.b16 %v2071
    %v2109 = vunpack.c.l.b16 %v2072
    %v2110 = vunpack.c.l.b16 %v2073
    %v2111 = vunpack.c.l.b16 %v2074
    %v2112 = vpack.c.b16 %v2097, %v2096
    %v2113 = vpack.c.b16 %v2099, %v2098
    %v2114 = vpack.c.b16 %v2101, %v2100
    %v2115 = vpack.c.b16 %v2103, %v2102
    %v2116 = vpack.c.b16 %v2105, %v2104
    %v2117 = vpack.c.b16 %v2107, %v2106
    %v2118 = vpack.c.b16 %v2109, %v2108
    %v2119 = vpack.c.b16 %v2111, %v2110
    %2128 = vmatpush.bf16.msra.mxu0 %v2119
    %2129 = vmatpush.bf16.msra.mxu0 %v2118
    %2130 = vmatpush.bf16.msra.mxu0 %v2117
    %2131 = vmatpush.bf16.msra.mxu0 %v2116
    %2132 = vmatpush.bf16.msra.mxu0 %v2115
    %2133 = vmatpush.bf16.msra.mxu0 %v2114
    %2134 = vmatpush.bf16.msra.mxu0 %v2113
    %2135 = vmatpush.bf16.msra.mxu0 %v2112
    %2136 = vmatmul.bf16.gmra.mxu0 %v2075
    %v2137 = vpop.f32.mrf.mxu0
    %v2138 = vadd.f32 %v2078, %v2137
    %v2139 = vpop.f32.mrf.mxu0
    %v2140 = vadd.f32 %v2078, %v2139
    %2141 = vdwg.mxu0
    %v2142 = vmax.f32 %v2138, 0.0
    %v2143 = vmax.f32 %v2140, 0.0
    %v2144 = vld [vmem:[%s59] sm:$0xf]
    %v2145 = vld [vmem:[%s59 + $0x4] sm:$0xf]
    %v2146 = vld [vmem:[%s59 + $0x8] sm:$0xf]
    %v2147 = vld [vmem:[%s59 + $0xc] sm:$0xf]
    %v2148 = vld [vmem:[%s59 + $0x10] sm:$0xf]
    %v2149 = vld [vmem:[%s59 + $0x14] sm:$0xf]
    %v2150 = vld [vmem:[%s59 + $0x18] sm:$0xf]
    %v2151 = vld [vmem:[%s59 + $0x1c] sm:$0xf]
    %v2152 = vld [vmem:[%s59 + $0x20] sm:$0xf]
    %v2153 = vld [vmem:[%s59 + $0x24] sm:$0xf]
    %v2154 = vld [vmem:[%s59 + $0x28] sm:$0xf]
    %v2155 = vld [vmem:[%s59 + $0x2c] sm:$0xf]
    %v2156 = vld [vmem:[%s59 + $0x30] sm:$0xf]
    %v2157 = vld [vmem:[%s59 + $0x34] sm:$0xf]
    %v2158 = vld [vmem:[%s59 + $0x38] sm:$0xf]
    %v2159 = vld [vmem:[%s59 + $0x3c] sm:$0xf]
    %v2160 = vpack.c.bf16 %v2143, %v2142
    %v2161 = vld [vmem:[#allocation36] sm:$0x1]
    %v2163 = vperm.slane %v2161, 0
    %v2181 = vunpack.c.l.b16 %v2144
    %v2182 = vunpack.c.l.b16 %v2145
    %v2183 = vunpack.c.l.b16 %v2146
    %v2184 = vunpack.c.l.b16 %v2147
    %v2185 = vunpack.c.l.b16 %v2148
    %v2186 = vunpack.c.l.b16 %v2149
    %v2187 = vunpack.c.l.b16 %v2150
    %v2188 = vunpack.c.l.b16 %v2151
    %v2189 = vunpack.c.l.b16 %v2152
    %v2190 = vunpack.c.l.b16 %v2153
    %v2191 = vunpack.c.l.b16 %v2154
    %v2192 = vunpack.c.l.b16 %v2155
    %v2193 = vunpack.c.l.b16 %v2156
    %v2194 = vunpack.c.l.b16 %v2157
    %v2195 = vunpack.c.l.b16 %v2158
    %v2196 = vunpack.c.l.b16 %v2159
    %v2197 = vpack.c.b16 %v2182, %v2181
    %v2198 = vpack.c.b16 %v2184, %v2183
    %v2199 = vpack.c.b16 %v2186, %v2185
    %v2200 = vpack.c.b16 %v2188, %v2187
    %v2201 = vpack.c.b16 %v2190, %v2189
    %v2202 = vpack.c.b16 %v2192, %v2191
    %v2203 = vpack.c.b16 %v2194, %v2193
    %v2204 = vpack.c.b16 %v2196, %v2195
    %2213 = vmatpush.bf16.msra.mxu0 %v2204
    %2214 = vmatpush.bf16.msra.mxu0 %v2203
    %2215 = vmatpush.bf16.msra.mxu0 %v2202
    %2216 = vmatpush.bf16.msra.mxu0 %v2201
    %2217 = vmatpush.bf16.msra.mxu0 %v2200
    %2218 = vmatpush.bf16.msra.mxu0 %v2199
    %2219 = vmatpush.bf16.msra.mxu0 %v2198
    %2220 = vmatpush.bf16.msra.mxu0 %v2197
    %2221 = vmatmul.bf16.gmra.mxu0 %v2160
    %v2222 = vpop.f32.mrf.mxu0
    %v2223 = vadd.f32 %v2163, %v2222
    %v2224 = vpop.f32.mrf.mxu0
    %v2225 = vadd.f32 %v2163, %v2224
    %2226 = vdwg.mxu0
    %vm2227 = vcmask 130048
    %v2228 = vsel %vm2227, %v2223, -inf
    %2229 = vmax.xlane.f32.xlu0 %v2228
    %v2230 = vpop.xlane.xlu0 %2229
    %v2231 = vsel %vm2227, %v2225, -inf
    %2232 = vmax.xlane.f32.xlu0 %v2231
    %v2233 = vpop.xlane.xlu0 %2232
    %v2234 = vsub.f32 %v2223, %v2230
    %v2235 = vsub.f32 %v2225, %v2233
    %v2236 = vmul.f32 %v2234, 1.442695
    %v2237 = vpow.pop %v2236
    %v2238 = vmul.f32 %v2235, 1.442695
    %v2239 = vpow.pop %v2238
    %v2240 = vsel %vm2227, %v2237, 0.0
    %2241 = vadd.xlane.f32.xlu0 %v2240
    %v2242 = vpop.xlane.xlu0 %2241
    %v2243 = vsel %vm2227, %v2239, 0.0
    %2244 = vadd.xlane.f32.xlu0 %v2243
    %v2245 = vpop.xlane.xlu0 %2244
    %v2246 = vrcp.pop %v2242
    %v2247 = vmul.f32 %v2242, %v2246
    %v2248 = vsub.f32 1.0, %v2247
    %v2249 = vmul.f32 %v2246, %v2248
    %v2250 = vadd.f32 %v2246, %v2249
    %vm2251 = vweird.f32 %v2242
    %vm2252 = vweird.f32 %v2246
    %vm2253 = vmor %vm2251, %vm2252
    %v2254 = vsel %vm2253, %v2246, %v2250
    %v2255 = vand.u32 2147483647, %v2242
    %vm2256 = vcmp.eq.f32.partialorder %v2255, 8.507059e+37
    %v2257 = vand.u32 %v2242, 2147483648
    %v2258 = vor.u32 1.1754944e-38, %v2257
    %v2259 = vsel %vm2256, %v2258, %v2254
    %v2260 = vmul.f32 %v2237, %v2259
    %v2261 = vrcp.pop %v2245
    %v2262 = vmul.f32 %v2245, %v2261
    %v2263 = vsub.f32 1.0, %v2262
    %v2264 = vmul.f32 %v2261, %v2263
    %v2265 = vadd.f32 %v2261, %v2264
    %vm2266 = vweird.f32 %v2245
    %vm2267 = vweird.f32 %v2261
    %vm2268 = vmor %vm2266, %vm2267
    %v2269 = vsel %vm2268, %v2261, %v2265
    %v2270 = vand.u32 2147483647, %v2245
    %vm2271 = vcmp.eq.f32.partialorder %v2270, 8.507059e+37
    %v2272 = vand.u32 %v2245, 2147483648
    %v2273 = vor.u32 1.1754944e-38, %v2272
    %v2274 = vsel %vm2271, %v2273, %v2269
    %v2275 = vmul.f32 %v2239, %v2274
    %2276 = vst.msk [vmem:[#allocation45] sm:$0xff] %vm2227, %v2260
    %2277 = vst.msk [vmem:[#allocation45 + $0x8] sm:$0xff] %vm2227, %v2275
    %vm2278 = vcmask 261248
    %v2279 = vsel %vm2278, %v2223, -inf
    %2280 = vmax.xlane.f32.xlu0 %v2279
    %v2281 = vpop.xlane.xlu0 %2280
    %v2282 = vsel %vm2278, %v2225, -inf
    %2283 = vmax.xlane.f32.xlu0 %v2282
    %v2284 = vpop.xlane.xlu0 %2283
    %v2285 = vsub.f32 %v2223, %v2281
    %v2286 = vsub.f32 %v2225, %v2284
    %v2287 = vmul.f32 %v2285, 1.442695
    %v2288 = vpow.pop %v2287
    %v2289 = vmul.f32 %v2286, 1.442695
    %v2290 = vpow.pop %v2289
    %2293 = vrot.lane.b32.xlu0 %v2288, 112
    %v2294 = vpop.permute.xlu0 %2293
    %2295 = vrot.lane.b32.xlu0 %v2290, 112
    %v2296 = vpop.permute.xlu0 %2295
    %v2299 = vsel %vm2227, %v2294, 0.0
    %2300 = vadd.xlane.f32.xlu0 %v2299
    %v2301 = vpop.xlane.xlu0 %2300
    %v2302 = vsel %vm2227, %v2296, 0.0
    %2303 = vadd.xlane.f32.xlu0 %v2302
    %v2304 = vpop.xlane.xlu0 %2303
    %v2305 = vrcp.pop %v2301
    %v2306 = vmul.f32 %v2301, %v2305
    %v2307 = vsub.f32 1.0, %v2306
    %v2308 = vmul.f32 %v2305, %v2307
    %v2309 = vadd.f32 %v2305, %v2308
    %vm2310 = vweird.f32 %v2301
    %vm2311 = vweird.f32 %v2305
    %vm2312 = vmor %vm2310, %vm2311
    %v2313 = vsel %vm2312, %v2305, %v2309
    %v2314 = vand.u32 2147483647, %v2301
    %vm2315 = vcmp.eq.f32.partialorder %v2314, 8.507059e+37
    %v2316 = vand.u32 %v2301, 2147483648
    %v2317 = vor.u32 1.1754944e-38, %v2316
    %v2318 = vsel %vm2315, %v2317, %v2313
    %v2319 = vmul.f32 %v2288, %v2318
    %v2320 = vrcp.pop %v2304
    %v2321 = vmul.f32 %v2304, %v2320
    %v2322 = vsub.f32 1.0, %v2321
    %v2323 = vmul.f32 %v2320, %v2322
    %v2324 = vadd.f32 %v2320, %v2323
    %vm2325 = vweird.f32 %v2304
    %vm2326 = vweird.f32 %v2320
    %vm2327 = vmor %vm2325, %vm2326
    %v2328 = vsel %vm2327, %v2320, %v2324
    %v2329 = vand.u32 2147483647, %v2304
    %vm2330 = vcmp.eq.f32.partialorder %v2329, 8.507059e+37
    %v2331 = vand.u32 %v2304, 2147483648
    %v2332 = vor.u32 1.1754944e-38, %v2331
    %v2333 = vsel %vm2330, %v2332, %v2328
    %v2334 = vmul.f32 %v2290, %v2333
    %2337 = vrot.lane.b32.xlu0 %v2319, 112
    %v2338 = vpop.permute.xlu0 %2337
    %2339 = vrot.lane.b32.xlu0 %v2334, 112
    %v2340 = vpop.permute.xlu0 %2339
    %2343 = vst.msk [vmem:[#allocation42] sm:$0xff] %vm2227, %v2338
    %2344 = vst.msk [vmem:[#allocation42 + $0x8] sm:$0xff] %vm2227, %v2340
    %v2345 = vld [vmem:[#allocation38] sm:$0xff]
    %v2346 = vld [vmem:[#allocation38 + $0x8] sm:$0xff]
    %v2347 = vld [vmem:[#allocation38 + $0x10] sm:$0xff]
    %v2348 = vld [vmem:[#allocation38 + $0x18] sm:$0xff]
    %v2349 = vld [vmem:[#allocation38 + $0x20] sm:$0xff]
    %v2350 = vld [vmem:[#allocation38 + $0x28] sm:$0xff]
    %v2351 = vld [vmem:[#allocation38 + $0x30] sm:$0xff]
    %v2352 = vld [vmem:[#allocation38 + $0x38] sm:$0xff]
    %v2353 = vld [vmem:[#allocation38 + $0x40] sm:$0xff]
    %v2354 = vld [vmem:[#allocation38 + $0x48] sm:$0xff]
    %v2355 = vld [vmem:[#allocation38 + $0x50] sm:$0xff]
    %v2356 = vld [vmem:[#allocation38 + $0x58] sm:$0xff]
    %v2357 = vld [vmem:[#allocation38 + $0x60] sm:$0xff]
    %v2358 = vld [vmem:[#allocation38 + $0x68] sm:$0xff]
    %v2359 = vld [vmem:[#allocation38 + $0x70] sm:$0xff]
    %v2360 = vld [vmem:[#allocation38 + $0x78] sm:$0xff]
    %v2361 = vld [vmem:[%s65] sm:$0x3]
    %v2363 = vperm.slane %v2361, 0
    %v2364 = vperm.slane %v2361, 1
    %v2383 = vunpack.c.l.b16 %v2345
    %v2384 = vunpack.c.h.b16 %v2345
    %v2385 = vunpack.c.l.b16 %v2346
    %v2386 = vunpack.c.h.b16 %v2346
    %v2387 = vunpack.c.l.b16 %v2347
    %v2388 = vunpack.c.h.b16 %v2347
    %v2389 = vunpack.c.l.b16 %v2348
    %v2390 = vunpack.c.h.b16 %v2348
    %v2391 = vunpack.c.l.b16 %v2349
    %v2392 = vunpack.c.h.b16 %v2349
    %v2393 = vunpack.c.l.b16 %v2350
    %v2394 = vunpack.c.h.b16 %v2350
    %v2395 = vunpack.c.l.b16 %v2351
    %v2396 = vunpack.c.h.b16 %v2351
    %v2397 = vunpack.c.l.b16 %v2352
    %v2398 = vunpack.c.h.b16 %v2352
    %v2399 = vunpack.c.l.b16 %v2353
    %v2400 = vunpack.c.h.b16 %v2353
    %v2401 = vunpack.c.l.b16 %v2354
    %v2402 = vunpack.c.h.b16 %v2354
    %v2403 = vunpack.c.l.b16 %v2355
    %v2404 = vunpack.c.h.b16 %v2355
    %v2405 = vunpack.c.l.b16 %v2356
    %v2406 = vunpack.c.h.b16 %v2356
    %v2407 = vunpack.c.l.b16 %v2357
    %v2408 = vunpack.c.h.b16 %v2357
    %v2409 = vunpack.c.l.b16 %v2358
    %v2410 = vunpack.c.h.b16 %v2358
    %v2411 = vunpack.c.l.b16 %v2359
    %v2412 = vunpack.c.h.b16 %v2359
    %v2413 = vunpack.c.l.b16 %v2360
    %v2414 = vunpack.c.h.b16 %v2360
    %v2415 = vpack.c.b16 %v2385, %v2383
    %v2416 = vpack.c.b16 %v2386, %v2384
    %v2417 = vpack.c.b16 %v2389, %v2387
    %v2418 = vpack.c.b16 %v2390, %v2388
    %v2419 = vpack.c.b16 %v2393, %v2391
    %v2420 = vpack.c.b16 %v2394, %v2392
    %v2421 = vpack.c.b16 %v2397, %v2395
    %v2422 = vpack.c.b16 %v2398, %v2396
    %v2423 = vpack.c.b16 %v2401, %v2399
    %v2424 = vpack.c.b16 %v2402, %v2400
    %v2425 = vpack.c.b16 %v2405, %v2403
    %v2426 = vpack.c.b16 %v2406, %v2404
    %v2427 = vpack.c.b16 %v2409, %v2407
    %v2428 = vpack.c.b16 %v2410, %v2408
    %v2429 = vpack.c.b16 %v2413, %v2411
    %v2430 = vpack.c.b16 %v2414, %v2412
    %2447 = vmatpush.bf16.msra.mxu0 %v2429
    %2448 = vmatpush.bf16.msra.mxu0 %v2427
    %2449 = vmatpush.bf16.msra.mxu0 %v2425
    %2450 = vmatpush.bf16.msra.mxu0 %v2423
    %2451 = vmatpush.bf16.msra.mxu0 %v2421
    %2452 = vmatpush.bf16.msra.mxu0 %v2419
    %2453 = vmatpush.bf16.msra.mxu0 %v2417
    %2454 = vmatpush.bf16.msra.mxu0 %v2415
    %2455 = vmatmul.bf16.gmra.mxu0 %v2075
    %v2456 = vpop.f32.mrf.mxu0
    %v2457 = vadd.f32 %v2363, %v2456
    %v2458 = vpop.f32.mrf.mxu0
    %v2459 = vadd.f32 %v2363, %v2458
    %2460 = vdwg.mxu0
    %2461 = vmatpush.bf16.msra.mxu0 %v2430
    %2462 = vmatpush.bf16.msra.mxu0 %v2428
    %2463 = vmatpush.bf16.msra.mxu0 %v2426
    %2464 = vmatpush.bf16.msra.mxu0 %v2424
    %2465 = vmatpush.bf16.msra.mxu0 %v2422
    %2466 = vmatpush.bf16.msra.mxu0 %v2420
    %2467 = vmatpush.bf16.msra.mxu0 %v2418
    %2468 = vmatpush.bf16.msra.mxu0 %v2416
    %2469 = vmatmul.bf16.gmra.mxu0 %v2075
    %v2470 = vpop.f32.mrf.mxu0
    %v2471 = vadd.f32 %v2364, %v2470
    %v2472 = vpop.f32.mrf.mxu0
    %v2473 = vadd.f32 %v2364, %v2472
    %2474 = vdwg.mxu0
    %v2475 = vld [vmem:[#allocation39] sm:$0xf]
    %v2476 = vld [vmem:[#allocation39 + $0x4] sm:$0xf]
    %v2477 = vld [vmem:[#allocation39 + $0x8] sm:$0xf]
    %v2478 = vld [vmem:[#allocation39 + $0xc] sm:$0xf]
    %v2479 = vld [vmem:[#allocation39 + $0x10] sm:$0xf]
    %v2480 = vld [vmem:[#allocation39 + $0x14] sm:$0xf]
    %v2481 = vld [vmem:[#allocation39 + $0x18] sm:$0xf]
    %v2482 = vld [vmem:[#allocation39 + $0x1c] sm:$0xf]
    %v2483 = vld [vmem:[#allocation39 + $0x20] sm:$0xf]
    %v2484 = vld [vmem:[#allocation39 + $0x24] sm:$0xf]
    %v2485 = vld [vmem:[#allocation39 + $0x28] sm:$0xf]
    %v2486 = vld [vmem:[#allocation39 + $0x2c] sm:$0xf]
    %v2487 = vld [vmem:[#allocation39 + $0x30] sm:$0xf]
    %v2488 = vld [vmem:[#allocation39 + $0x34] sm:$0xf]
    %v2489 = vld [vmem:[#allocation39 + $0x38] sm:$0xf]
    %v2490 = vld [vmem:[#allocation39 + $0x3c] sm:$0xf]
    %v2491 = vpack.c.bf16 %v2473, %v2471
    %v2492 = vld [vmem:[#allocation41] sm:$0x1]
    %v2494 = vperm.slane %v2492, 0
    %v2512 = vunpack.c.l.b16 %v2475
    %v2513 = vunpack.c.l.b16 %v2476
    %v2514 = vunpack.c.l.b16 %v2477
    %v2515 = vunpack.c.l.b16 %v2478
    %v2516 = vunpack.c.l.b16 %v2479
    %v2517 = vunpack.c.l.b16 %v2480
    %v2518 = vunpack.c.l.b16 %v2481
    %v2519 = vunpack.c.l.b16 %v2482
    %v2520 = vunpack.c.l.b16 %v2483
    %v2521 = vunpack.c.l.b16 %v2484
    %v2522 = vunpack.c.l.b16 %v2485
    %v2523 = vunpack.c.l.b16 %v2486
    %v2524 = vunpack.c.l.b16 %v2487
    %v2525 = vunpack.c.l.b16 %v2488
    %v2526 = vunpack.c.l.b16 %v2489
    %v2527 = vunpack.c.l.b16 %v2490
    %v2528 = vpack.c.b16 %v2513, %v2512
    %v2529 = vpack.c.b16 %v2515, %v2514
    %v2530 = vpack.c.b16 %v2517, %v2516
    %v2531 = vpack.c.b16 %v2519, %v2518
    %v2532 = vpack.c.b16 %v2521, %v2520
    %v2533 = vpack.c.b16 %v2523, %v2522
    %v2534 = vpack.c.b16 %v2525, %v2524
    %v2535 = vpack.c.b16 %v2527, %v2526
    %2544 = vmatpush.bf16.msra.mxu0 %v2535
    %2545 = vmatpush.bf16.msra.mxu0 %v2534
    %2546 = vmatpush.bf16.msra.mxu0 %v2533
    %2547 = vmatpush.bf16.msra.mxu0 %v2532
    %2548 = vmatpush.bf16.msra.mxu0 %v2531
    %2549 = vmatpush.bf16.msra.mxu0 %v2530
    %2550 = vmatpush.bf16.msra.mxu0 %v2529
    %2551 = vmatpush.bf16.msra.mxu0 %v2528
    %2552 = vmatmul.bf16.gmra.mxu0 %v2491
    %v2553 = vpop.f32.mrf.mxu0
    %v2554 = vadd.f32 %v2494, %v2553
    %v2555 = vpop.f32.mrf.mxu0
    %v2556 = vadd.f32 %v2494, %v2555
    %2557 = vdwg.mxu0
    %v2558 = vpack.c.bf16 %v2457, %v2457
    %v2559 = vpack.c.bf16 %v2459, %v2459
    %v2560 = vpack.c.bf16 %v2554, %v2554
    %v2561 = vpack.c.bf16 %v2556, %v2556
    %2562 = vmatpush.bf16.xpose.msra.mxu0 0
    %2563 = vmatpush.bf16.xpose.msra.mxu0 0
    %2564 = vmatpush.bf16.xpose.msra.mxu0 0
    %2565 = vmatpush.bf16.xpose.msra.mxu0 0
    %2566 = vmatpush.bf16.xpose.msra.mxu0 0
    %2567 = vmatpush.bf16.xpose.msra.mxu0 0
    %2568 = vmatpush.bf16.xpose.msra.mxu0 0
    %2569 = vmatpush.bf16.xpose.msra.mxu0 %v2560
    %2570 = vmatmul.bf16.gmra.mxu0 %v2558
    %v2571 = vpop.f32.mrf.mxu0
    %v2572 = vadd.f32 0.0, %v2571
    %v2573 = vpop.f32.mrf.mxu0
    %2574 = vdwg.mxu0
    %vm2575 = vcmask 64512
    %v2576 = vsel %vm2575, %v2572, -inf
    %2577 = vmax.xlane.f32.xlu0 %v2576
    %v2578 = vpop.xlane.xlu0 %2577
    %v2579 = vsub.f32 %v2572, %v2578
    %v2580 = vmul.f32 %v2579, 1.442695
    %v2581 = vpow.pop %v2580
    %v2582 = vsel %vm2575, %v2581, 0.0
    %2583 = vadd.xlane.f32.xlu0 %v2582
    %v2584 = vpop.xlane.xlu0 %2583
    %v2585 = vrcp.pop %v2584
    %v2586 = vmul.f32 %v2584, %v2585
    %v2587 = vsub.f32 1.0, %v2586
    %v2588 = vmul.f32 %v2585, %v2587
    %v2589 = vadd.f32 %v2585, %v2588
    %vm2590 = vweird.f32 %v2584
    %vm2591 = vweird.f32 %v2585
    %vm2592 = vmor %vm2590, %vm2591
    %v2593 = vsel %vm2592, %v2585, %v2589
    %v2594 = vand.u32 2147483647, %v2584
    %vm2595 = vcmp.eq.f32.partialorder %v2594, 8.507059e+37
    %v2596 = vand.u32 %v2584, 2147483648
    %v2597 = vor.u32 1.1754944e-38, %v2596
    %v2598 = vsel %vm2595, %v2597, %v2593
    %v2599 = vmul.f32 %v2581, %v2598
    %2600 = vst.msk [vmem:[#allocation43] sm:$0xff] %vm2575, %v2599
    %2601 = vmatpush.bf16.xpose.msra.mxu0 0
    %2602 = vmatpush.bf16.xpose.msra.mxu0 0
    %2603 = vmatpush.bf16.xpose.msra.mxu0 0
    %2604 = vmatpush.bf16.xpose.msra.mxu0 0
    %2605 = vmatpush.bf16.xpose.msra.mxu0 0
    %2606 = vmatpush.bf16.xpose.msra.mxu0 0
    %2607 = vmatpush.bf16.xpose.msra.mxu0 0
    %2608 = vmatpush.bf16.xpose.msra.mxu0 %v2561
    %2609 = vmatmul.bf16.gmra.mxu0 %v2559
    %v2610 = vpop.f32.mrf.mxu0
    %v2611 = vadd.f32 0.0, %v2610
    %v2612 = vpop.f32.mrf.mxu0
    %2613 = vdwg.mxu0
    %v2614 = vsel %vm2575, %v2611, -inf
    %2615 = vmax.xlane.f32.xlu0 %v2614
    %v2616 = vpop.xlane.xlu0 %2615
    %v2617 = vsub.f32 %v2611, %v2616
    %v2618 = vmul.f32 %v2617, 1.442695
    %v2619 = vpow.pop %v2618
    %v2620 = vsel %vm2575, %v2619, 0.0
    %2621 = vadd.xlane.f32.xlu0 %v2620
    %v2622 = vpop.xlane.xlu0 %2621
    %v2623 = vrcp.pop %v2622
    %v2624 = vmul.f32 %v2622, %v2623
    %v2625 = vsub.f32 1.0, %v2624
    %v2626 = vmul.f32 %v2623, %v2625
    %v2627 = vadd.f32 %v2623, %v2626
    %vm2628 = vweird.f32 %v2622
    %vm2629 = vweird.f32 %v2623
    %vm2630 = vmor %vm2628, %vm2629
    %v2631 = vsel %vm2630, %v2623, %v2627
    %v2632 = vand.u32 2147483647, %v2622
    %vm2633 = vcmp.eq.f32.partialorder %v2632, 8.507059e+37
    %v2634 = vand.u32 %v2622, 2147483648
    %v2635 = vor.u32 1.1754944e-38, %v2634
    %v2636 = vsel %vm2633, %v2635, %v2631
    %v2637 = vmul.f32 %v2619, %v2636
    %s2638 = scalar_lea.vmem [#allocation43], 8
    %2639 = vst.msk [vmem:[%s2638] sm:$0xff] %vm2575, %v2637
    // Predicated region
    $region242: #{graph_transformer_forward.1} parent=1 // pred_check
      _
    $region243: #{graph_transformer_forward.1} parent=1 // pred_check_branch
      %2641 = sbr.rel (0) target = $region245
    $region244: #{graph_transformer_forward.1} parent=1 // pred_region
      %2643 = vsyncadd [#allocation5], 0
      %s2644 = sshll.u32 [#allocation42], 4
      %s2645 = int_to_ptr.vmem [resolvable:$true] %s2644
      %s2646 = sshll.u32 %s71, 4
      %s2647 = int_to_ptr.hbm [resolvable:$true] %s2646
      %2652 = dma.vmem_to_hbm [thread:$0]  %s2645, 256, %s2647, [#allocation5], 128, 128, 8
    $region245: #{graph_transformer_forward.1} parent=1 // pred_fallthru
      _
    // Predicated region
    $region246: #{graph_transformer_forward.1} parent=1 // pred_check
      _
    $region247: #{graph_transformer_forward.1} parent=1 // pred_check_branch
      %2654 = sbr.rel (0) target = $region249
    $region248: #{graph_transformer_forward.1} parent=1 // pred_region
      %2656 = vsyncadd [#allocation44], 0
      %s2657 = sshll.u32 [#allocation43], 4
      %s2658 = int_to_ptr.vmem [resolvable:$true] %s2657
      %s2659 = sshll.u32 %s73, 4
      %s2660 = int_to_ptr.hbm [resolvable:$true] %s2659
      %2665 = dma.vmem_to_hbm [thread:$0]  %s2658, 256, %s2660, [#allocation44], 128, 128, 8
    $region249: #{graph_transformer_forward.1} parent=1 // pred_fallthru
      _
    // Predicated region
    $region250: #{graph_transformer_forward.1} parent=1 // pred_check
      _
    $region251: #{graph_transformer_forward.1} parent=1 // pred_check_branch
      %2667 = sbr.rel (0) target = $region253
    $region252: #{graph_transformer_forward.1} parent=1 // pred_region
      %2669 = vsyncadd [#allocation44], 0
      %s2670 = sshll.u32 [#allocation45], 4
      %s2671 = int_to_ptr.vmem [resolvable:$true] %s2670
      %s2672 = sshll.u32 %s75, 4
      %s2673 = int_to_ptr.hbm [resolvable:$true] %s2672
      %2678 = dma.vmem_to_hbm [thread:$0]  %s2671, 256, %s2673, [#allocation44], 128, 128, 8
    $region253: #{graph_transformer_forward.1} parent=1 // pred_fallthru
      _
    // Predicated region
    $region254: #{graph_transformer_forward.1} parent=1 // pred_check
      _
    $region255: #{graph_transformer_forward.1} parent=1 // pred_check_branch
      %2680 = sbr.rel (0) target = $region257
    $region256: #{graph_transformer_forward.1} parent=1 // pred_region
      %2682 = dma.done [#allocation5], 256
    $region257: #{graph_transformer_forward.1} parent=1 // pred_fallthru
      _
    // Predicated region
    $region258: #{graph_transformer_forward.1} parent=1 // pred_check
      _
    $region259: #{graph_transformer_forward.1} parent=1 // pred_check_branch
      %2684 = sbr.rel (0) target = $region261
    $region260: #{graph_transformer_forward.1} parent=1 // pred_region
      %2686 = dma.done [#allocation44], 256
    $region261: #{graph_transformer_forward.1} parent=1 // pred_fallthru
      _
    // Predicated region
    $region262: #{graph_transformer_forward.1} parent=1 // pred_check
      _
    $region263: #{graph_transformer_forward.1} parent=1 // pred_check_branch
      %2688 = sbr.rel (0) target = $region265
    $region264: #{graph_transformer_forward.1} parent=1 // pred_region
      %2690 = dma.done [#allocation44], 256
    $region265: #{graph_transformer_forward.1} parent=1 // pred_fallthru
      _
    %2691 = vsyncpa [#allocation4], 1
    %2692 = vsyncpa [#allocation7], 1
    %2693 = vsyncpa [#allocation10], 1
    %2694 = vsyncpa [#allocation13], 1
    %2695 = vsyncpa [#allocation16], 1
    %2696 = vsyncpa [#allocation19], 1
    %2697 = vsyncpa [#allocation22], 1
    %2698 = vsyncpa [#allocation25], 1
    %2699 = vsyncpa [#allocation28], 1
    %2700 = vsyncpa [#allocation31], 1
    %2701 = vsyncpa [#allocation34], 1
    %2702 = vsyncpa [#allocation37], 1
    %2703 = vsyncpa [#allocation40], 1
    %2704 = vsyncpa [#allocation5], 1
    %2705 = vsyncpa [#allocation44], 1

</llo_original>
